<compile_context>
chip_gen: v6e
topology: v6e:2x2x1
jax: 0.10.0
libtpu: 0.0.40
codegen_flags: <defaults>
</compile_context>

<pallas_src>
import functools

import jax
import jax.numpy as jnp
from jax import lax
from jax.experimental import pallas as pl
from jax.experimental.pallas import tpu as pltpu

# ----------------------------- configuration --------------------------------
CHANNELS = 32          # `channels`
K = 4                  # `k`
DILATIONS = (1, 2)     # `dilations`
R = 2                  # upsampling ratio `r`
N_IDGCN = 1            # `n_idgcn_blocks`
N_DGCN = 2             # `n_dgcn_blocks`
CONV_SLOPE = 0.2       # LeakyReLU slope inside the EdgeConv edge-MLP
REC_SLOPE = 0.01       # torch.nn.LeakyReLU() default in the reconstructor
MXU_DTYPE = jnp.bfloat16   # matmul operand dtype (f32 accumulation on MXU)
# use_refiner=False (default) -> refiner is None, res = reconstructor output.

# Stacked one-hot neighbour selections are needed per dilation value; dilation
# 1 is always needed (stem + NodeShuffle use idx[:, :K]).
SEL_DILATIONS = tuple(sorted(set(DILATIONS) | {1}))


def _full_spec(shape):
  zeros = (0,) * len(shape)
  return pl.BlockSpec(shape, lambda i, z=zeros: z)


def _mm(a, b):
  """MXU matmul with bf16 operands and f32 accumulation."""
  return jnp.dot(a.astype(MXU_DTYPE), b.astype(MXU_DTYPE),
                 preferred_element_type=jnp.float32)


# ------------------------------ fused kernel ---------------------------------
def _pugcn_kernel(*refs, treedef):
  """refs = (x_ref, *param_refs, o_ref, *sel_scratch_refs)."""
  n_sel = len(SEL_DILATIONS)
  x_ref = refs[0]
  param_refs = refs[1:-(n_sel + 1)]
  o_ref = refs[-(n_sel + 1)]
  sel_refs = dict(zip(SEL_DILATIONS, refs[-n_sel:]))
  params = jax.tree_util.tree_unflatten(treedef, param_refs)

  x = x_ref[...].astype(jnp.float32)                     # [N, 3]
  n = x.shape[0]
  kmax = K * max(DILATIONS)

  # ---- k-NN graph (knn_graph, no self loops), fully in VMEM -----------------
  # d[i, j] = |x_i|^2 + |x_j|^2 - 2 x_i.x_j ; only per-row ordering is used,
  # so slight fp cancellation is harmless.
  gram = lax.dot_general(x, x, (((1,), (1,)), ((), ())),
                         preferred_element_type=jnp.float32)     # x @ x.T
  sq = jnp.sum(x * x, axis=1, keepdims=True)                     # [N, 1]
  ones = jnp.ones_like(sq)
  col_sq = lax.dot_general(ones, sq, (((1,), (1,)), ((), ())),
                           preferred_element_type=jnp.float32)   # sq_j bcast
  d = sq + col_sq - 2.0 * gram        # row term = free VPU broadcast add

  col_i = lax.broadcasted_iota(jnp.int32, (n, n), 1)
  row_i = lax.broadcasted_iota(jnp.int32, (n, n), 0)
  col_f = col_i.astype(jnp.float32)
  big = jnp.float32(1e30)
  d = jnp.where(row_i == col_i, big, d)                 # exclude self loops

  # Iterative k-min selection; writes stacked one-hot selection matrices
  # (idx[:, ::dil][:, :K] layout) into VMEM scratch — no NxN HBM round trip,
  # no lax.top_k glue, no [K, N, C] gather in HBM.
  for kk in range(kmax):
    m = jnp.min(d, axis=1, keepdims=True)               # row minimum
    cand = jnp.where(d <= m, col_f, jnp.float32(n))     # first-min tie break
    j = jnp.min(cand, axis=1, keepdims=True)            # [N, 1] neighbour id
    onehot = (col_f == j)
    d = jnp.where(onehot, big, d)                       # mask for next rounds
    oh = onehot.astype(jnp.float32)
    for dil in SEL_DILATIONS:
      if kk % dil == 0 and kk // dil < K:               # slot in dilated idx
        r0 = (kk // dil) * n
        sel_refs[dil][r0:r0 + n, :] = oh

  sel = {dil: sel_refs[dil][...] for dil in SEL_DILATIONS}   # [K*N, N] each

  # ---- EdgeConv: out_i = max_k LeakyReLU(Wc x_i + Wd (x_{j_k} - x_i) + b) ---
  def edge_conv(h, sel_mat, p):
    wc = p["wc"][...]
    wd = p["wd"][...]
    b = p["b"][...]
    cmd = _mm(h, wc - wd) + b            # = h@Wc + b - h@Wd  (bias hoisted)
    xw = _mm(h, wd)                      # [N, Cout] projection, computed once
    # One batched gather matmul for all K neighbour slots (exact 0/1 select).
    gath = jnp.dot(sel_mat, xw, preferred_element_type=jnp.float32)
    best = None
    for kk in range(K):
      hk = cmd + gath[kk * n:(kk + 1) * n, :]
      hk = jnp.where(hk > 0.0, hk, CONV_SLOPE * hk)
      best = hk if best is None else jnp.maximum(best, hk)
    return best

  # ---- InceptionFeatureExtractor --------------------------------------------
  # TODO(synk): exact InceptionDenseGCN internals (bottleneck/pooling/residual
  # options) are not in the provided source; implemented as the canonical
  # PU-GCN inception of dilated EdgeConv (conv="edge") branches.
  h = edge_conv(x, sel[1], params["pre"])                # 3 -> C stem
  for block in params["idgcn"]:
    fused = None
    for dil, layers in zip(DILATIONS, block):
      hd = h
      for lp in layers:                                  # DenseGCN residuals
        hd = hd + edge_conv(hd, sel[dil], lp)            # folded in-kernel
      fused = hd if fused is None else fused + hd
    h = fused * (1.0 / len(DILATIONS))                   # inception fusion

  # ---- GeneralUpsampler("nodeshuffle") + reconstructor ----------------------
  # The C -> r*C graph conv is split into r channel blocks (exactly the
  # einops 'n (r c) -> (n r) c' ordering); each block runs straight through
  # the reconstructor while resident in VMEM.
  rp = params["rec"]
  for rr, nsp in enumerate(params["ns"]):
    hs = edge_conv(h, sel[1], nsp)                       # [N, C]
    h1 = _mm(hs, rp["w1"][...]) + rp["b1"][...]
    h1 = jnp.where(h1 > 0.0, h1, REC_SLOPE * h1)
    q = _mm(h1, rp["w2"][...]) + rp["b2"][...]           # [N, 3]
    o_ref[rr] = q.astype(o_ref.dtype)                    # upsampled copy rr
  # TODO(synk): Refiner (GraphConv 'point_transformer') branch not implemented;
  # use_refiner defaults to False so refiner is None and res = q.


# ------------------------------ parameters -----------------------------------
def init_params(key):
  keys = iter(jax.random.split(key, 64))

  def ec(cin, cout):
    k1, k2, k3 = jax.random.split(next(keys), 3)
    s = 1.0 / jnp.sqrt(jnp.float32(cin))
    return {
        "wc": jax.random.normal(k1, (cin, cout), jnp.float32) * s,
        "wd": jax.random.normal(k2, (cin, cout), jnp.float32) * s,
        "b": jax.random.normal(k3, (1, cout), jnp.float32) * 0.01,
    }

  def lin(cin, cout):
    k1, k2 = jax.random.split(next(keys), 2)
    s = 1.0 / jnp.sqrt(jnp.float32(cin))
    return (jax.random.normal(k1, (cin, cout), jnp.float32) * s,
            jax.random.normal(k2, (1, cout), jnp.float32) * 0.01)

  params = {}
  params["pre"] = ec(3, CHANNELS)                     # feature-extractor stem
  params["idgcn"] = [
      [[ec(CHANNELS, CHANNELS) for _ in range(N_DGCN)] for _ in DILATIONS]
      for _ in range(N_IDGCN)
  ]
  params["ns"] = ec(CHANNELS, CHANNELS * R)           # NodeShuffle graph conv
  w1, b1 = lin(CHANNELS, CHANNELS)
  w2, b2 = lin(CHANNELS, 3)
  params["rec"] = {"w1": w1, "b1": b1, "w2": w2, "b2": b2}
  return params


def pack_params(params):
  """Prepare module params for the fused kernel.

  The C -> r*C NodeShuffle conv is split into r independent C -> C convs:
  EdgeConv max-aggregation is per-channel, so slicing the output channels is
  identical to slicing the weights, and block rr corresponds to channels
  [rr*C, (rr+1)*C) — exactly einops 'n (r c) -> (n r) c'.
  """
  c = CHANNELS
  return {
      "pre": params["pre"],
      "idgcn": params["idgcn"],
      "rec": params["rec"],
      "ns": [
          {"wc": params["ns"]["wc"][:, rr * c:(rr + 1) * c],
           "wd": params["ns"]["wd"][:, rr * c:(rr + 1) * c],
           "b": params["ns"]["b"][:, rr * c:(rr + 1) * c]}
          for rr in range(R)
      ],
  }


# -------------------------------- forward ------------------------------------
def pugcn_forward(params, x):
  """x: [N, 3] concatenated point cloud (batch=None, single graph)."""
  n = x.shape[0]
  packed = pack_params(params)
  flat, treedef = jax.tree_util.tree_flatten(packed)
  kernel = functools.partial(_pugcn_kernel, treedef=treedef)

  out = pl.pallas_call(
      kernel,
      out_shape=jax.ShapeDtypeStruct((R, n, 3), jnp.float32),
      grid=(1,),
      in_specs=[_full_spec(x.shape)] + [_full_spec(p.shape) for p in flat],
      out_specs=_full_spec((R, n, 3)),
      scratch_shapes=[pltpu.VMEM((K * n, n), jnp.float32)
                      for _ in SEL_DILATIONS],
      # TODO(synk): for large point clouds, tile the knn/conv work over a row
      # grid and mark that axis "parallel" (shards across v7x's 2 TensorCores
      # and keeps the NxN distance block within v7x's 64 MiB VMEM).
      compiler_params=pltpu.CompilerParams(
          dimension_semantics=("arbitrary",)),
  )(x, *flat)

  # NodeShuffle 'n (r c) -> (n r) c': copy rr of point i -> output row i*R+rr.
  res = jnp.transpose(out, (1, 0, 2)).reshape(n * R, 3)
  return res


# ---------------------------------- main --------------------------------------
if __name__ == "__main__":
  key = jax.random.PRNGKey(0)
  kx, kp = jax.random.split(key)
  N = 16
  x = jax.random.normal(kx, (N, 3), jnp.float32)
  params = init_params(kp)

  out = jax.jit(pugcn_forward)(params, x)
  out = jax.block_until_ready(out)
  assert out.shape == (N * R, 3), out.shape
  assert bool(jnp.all(jnp.isfinite(out)))
  print("KERNEL_OK")
</pallas_src>

<mosaic_0001>
module attributes {stable_mosaic.version = 11 : i64} {
  func.func @_pugcn_kernel(%arg0: i32, %arg1: memref<16x3xf32, #tpu.memory_space<vmem>>, %arg2: memref<1x32xf32, #tpu.memory_space<vmem>>, %arg3: memref<32x32xf32, #tpu.memory_space<vmem>>, %arg4: memref<32x32xf32, #tpu.memory_space<vmem>>, %arg5: memref<1x32xf32, #tpu.memory_space<vmem>>, %arg6: memref<32x32xf32, #tpu.memory_space<vmem>>, %arg7: memref<32x32xf32, #tpu.memory_space<vmem>>, %arg8: memref<1x32xf32, #tpu.memory_space<vmem>>, %arg9: memref<32x32xf32, #tpu.memory_space<vmem>>, %arg10: memref<32x32xf32, #tpu.memory_space<vmem>>, %arg11: memref<1x32xf32, #tpu.memory_space<vmem>>, %arg12: memref<32x32xf32, #tpu.memory_space<vmem>>, %arg13: memref<32x32xf32, #tpu.memory_space<vmem>>, %arg14: memref<1x32xf32, #tpu.memory_space<vmem>>, %arg15: memref<32x32xf32, #tpu.memory_space<vmem>>, %arg16: memref<32x32xf32, #tpu.memory_space<vmem>>, %arg17: memref<1x32xf32, #tpu.memory_space<vmem>>, %arg18: memref<32x32xf32, #tpu.memory_space<vmem>>, %arg19: memref<32x32xf32, #tpu.memory_space<vmem>>, %arg20: memref<1x32xf32, #tpu.memory_space<vmem>>, %arg21: memref<3x32xf32, #tpu.memory_space<vmem>>, %arg22: memref<3x32xf32, #tpu.memory_space<vmem>>, %arg23: memref<1x32xf32, #tpu.memory_space<vmem>>, %arg24: memref<1x3xf32, #tpu.memory_space<vmem>>, %arg25: memref<32x32xf32, #tpu.memory_space<vmem>>, %arg26: memref<32x3xf32, #tpu.memory_space<vmem>>, %arg27: memref<2x16x3xf32, #tpu.memory_space<vmem>>, %arg28: memref<64x16xf32, #tpu.memory_space<vmem>>, %arg29: memref<64x16xf32, #tpu.memory_space<vmem>>) attributes {dimension_semantics = [#tpu.dimension_semantics<arbitrary>], iteration_bounds = array<i64: 1>, scalar_prefetch = 0 : i64, scratch_operands = 2 : i64, tpu.core_type = #tpu.core_type<tc>, window_params = [{pipeline_mode = #tpu.pipeline_mode<synchronous>, transform_indices = @transform_0, window_bounds = array<i64: 16, 3>}, {pipeline_mode = #tpu.pipeline_mode<synchronous>, transform_indices = @transform_1, window_bounds = array<i64: 1, 32>}, {pipeline_mode = #tpu.pipeline_mode<synchronous>, transform_indices = @transform_2, window_bounds = array<i64: 32, 32>}, {pipeline_mode = #tpu.pipeline_mode<synchronous>, transform_indices = @transform_3, window_bounds = array<i64: 32, 32>}, {pipeline_mode = #tpu.pipeline_mode<synchronous>, transform_indices = @transform_4, window_bounds = array<i64: 1, 32>}, {pipeline_mode = #tpu.pipeline_mode<synchronous>, transform_indices = @transform_5, window_bounds = array<i64: 32, 32>}, {pipeline_mode = #tpu.pipeline_mode<synchronous>, transform_indices = @transform_6, window_bounds = array<i64: 32, 32>}, {pipeline_mode = #tpu.pipeline_mode<synchronous>, transform_indices = @transform_7, window_bounds = array<i64: 1, 32>}, {pipeline_mode = #tpu.pipeline_mode<synchronous>, transform_indices = @transform_8, window_bounds = array<i64: 32, 32>}, {pipeline_mode = #tpu.pipeline_mode<synchronous>, transform_indices = @transform_9, window_bounds = array<i64: 32, 32>}, {pipeline_mode = #tpu.pipeline_mode<synchronous>, transform_indices = @transform_10, window_bounds = array<i64: 1, 32>}, {pipeline_mode = #tpu.pipeline_mode<synchronous>, transform_indices = @transform_11, window_bounds = array<i64: 32, 32>}, {pipeline_mode = #tpu.pipeline_mode<synchronous>, transform_indices = @transform_12, window_bounds = array<i64: 32, 32>}, {pipeline_mode = #tpu.pipeline_mode<synchronous>, transform_indices = @transform_13, window_bounds = array<i64: 1, 32>}, {pipeline_mode = #tpu.pipeline_mode<synchronous>, transform_indices = @transform_14, window_bounds = array<i64: 32, 32>}, {pipeline_mode = #tpu.pipeline_mode<synchronous>, transform_indices = @transform_15, window_bounds = array<i64: 32, 32>}, {pipeline_mode = #tpu.pipeline_mode<synchronous>, transform_indices = @transform_16, window_bounds = array<i64: 1, 32>}, {pipeline_mode = #tpu.pipeline_mode<synchronous>, transform_indices = @transform_17, window_bounds = array<i64: 32, 32>}, {pipeline_mode = #tpu.pipeline_mode<synchronous>, transform_indices = @transform_18, window_bounds = array<i64: 32, 32>}, {pipeline_mode = #tpu.pipeline_mode<synchronous>, transform_indices = @transform_19, window_bounds = array<i64: 1, 32>}, {pipeline_mode = #tpu.pipeline_mode<synchronous>, transform_indices = @transform_20, window_bounds = array<i64: 3, 32>}, {pipeline_mode = #tpu.pipeline_mode<synchronous>, transform_indices = @transform_21, window_bounds = array<i64: 3, 32>}, {pipeline_mode = #tpu.pipeline_mode<synchronous>, transform_indices = @transform_22, window_bounds = array<i64: 1, 32>}, {pipeline_mode = #tpu.pipeline_mode<synchronous>, transform_indices = @transform_23, window_bounds = array<i64: 1, 3>}, {pipeline_mode = #tpu.pipeline_mode<synchronous>, transform_indices = @transform_24, window_bounds = array<i64: 32, 32>}, {pipeline_mode = #tpu.pipeline_mode<synchronous>, transform_indices = @transform_25, window_bounds = array<i64: 32, 3>}, {pipeline_mode = #tpu.pipeline_mode<synchronous>, transform_indices = @transform_26, window_bounds = array<i64: 2, 16, 3>}]} {
    %c0 = arith.constant 0 : index
    %c0_0 = arith.constant 0 : index
    %0 = vector.load %arg1[%c0, %c0_0] : memref<16x3xf32, #tpu.memory_space<vmem>>, vector<16x3xf32>
    %cst = arith.constant dense<0.000000e+00> : vector<16x16xf32>
    %1 = tpu.matmul %0, %0, %cst {dimension_numbers = #tpu.dot_dimension_numbers<[1], [1], [0], [0], [0, 0, 1, 0], [], []>} : vector<16x3xf32>, vector<16x3xf32>, vector<16x16xf32> -> vector<16x16xf32>
    %2 = arith.mulf %0, %0 : vector<16x3xf32>
    %cst_1 = arith.constant dense<0.000000e+00> : vector<16xf32>
    %3 = vector.multi_reduction <add>, %2, %cst_1 [1] : vector<16x3xf32> to vector<16xf32>
    %4 = vector.shape_cast %3 : vector<16xf32> to vector<16x1xf32>
    %cst_2 = arith.constant 1.000000e+00 : f32
    %5 = vector.broadcast %cst_2 : f32 to vector<16x1xf32>
    %cst_3 = arith.constant dense<0.000000e+00> : vector<16x16xf32>
    %6 = tpu.matmul %5, %4, %cst_3 {dimension_numbers = #tpu.dot_dimension_numbers<[1], [1], [0], [0], [0, 0, 1, 0], [], []>} : vector<16x1xf32>, vector<16x1xf32>, vector<16x16xf32> -> vector<16x16xf32>
    %7 = vector.broadcast %4 : vector<16x1xf32> to vector<16x16xf32>
    %8 = arith.addf %7, %6 : vector<16x16xf32>
    %cst_4 = arith.constant 2.000000e+00 : f32
    %9 = vector.broadcast %cst_4 : f32 to vector<16x16xf32>
    %10 = arith.mulf %9, %1 : vector<16x16xf32>
    %11 = arith.subf %8, %10 : vector<16x16xf32>
    %12 = tpu.iota {dimensions = array<i32: 1>} : vector<16x16xi32>
    %13 = tpu.iota {dimensions = array<i32: 0>} : vector<16x16xi32>
    %14 = arith.sitofp %12 : vector<16x16xi32> to vector<16x16xf32>
    %15 = arith.cmpi eq, %13, %12 : vector<16x16xi32>
    %cst_5 = arith.constant 1.000000e+30 : f32
    %16 = vector.broadcast %cst_5 : f32 to vector<16x16xf32>
    %17 = arith.select %15, %16, %11 : vector<16x16xi1>, vector<16x16xf32>
    %cst_6 = arith.constant dense<0x7F800000> : vector<16xf32>
    %18 = vector.multi_reduction <minimumf>, %17, %cst_6 [1] : vector<16x16xf32> to vector<16xf32>
    %19 = vector.shape_cast %18 : vector<16xf32> to vector<16x1xf32>
    %20 = vector.broadcast %19 : vector<16x1xf32> to vector<16x16xf32>
    %21 = arith.cmpf ole, %17, %20 : vector<16x16xf32>
    %cst_7 = arith.constant 1.600000e+01 : f32
    %22 = vector.broadcast %cst_7 : f32 to vector<16x16xf32>
    %23 = arith.select %21, %14, %22 : vector<16x16xi1>, vector<16x16xf32>
    %cst_8 = arith.constant dense<0x7F800000> : vector<16xf32>
    %24 = vector.multi_reduction <minimumf>, %23, %cst_8 [1] : vector<16x16xf32> to vector<16xf32>
    %25 = vector.shape_cast %24 : vector<16xf32> to vector<16x1xf32>
    %26 = vector.broadcast %25 : vector<16x1xf32> to vector<16x16xf32>
    %27 = arith.cmpf oeq, %14, %26 : vector<16x16xf32>
    %cst_9 = arith.constant 1.000000e+30 : f32
    %28 = vector.broadcast %cst_9 : f32 to vector<16x16xf32>
    %29 = arith.select %27, %28, %17 : vector<16x16xi1>, vector<16x16xf32>
    %30 = arith.extui %27 : vector<16x16xi1> to vector<16x16xi32>
    %31 = arith.sitofp %30 : vector<16x16xi32> to vector<16x16xf32>
    %c0_10 = arith.constant 0 : index
    %c0_11 = arith.constant 0 : index
    %32 = vector.load %arg28[%c0_10, %c0_11] : memref<64x16xf32, #tpu.memory_space<vmem>>, vector<16x16xf32>
    tpu.vector_store %arg28[%c0_10, %c0_11], %31 {strides = array<i32>} : memref<64x16xf32, #tpu.memory_space<vmem>>, vector<16x16xf32>,
    %c0_12 = arith.constant 0 : index
    %c0_13 = arith.constant 0 : index
    %33 = vector.load %arg29[%c0_12, %c0_13] : memref<64x16xf32, #tpu.memory_space<vmem>>, vector<16x16xf32>
    tpu.vector_store %arg29[%c0_12, %c0_13], %31 {strides = array<i32>} : memref<64x16xf32, #tpu.memory_space<vmem>>, vector<16x16xf32>,
    %cst_14 = arith.constant dense<0x7F800000> : vector<16xf32>
    %34 = vector.multi_reduction <minimumf>, %29, %cst_14 [1] : vector<16x16xf32> to vector<16xf32>
    %35 = vector.shape_cast %34 : vector<16xf32> to vector<16x1xf32>
    %36 = vector.broadcast %35 : vector<16x1xf32> to vector<16x16xf32>
    %37 = arith.cmpf ole, %29, %36 : vector<16x16xf32>
    %cst_15 = arith.constant 1.600000e+01 : f32
    %38 = vector.broadcast %cst_15 : f32 to vector<16x16xf32>
    %39 = arith.select %37, %14, %38 : vector<16x16xi1>, vector<16x16xf32>
    %cst_16 = arith.constant dense<0x7F800000> : vector<16xf32>
    %40 = vector.multi_reduction <minimumf>, %39, %cst_16 [1] : vector<16x16xf32> to vector<16xf32>
    %41 = vector.shape_cast %40 : vector<16xf32> to vector<16x1xf32>
    %42 = vector.broadcast %41 : vector<16x1xf32> to vector<16x16xf32>
    %43 = arith.cmpf oeq, %14, %42 : vector<16x16xf32>
    %cst_17 = arith.constant 1.000000e+30 : f32
    %44 = vector.broadcast %cst_17 : f32 to vector<16x16xf32>
    %45 = arith.select %43, %44, %29 : vector<16x16xi1>, vector<16x16xf32>
    %46 = arith.extui %43 : vector<16x16xi1> to vector<16x16xi32>
    %47 = arith.sitofp %46 : vector<16x16xi32> to vector<16x16xf32>
    %c16 = arith.constant 16 : index
    %c0_18 = arith.constant 0 : index
    %48 = vector.load %arg28[%c16, %c0_18] : memref<64x16xf32, #tpu.memory_space<vmem>>, vector<16x16xf32>
    tpu.vector_store %arg28[%c16, %c0_18], %47 {strides = array<i32>} : memref<64x16xf32, #tpu.memory_space<vmem>>, vector<16x16xf32>,
    %cst_19 = arith.constant dense<0x7F800000> : vector<16xf32>
    %49 = vector.multi_reduction <minimumf>, %45, %cst_19 [1] : vector<16x16xf32> to vector<16xf32>
    %50 = vector.shape_cast %49 : vector<16xf32> to vector<16x1xf32>
    %51 = vector.broadcast %50 : vector<16x1xf32> to vector<16x16xf32>
    %52 = arith.cmpf ole, %45, %51 : vector<16x16xf32>
    %cst_20 = arith.constant 1.600000e+01 : f32
    %53 = vector.broadcast %cst_20 : f32 to vector<16x16xf32>
    %54 = arith.select %52, %14, %53 : vector<16x16xi1>, vector<16x16xf32>
    %cst_21 = arith.constant dense<0x7F800000> : vector<16xf32>
    %55 = vector.multi_reduction <minimumf>, %54, %cst_21 [1] : vector<16x16xf32> to vector<16xf32>
    %56 = vector.shape_cast %55 : vector<16xf32> to vector<16x1xf32>
    %57 = vector.broadcast %56 : vector<16x1xf32> to vector<16x16xf32>
    %58 = arith.cmpf oeq, %14, %57 : vector<16x16xf32>
    %cst_22 = arith.constant 1.000000e+30 : f32
    %59 = vector.broadcast %cst_22 : f32 to vector<16x16xf32>
    %60 = arith.select %58, %59, %45 : vector<16x16xi1>, vector<16x16xf32>
    %61 = arith.extui %58 : vector<16x16xi1> to vector<16x16xi32>
    %62 = arith.sitofp %61 : vector<16x16xi32> to vector<16x16xf32>
    %c32 = arith.constant 32 : index
    %c0_23 = arith.constant 0 : index
    %63 = vector.load %arg28[%c32, %c0_23] : memref<64x16xf32, #tpu.memory_space<vmem>>, vector<16x16xf32>
    tpu.vector_store %arg28[%c32, %c0_23], %62 {strides = array<i32>} : memref<64x16xf32, #tpu.memory_space<vmem>>, vector<16x16xf32>,
    %c16_24 = arith.constant 16 : index
    %c0_25 = arith.constant 0 : index
    %64 = vector.load %arg29[%c16_24, %c0_25] : memref<64x16xf32, #tpu.memory_space<vmem>>, vector<16x16xf32>
    tpu.vector_store %arg29[%c16_24, %c0_25], %62 {strides = array<i32>} : memref<64x16xf32, #tpu.memory_space<vmem>>, vector<16x16xf32>,
    %cst_26 = arith.constant dense<0x7F800000> : vector<16xf32>
    %65 = vector.multi_reduction <minimumf>, %60, %cst_26 [1] : vector<16x16xf32> to vector<16xf32>
    %66 = vector.shape_cast %65 : vector<16xf32> to vector<16x1xf32>
    %67 = vector.broadcast %66 : vector<16x1xf32> to vector<16x16xf32>
    %68 = arith.cmpf ole, %60, %67 : vector<16x16xf32>
    %cst_27 = arith.constant 1.600000e+01 : f32
    %69 = vector.broadcast %cst_27 : f32 to vector<16x16xf32>
    %70 = arith.select %68, %14, %69 : vector<16x16xi1>, vector<16x16xf32>
    %cst_28 = arith.constant dense<0x7F800000> : vector<16xf32>
    %71 = vector.multi_reduction <minimumf>, %70, %cst_28 [1] : vector<16x16xf32> to vector<16xf32>
    %72 = vector.shape_cast %71 : vector<16xf32> to vector<16x1xf32>
    %73 = vector.broadcast %72 : vector<16x1xf32> to vector<16x16xf32>
    %74 = arith.cmpf oeq, %14, %73 : vector<16x16xf32>
    %cst_29 = arith.constant 1.000000e+30 : f32
    %75 = vector.broadcast %cst_29 : f32 to vector<16x16xf32>
    %76 = arith.select %74, %75, %60 : vector<16x16xi1>, vector<16x16xf32>
    %77 = arith.extui %74 : vector<16x16xi1> to vector<16x16xi32>
    %78 = arith.sitofp %77 : vector<16x16xi32> to vector<16x16xf32>
    %c48 = arith.constant 48 : index
    %c0_30 = arith.constant 0 : index
    %79 = vector.load %arg28[%c48, %c0_30] : memref<64x16xf32, #tpu.memory_space<vmem>>, vector<16x16xf32>
    tpu.vector_store %arg28[%c48, %c0_30], %78 {strides = array<i32>} : memref<64x16xf32, #tpu.memory_space<vmem>>, vector<16x16xf32>,
    %cst_31 = arith.constant dense<0x7F800000> : vector<16xf32>
    %80 = vector.multi_reduction <minimumf>, %76, %cst_31 [1] : vector<16x16xf32> to vector<16xf32>
    %81 = vector.shape_cast %80 : vector<16xf32> to vector<16x1xf32>
    %82 = vector.broadcast %81 : vector<16x1xf32> to vector<16x16xf32>
    %83 = arith.cmpf ole, %76, %82 : vector<16x16xf32>
    %cst_32 = arith.constant 1.600000e+01 : f32
    %84 = vector.broadcast %cst_32 : f32 to vector<16x16xf32>
    %85 = arith.select %83, %14, %84 : vector<16x16xi1>, vector<16x16xf32>
    %cst_33 = arith.constant dense<0x7F800000> : vector<16xf32>
    %86 = vector.multi_reduction <minimumf>, %85, %cst_33 [1] : vector<16x16xf32> to vector<16xf32>
    %87 = vector.shape_cast %86 : vector<16xf32> to vector<16x1xf32>
    %88 = vector.broadcast %87 : vector<16x1xf32> to vector<16x16xf32>
    %89 = arith.cmpf oeq, %14, %88 : vector<16x16xf32>
    %cst_34 = arith.constant 1.000000e+30 : f32
    %90 = vector.broadcast %cst_34 : f32 to vector<16x16xf32>
    %91 = arith.select %89, %90, %76 : vector<16x16xi1>, vector<16x16xf32>
    %92 = arith.extui %89 : vector<16x16xi1> to vector<16x16xi32>
    %93 = arith.sitofp %92 : vector<16x16xi32> to vector<16x16xf32>
    %c32_35 = arith.constant 32 : index
    %c0_36 = arith.constant 0 : index
    %94 = vector.load %arg29[%c32_35, %c0_36] : memref<64x16xf32, #tpu.memory_space<vmem>>, vector<16x16xf32>
    tpu.vector_store %arg29[%c32_35, %c0_36], %93 {strides = array<i32>} : memref<64x16xf32, #tpu.memory_space<vmem>>, vector<16x16xf32>,
    %cst_37 = arith.constant dense<0x7F800000> : vector<16xf32>
    %95 = vector.multi_reduction <minimumf>, %91, %cst_37 [1] : vector<16x16xf32> to vector<16xf32>
    %96 = vector.shape_cast %95 : vector<16xf32> to vector<16x1xf32>
    %97 = vector.broadcast %96 : vector<16x1xf32> to vector<16x16xf32>
    %98 = arith.cmpf ole, %91, %97 : vector<16x16xf32>
    %cst_38 = arith.constant 1.600000e+01 : f32
    %99 = vector.broadcast %cst_38 : f32 to vector<16x16xf32>
    %100 = arith.select %98, %14, %99 : vector<16x16xi1>, vector<16x16xf32>
    %cst_39 = arith.constant dense<0x7F800000> : vector<16xf32>
    %101 = vector.multi_reduction <minimumf>, %100, %cst_39 [1] : vector<16x16xf32> to vector<16xf32>
    %102 = vector.shape_cast %101 : vector<16xf32> to vector<16x1xf32>
    %103 = vector.broadcast %102 : vector<16x1xf32> to vector<16x16xf32>
    %104 = arith.cmpf oeq, %14, %103 : vector<16x16xf32>
    %cst_40 = arith.constant 1.000000e+30 : f32
    %105 = vector.broadcast %cst_40 : f32 to vector<16x16xf32>
    %106 = arith.select %104, %105, %91 : vector<16x16xi1>, vector<16x16xf32>
    %cst_41 = arith.constant dense<0x7F800000> : vector<16xf32>
    %107 = vector.multi_reduction <minimumf>, %106, %cst_41 [1] : vector<16x16xf32> to vector<16xf32>
    %108 = vector.shape_cast %107 : vector<16xf32> to vector<16x1xf32>
    %109 = vector.broadcast %108 : vector<16x1xf32> to vector<16x16xf32>
    %110 = arith.cmpf ole, %106, %109 : vector<16x16xf32>
    %cst_42 = arith.constant 1.600000e+01 : f32
    %111 = vector.broadcast %cst_42 : f32 to vector<16x16xf32>
    %112 = arith.select %110, %14, %111 : vector<16x16xi1>, vector<16x16xf32>
    %cst_43 = arith.constant dense<0x7F800000> : vector<16xf32>
    %113 = vector.multi_reduction <minimumf>, %112, %cst_43 [1] : vector<16x16xf32> to vector<16xf32>
    %114 = vector.shape_cast %113 : vector<16xf32> to vector<16x1xf32>
    %115 = vector.broadcast %114 : vector<16x1xf32> to vector<16x16xf32>
    %116 = arith.cmpf oeq, %14, %115 : vector<16x16xf32>
    %117 = arith.extui %116 : vector<16x16xi1> to vector<16x16xi32>
    %118 = arith.sitofp %117 : vector<16x16xi32> to vector<16x16xf32>
    %c48_44 = arith.constant 48 : index
    %c0_45 = arith.constant 0 : index
    %119 = vector.load %arg29[%c48_44, %c0_45] : memref<64x16xf32, #tpu.memory_space<vmem>>, vector<16x16xf32>
    tpu.vector_store %arg29[%c48_44, %c0_45], %118 {strides = array<i32>} : memref<64x16xf32, #tpu.memory_space<vmem>>, vector<16x16xf32>,
    %c0_46 = arith.constant 0 : index
    %c0_47 = arith.constant 0 : index
    %120 = vector.load %arg28[%c0_46, %c0_47] : memref<64x16xf32, #tpu.memory_space<vmem>>, vector<64x16xf32>
    %c0_48 = arith.constant 0 : index
    %c0_49 = arith.constant 0 : index
    %121 = vector.load %arg29[%c0_48, %c0_49] : memref<64x16xf32, #tpu.memory_space<vmem>>, vector<64x16xf32>
    %c0_50 = arith.constant 0 : index
    %c0_51 = arith.constant 0 : index
    %122 = vector.load %arg21[%c0_50, %c0_51] : memref<3x32xf32, #tpu.memory_space<vmem>>, vector<3x32xf32>
    %c0_52 = arith.constant 0 : index
    %c0_53 = arith.constant 0 : index
    %123 = vector.load %arg22[%c0_52, %c0_53] : memref<3x32xf32, #tpu.memory_space<vmem>>, vector<3x32xf32>
    %c0_54 = arith.constant 0 : index
    %c0_55 = arith.constant 0 : index
    %124 = vector.load %arg20[%c0_54, %c0_55] : memref<1x32xf32, #tpu.memory_space<vmem>>, vector<1x32xf32>
    %125 = arith.subf %122, %123 : vector<3x32xf32>
    %126 = arith.truncf %0 : vector<16x3xf32> to vector<16x3xbf16>
    %127 = arith.truncf %125 : vector<3x32xf32> to vector<3x32xbf16>
    %cst_56 = arith.constant dense<0.000000e+00> : vector<16x32xf32>
    %128 = tpu.matmul %126, %127, %cst_56 {dimension_numbers = #tpu.dot_dimension_numbers<[1], [0], [0], [1], [0, 0, 1, 1], [], []>} : vector<16x3xbf16>, vector<3x32xbf16>, vector<16x32xf32> -> vector<16x32xf32>
    %129 = vector.broadcast %124 : vector<1x32xf32> to vector<16x32xf32>
    %130 = arith.addf %128, %129 : vector<16x32xf32>
    %131 = arith.truncf %0 : vector<16x3xf32> to vector<16x3xbf16>
    %132 = arith.truncf %123 : vector<3x32xf32> to vector<3x32xbf16>
    %cst_57 = arith.constant dense<0.000000e+00> : vector<16x32xf32>
    %133 = tpu.matmul %131, %132, %cst_57 {dimension_numbers = #tpu.dot_dimension_numbers<[1], [0], [0], [1], [0, 0, 1, 1], [], []>} : vector<16x3xbf16>, vector<3x32xbf16>, vector<16x32xf32> -> vector<16x32xf32>
    %cst_58 = arith.constant dense<0.000000e+00> : vector<64x32xf32>
    %134 = tpu.matmul %120, %133, %cst_58 {dimension_numbers = #tpu.dot_dimension_numbers<[1], [0], [0], [1], [0, 0, 1, 1], [], []>} : vector<64x16xf32>, vector<16x32xf32>, vector<64x32xf32> -> vector<64x32xf32>
    %135 = vector.extract_strided_slice %134 {offsets = [0, 0], sizes = [16, 32], strides = [1, 1]} : vector<64x32xf32> to vector<16x32xf32>
    %136 = arith.addf %130, %135 : vector<16x32xf32>
    %cst_59 = arith.constant 0.000000e+00 : f32
    %137 = vector.broadcast %cst_59 : f32 to vector<16x32xf32>
    %138 = arith.cmpf ogt, %136, %137 : vector<16x32xf32>
    %cst_60 = arith.constant 2.000000e-01 : f32
    %139 = vector.broadcast %cst_60 : f32 to vector<16x32xf32>
    %140 = arith.mulf %139, %136 : vector<16x32xf32>
    %141 = arith.select %138, %136, %140 : vector<16x32xi1>, vector<16x32xf32>
    %142 = vector.extract_strided_slice %134 {offsets = [16, 0], sizes = [16, 32], strides = [1, 1]} : vector<64x32xf32> to vector<16x32xf32>
    %143 = arith.addf %130, %142 : vector<16x32xf32>
    %cst_61 = arith.constant 0.000000e+00 : f32
    %144 = vector.broadcast %cst_61 : f32 to vector<16x32xf32>
    %145 = arith.cmpf ogt, %143, %144 : vector<16x32xf32>
    %cst_62 = arith.constant 2.000000e-01 : f32
    %146 = vector.broadcast %cst_62 : f32 to vector<16x32xf32>
    %147 = arith.mulf %146, %143 : vector<16x32xf32>
    %148 = arith.select %145, %143, %147 : vector<16x32xi1>, vector<16x32xf32>
    %149 = arith.maximumf %141, %148 : vector<16x32xf32>
    %150 = vector.extract_strided_slice %134 {offsets = [32, 0], sizes = [16, 32], strides = [1, 1]} : vector<64x32xf32> to vector<16x32xf32>
    %151 = arith.addf %130, %150 : vector<16x32xf32>
    %cst_63 = arith.constant 0.000000e+00 : f32
    %152 = vector.broadcast %cst_63 : f32 to vector<16x32xf32>
    %153 = arith.cmpf ogt, %151, %152 : vector<16x32xf32>
    %cst_64 = arith.constant 2.000000e-01 : f32
    %154 = vector.broadcast %cst_64 : f32 to vector<16x32xf32>
    %155 = arith.mulf %154, %151 : vector<16x32xf32>
    %156 = arith.select %153, %151, %155 : vector<16x32xi1>, vector<16x32xf32>
    %157 = arith.maximumf %149, %156 : vector<16x32xf32>
    %158 = vector.extract_strided_slice %134 {offsets = [48, 0], sizes = [16, 32], strides = [1, 1]} : vector<64x32xf32> to vector<16x32xf32>
    %159 = arith.addf %130, %158 : vector<16x32xf32>
    %cst_65 = arith.constant 0.000000e+00 : f32
    %160 = vector.broadcast %cst_65 : f32 to vector<16x32xf32>
    %161 = arith.cmpf ogt, %159, %160 : vector<16x32xf32>
    %cst_66 = arith.constant 2.000000e-01 : f32
    %162 = vector.broadcast %cst_66 : f32 to vector<16x32xf32>
    %163 = arith.mulf %162, %159 : vector<16x32xf32>
    %164 = arith.select %161, %159, %163 : vector<16x32xi1>, vector<16x32xf32>
    %165 = arith.maximumf %157, %164 : vector<16x32xf32>
    %c0_67 = arith.constant 0 : index
    %c0_68 = arith.constant 0 : index
    %166 = vector.load %arg3[%c0_67, %c0_68] : memref<32x32xf32, #tpu.memory_space<vmem>>, vector<32x32xf32>
    %c0_69 = arith.constant 0 : index
    %c0_70 = arith.constant 0 : index
    %167 = vector.load %arg4[%c0_69, %c0_70] : memref<32x32xf32, #tpu.memory_space<vmem>>, vector<32x32xf32>
    %c0_71 = arith.constant 0 : index
    %c0_72 = arith.constant 0 : index
    %168 = vector.load %arg2[%c0_71, %c0_72] : memref<1x32xf32, #tpu.memory_space<vmem>>, vector<1x32xf32>
    %169 = arith.subf %166, %167 : vector<32x32xf32>
    %170 = arith.truncf %165 : vector<16x32xf32> to vector<16x32xbf16>
    %171 = arith.truncf %169 : vector<32x32xf32> to vector<32x32xbf16>
    %cst_73 = arith.constant dense<0.000000e+00> : vector<16x32xf32>
    %172 = tpu.matmul %170, %171, %cst_73 {dimension_numbers = #tpu.dot_dimension_numbers<[1], [0], [0], [1], [0, 0, 1, 1], [], []>} : vector<16x32xbf16>, vector<32x32xbf16>, vector<16x32xf32> -> vector<16x32xf32>
    %173 = vector.broadcast %168 : vector<1x32xf32> to vector<16x32xf32>
    %174 = arith.addf %172, %173 : vector<16x32xf32>
    %175 = arith.truncf %165 : vector<16x32xf32> to vector<16x32xbf16>
    %176 = arith.truncf %167 : vector<32x32xf32> to vector<32x32xbf16>
    %cst_74 = arith.constant dense<0.000000e+00> : vector<16x32xf32>
    %177 = tpu.matmul %175, %176, %cst_74 {dimension_numbers = #tpu.dot_dimension_numbers<[1], [0], [0], [1], [0, 0, 1, 1], [], []>} : vector<16x32xbf16>, vector<32x32xbf16>, vector<16x32xf32> -> vector<16x32xf32>
    %cst_75 = arith.constant dense<0.000000e+00> : vector<64x32xf32>
    %178 = tpu.matmul %120, %177, %cst_75 {dimension_numbers = #tpu.dot_dimension_numbers<[1], [0], [0], [1], [0, 0, 1, 1], [], []>} : vector<64x16xf32>, vector<16x32xf32>, vector<64x32xf32> -> vector<64x32xf32>
    %179 = vector.extract_strided_slice %178 {offsets = [0, 0], sizes = [16, 32], strides = [1, 1]} : vector<64x32xf32> to vector<16x32xf32>
    %180 = arith.addf %174, %179 : vector<16x32xf32>
    %cst_76 = arith.constant 0.000000e+00 : f32
    %181 = vector.broadcast %cst_76 : f32 to vector<16x32xf32>
    %182 = arith.cmpf ogt, %180, %181 : vector<16x32xf32>
    %cst_77 = arith.constant 2.000000e-01 : f32
    %183 = vector.broadcast %cst_77 : f32 to vector<16x32xf32>
    %184 = arith.mulf %183, %180 : vector<16x32xf32>
    %185 = arith.select %182, %180, %184 : vector<16x32xi1>, vector<16x32xf32>
    %186 = vector.extract_strided_slice %178 {offsets = [16, 0], sizes = [16, 32], strides = [1, 1]} : vector<64x32xf32> to vector<16x32xf32>
    %187 = arith.addf %174, %186 : vector<16x32xf32>
    %cst_78 = arith.constant 0.000000e+00 : f32
    %188 = vector.broadcast %cst_78 : f32 to vector<16x32xf32>
    %189 = arith.cmpf ogt, %187, %188 : vector<16x32xf32>
    %cst_79 = arith.constant 2.000000e-01 : f32
    %190 = vector.broadcast %cst_79 : f32 to vector<16x32xf32>
    %191 = arith.mulf %190, %187 : vector<16x32xf32>
    %192 = arith.select %189, %187, %191 : vector<16x32xi1>, vector<16x32xf32>
    %193 = arith.maximumf %185, %192 : vector<16x32xf32>
    %194 = vector.extract_strided_slice %178 {offsets = [32, 0], sizes = [16, 32], strides = [1, 1]} : vector<64x32xf32> to vector<16x32xf32>
    %195 = arith.addf %174, %194 : vector<16x32xf32>
    %cst_80 = arith.constant 0.000000e+00 : f32
    %196 = vector.broadcast %cst_80 : f32 to vector<16x32xf32>
    %197 = arith.cmpf ogt, %195, %196 : vector<16x32xf32>
    %cst_81 = arith.constant 2.000000e-01 : f32
    %198 = vector.broadcast %cst_81 : f32 to vector<16x32xf32>
    %199 = arith.mulf %198, %195 : vector<16x32xf32>
    %200 = arith.select %197, %195, %199 : vector<16x32xi1>, vector<16x32xf32>
    %201 = arith.maximumf %193, %200 : vector<16x32xf32>
    %202 = vector.extract_strided_slice %178 {offsets = [48, 0], sizes = [16, 32], strides = [1, 1]} : vector<64x32xf32> to vector<16x32xf32>
    %203 = arith.addf %174, %202 : vector<16x32xf32>
    %cst_82 = arith.constant 0.000000e+00 : f32
    %204 = vector.broadcast %cst_82 : f32 to vector<16x32xf32>
    %205 = arith.cmpf ogt, %203, %204 : vector<16x32xf32>
    %cst_83 = arith.constant 2.000000e-01 : f32
    %206 = vector.broadcast %cst_83 : f32 to vector<16x32xf32>
    %207 = arith.mulf %206, %203 : vector<16x32xf32>
    %208 = arith.select %205, %203, %207 : vector<16x32xi1>, vector<16x32xf32>
    %209 = arith.maximumf %201, %208 : vector<16x32xf32>
    %210 = arith.addf %165, %209 : vector<16x32xf32>
    %c0_84 = arith.constant 0 : index
    %c0_85 = arith.constant 0 : index
    %211 = vector.load %arg6[%c0_84, %c0_85] : memref<32x32xf32, #tpu.memory_space<vmem>>, vector<32x32xf32>
    %c0_86 = arith.constant 0 : index
    %c0_87 = arith.constant 0 : index
    %212 = vector.load %arg7[%c0_86, %c0_87] : memref<32x32xf32, #tpu.memory_space<vmem>>, vector<32x32xf32>
    %c0_88 = arith.constant 0 : index
    %c0_89 = arith.constant 0 : index
    %213 = vector.load %arg5[%c0_88, %c0_89] : memref<1x32xf32, #tpu.memory_space<vmem>>, vector<1x32xf32>
    %214 = arith.subf %211, %212 : vector<32x32xf32>
    %215 = arith.truncf %210 : vector<16x32xf32> to vector<16x32xbf16>
    %216 = arith.truncf %214 : vector<32x32xf32> to vector<32x32xbf16>
    %cst_90 = arith.constant dense<0.000000e+00> : vector<16x32xf32>
    %217 = tpu.matmul %215, %216, %cst_90 {dimension_numbers = #tpu.dot_dimension_numbers<[1], [0], [0], [1], [0, 0, 1, 1], [], []>} : vector<16x32xbf16>, vector<32x32xbf16>, vector<16x32xf32> -> vector<16x32xf32>
    %218 = vector.broadcast %213 : vector<1x32xf32> to vector<16x32xf32>
    %219 = arith.addf %217, %218 : vector<16x32xf32>
    %220 = arith.truncf %210 : vector<16x32xf32> to vector<16x32xbf16>
    %221 = arith.truncf %212 : vector<32x32xf32> to vector<32x32xbf16>
    %cst_91 = arith.constant dense<0.000000e+00> : vector<16x32xf32>
    %222 = tpu.matmul %220, %221, %cst_91 {dimension_numbers = #tpu.dot_dimension_numbers<[1], [0], [0], [1], [0, 0, 1, 1], [], []>} : vector<16x32xbf16>, vector<32x32xbf16>, vector<16x32xf32> -> vector<16x32xf32>
    %cst_92 = arith.constant dense<0.000000e+00> : vector<64x32xf32>
    %223 = tpu.matmul %120, %222, %cst_92 {dimension_numbers = #tpu.dot_dimension_numbers<[1], [0], [0], [1], [0, 0, 1, 1], [], []>} : vector<64x16xf32>, vector<16x32xf32>, vector<64x32xf32> -> vector<64x32xf32>
    %224 = vector.extract_strided_slice %223 {offsets = [0, 0], sizes = [16, 32], strides = [1, 1]} : vector<64x32xf32> to vector<16x32xf32>
    %225 = arith.addf %219, %224 : vector<16x32xf32>
    %cst_93 = arith.constant 0.000000e+00 : f32
    %226 = vector.broadcast %cst_93 : f32 to vector<16x32xf32>
    %227 = arith.cmpf ogt, %225, %226 : vector<16x32xf32>
    %cst_94 = arith.constant 2.000000e-01 : f32
    %228 = vector.broadcast %cst_94 : f32 to vector<16x32xf32>
    %229 = arith.mulf %228, %225 : vector<16x32xf32>
    %230 = arith.select %227, %225, %229 : vector<16x32xi1>, vector<16x32xf32>
    %231 = vector.extract_strided_slice %223 {offsets = [16, 0], sizes = [16, 32], strides = [1, 1]} : vector<64x32xf32> to vector<16x32xf32>
    %232 = arith.addf %219, %231 : vector<16x32xf32>
    %cst_95 = arith.constant 0.000000e+00 : f32
    %233 = vector.broadcast %cst_95 : f32 to vector<16x32xf32>
    %234 = arith.cmpf ogt, %232, %233 : vector<16x32xf32>
    %cst_96 = arith.constant 2.000000e-01 : f32
    %235 = vector.broadcast %cst_96 : f32 to vector<16x32xf32>
    %236 = arith.mulf %235, %232 : vector<16x32xf32>
    %237 = arith.select %234, %232, %236 : vector<16x32xi1>, vector<16x32xf32>
    %238 = arith.maximumf %230, %237 : vector<16x32xf32>
    %239 = vector.extract_strided_slice %223 {offsets = [32, 0], sizes = [16, 32], strides = [1, 1]} : vector<64x32xf32> to vector<16x32xf32>
    %240 = arith.addf %219, %239 : vector<16x32xf32>
    %cst_97 = arith.constant 0.000000e+00 : f32
    %241 = vector.broadcast %cst_97 : f32 to vector<16x32xf32>
    %242 = arith.cmpf ogt, %240, %241 : vector<16x32xf32>
    %cst_98 = arith.constant 2.000000e-01 : f32
    %243 = vector.broadcast %cst_98 : f32 to vector<16x32xf32>
    %244 = arith.mulf %243, %240 : vector<16x32xf32>
    %245 = arith.select %242, %240, %244 : vector<16x32xi1>, vector<16x32xf32>
    %246 = arith.maximumf %238, %245 : vector<16x32xf32>
    %247 = vector.extract_strided_slice %223 {offsets = [48, 0], sizes = [16, 32], strides = [1, 1]} : vector<64x32xf32> to vector<16x32xf32>
    %248 = arith.addf %219, %247 : vector<16x32xf32>
    %cst_99 = arith.constant 0.000000e+00 : f32
    %249 = vector.broadcast %cst_99 : f32 to vector<16x32xf32>
    %250 = arith.cmpf ogt, %248, %249 : vector<16x32xf32>
    %cst_100 = arith.constant 2.000000e-01 : f32
    %251 = vector.broadcast %cst_100 : f32 to vector<16x32xf32>
    %252 = arith.mulf %251, %248 : vector<16x32xf32>
    %253 = arith.select %250, %248, %252 : vector<16x32xi1>, vector<16x32xf32>
    %254 = arith.maximumf %246, %253 : vector<16x32xf32>
    %255 = arith.addf %210, %254 : vector<16x32xf32>
    %c0_101 = arith.constant 0 : index
    %c0_102 = arith.constant 0 : index
    %256 = vector.load %arg9[%c0_101, %c0_102] : memref<32x32xf32, #tpu.memory_space<vmem>>, vector<32x32xf32>
    %c0_103 = arith.constant 0 : index
    %c0_104 = arith.constant 0 : index
    %257 = vector.load %arg10[%c0_103, %c0_104] : memref<32x32xf32, #tpu.memory_space<vmem>>, vector<32x32xf32>
    %c0_105 = arith.constant 0 : index
    %c0_106 = arith.constant 0 : index
    %258 = vector.load %arg8[%c0_105, %c0_106] : memref<1x32xf32, #tpu.memory_space<vmem>>, vector<1x32xf32>
    %259 = arith.subf %256, %257 : vector<32x32xf32>
    %260 = arith.truncf %165 : vector<16x32xf32> to vector<16x32xbf16>
    %261 = arith.truncf %259 : vector<32x32xf32> to vector<32x32xbf16>
    %cst_107 = arith.constant dense<0.000000e+00> : vector<16x32xf32>
    %262 = tpu.matmul %260, %261, %cst_107 {dimension_numbers = #tpu.dot_dimension_numbers<[1], [0], [0], [1], [0, 0, 1, 1], [], []>} : vector<16x32xbf16>, vector<32x32xbf16>, vector<16x32xf32> -> vector<16x32xf32>
    %263 = vector.broadcast %258 : vector<1x32xf32> to vector<16x32xf32>
    %264 = arith.addf %262, %263 : vector<16x32xf32>
    %265 = arith.truncf %165 : vector<16x32xf32> to vector<16x32xbf16>
    %266 = arith.truncf %257 : vector<32x32xf32> to vector<32x32xbf16>
    %cst_108 = arith.constant dense<0.000000e+00> : vector<16x32xf32>
    %267 = tpu.matmul %265, %266, %cst_108 {dimension_numbers = #tpu.dot_dimension_numbers<[1], [0], [0], [1], [0, 0, 1, 1], [], []>} : vector<16x32xbf16>, vector<32x32xbf16>, vector<16x32xf32> -> vector<16x32xf32>
    %cst_109 = arith.constant dense<0.000000e+00> : vector<64x32xf32>
    %268 = tpu.matmul %121, %267, %cst_109 {dimension_numbers = #tpu.dot_dimension_numbers<[1], [0], [0], [1], [0, 0, 1, 1], [], []>} : vector<64x16xf32>, vector<16x32xf32>, vector<64x32xf32> -> vector<64x32xf32>
    %269 = vector.extract_strided_slice %268 {offsets = [0, 0], sizes = [16, 32], strides = [1, 1]} : vector<64x32xf32> to vector<16x32xf32>
    %270 = arith.addf %264, %269 : vector<16x32xf32>
    %cst_110 = arith.constant 0.000000e+00 : f32
    %271 = vector.broadcast %cst_110 : f32 to vector<16x32xf32>
    %272 = arith.cmpf ogt, %270, %271 : vector<16x32xf32>
    %cst_111 = arith.constant 2.000000e-01 : f32
    %273 = vector.broadcast %cst_111 : f32 to vector<16x32xf32>
    %274 = arith.mulf %273, %270 : vector<16x32xf32>
    %275 = arith.select %272, %270, %274 : vector<16x32xi1>, vector<16x32xf32>
    %276 = vector.extract_strided_slice %268 {offsets = [16, 0], sizes = [16, 32], strides = [1, 1]} : vector<64x32xf32> to vector<16x32xf32>
    %277 = arith.addf %264, %276 : vector<16x32xf32>
    %cst_112 = arith.constant 0.000000e+00 : f32
    %278 = vector.broadcast %cst_112 : f32 to vector<16x32xf32>
    %279 = arith.cmpf ogt, %277, %278 : vector<16x32xf32>
    %cst_113 = arith.constant 2.000000e-01 : f32
    %280 = vector.broadcast %cst_113 : f32 to vector<16x32xf32>
    %281 = arith.mulf %280, %277 : vector<16x32xf32>
    %282 = arith.select %279, %277, %281 : vector<16x32xi1>, vector<16x32xf32>
    %283 = arith.maximumf %275, %282 : vector<16x32xf32>
    %284 = vector.extract_strided_slice %268 {offsets = [32, 0], sizes = [16, 32], strides = [1, 1]} : vector<64x32xf32> to vector<16x32xf32>
    %285 = arith.addf %264, %284 : vector<16x32xf32>
    %cst_114 = arith.constant 0.000000e+00 : f32
    %286 = vector.broadcast %cst_114 : f32 to vector<16x32xf32>
    %287 = arith.cmpf ogt, %285, %286 : vector<16x32xf32>
    %cst_115 = arith.constant 2.000000e-01 : f32
    %288 = vector.broadcast %cst_115 : f32 to vector<16x32xf32>
    %289 = arith.mulf %288, %285 : vector<16x32xf32>
    %290 = arith.select %287, %285, %289 : vector<16x32xi1>, vector<16x32xf32>
    %291 = arith.maximumf %283, %290 : vector<16x32xf32>
    %292 = vector.extract_strided_slice %268 {offsets = [48, 0], sizes = [16, 32], strides = [1, 1]} : vector<64x32xf32> to vector<16x32xf32>
    %293 = arith.addf %264, %292 : vector<16x32xf32>
    %cst_116 = arith.constant 0.000000e+00 : f32
    %294 = vector.broadcast %cst_116 : f32 to vector<16x32xf32>
    %295 = arith.cmpf ogt, %293, %294 : vector<16x32xf32>
    %cst_117 = arith.constant 2.000000e-01 : f32
    %296 = vector.broadcast %cst_117 : f32 to vector<16x32xf32>
    %297 = arith.mulf %296, %293 : vector<16x32xf32>
    %298 = arith.select %295, %293, %297 : vector<16x32xi1>, vector<16x32xf32>
    %299 = arith.maximumf %291, %298 : vector<16x32xf32>
    %300 = arith.addf %165, %299 : vector<16x32xf32>
    %c0_118 = arith.constant 0 : index
    %c0_119 = arith.constant 0 : index
    %301 = vector.load %arg12[%c0_118, %c0_119] : memref<32x32xf32, #tpu.memory_space<vmem>>, vector<32x32xf32>
    %c0_120 = arith.constant 0 : index
    %c0_121 = arith.constant 0 : index
    %302 = vector.load %arg13[%c0_120, %c0_121] : memref<32x32xf32, #tpu.memory_space<vmem>>, vector<32x32xf32>
    %c0_122 = arith.constant 0 : index
    %c0_123 = arith.constant 0 : index
    %303 = vector.load %arg11[%c0_122, %c0_123] : memref<1x32xf32, #tpu.memory_space<vmem>>, vector<1x32xf32>
    %304 = arith.subf %301, %302 : vector<32x32xf32>
    %305 = arith.truncf %300 : vector<16x32xf32> to vector<16x32xbf16>
    %306 = arith.truncf %304 : vector<32x32xf32> to vector<32x32xbf16>
    %cst_124 = arith.constant dense<0.000000e+00> : vector<16x32xf32>
    %307 = tpu.matmul %305, %306, %cst_124 {dimension_numbers = #tpu.dot_dimension_numbers<[1], [0], [0], [1], [0, 0, 1, 1], [], []>} : vector<16x32xbf16>, vector<32x32xbf16>, vector<16x32xf32> -> vector<16x32xf32>
    %308 = vector.broadcast %303 : vector<1x32xf32> to vector<16x32xf32>
    %309 = arith.addf %307, %308 : vector<16x32xf32>
    %310 = arith.truncf %300 : vector<16x32xf32> to vector<16x32xbf16>
    %311 = arith.truncf %302 : vector<32x32xf32> to vector<32x32xbf16>
    %cst_125 = arith.constant dense<0.000000e+00> : vector<16x32xf32>
    %312 = tpu.matmul %310, %311, %cst_125 {dimension_numbers = #tpu.dot_dimension_numbers<[1], [0], [0], [1], [0, 0, 1, 1], [], []>} : vector<16x32xbf16>, vector<32x32xbf16>, vector<16x32xf32> -> vector<16x32xf32>
    %cst_126 = arith.constant dense<0.000000e+00> : vector<64x32xf32>
    %313 = tpu.matmul %121, %312, %cst_126 {dimension_numbers = #tpu.dot_dimension_numbers<[1], [0], [0], [1], [0, 0, 1, 1], [], []>} : vector<64x16xf32>, vector<16x32xf32>, vector<64x32xf32> -> vector<64x32xf32>
    %314 = vector.extract_strided_slice %313 {offsets = [0, 0], sizes = [16, 32], strides = [1, 1]} : vector<64x32xf32> to vector<16x32xf32>
    %315 = arith.addf %309, %314 : vector<16x32xf32>
    %cst_127 = arith.constant 0.000000e+00 : f32
    %316 = vector.broadcast %cst_127 : f32 to vector<16x32xf32>
    %317 = arith.cmpf ogt, %315, %316 : vector<16x32xf32>
    %cst_128 = arith.constant 2.000000e-01 : f32
    %318 = vector.broadcast %cst_128 : f32 to vector<16x32xf32>
    %319 = arith.mulf %318, %315 : vector<16x32xf32>
    %320 = arith.select %317, %315, %319 : vector<16x32xi1>, vector<16x32xf32>
    %321 = vector.extract_strided_slice %313 {offsets = [16, 0], sizes = [16, 32], strides = [1, 1]} : vector<64x32xf32> to vector<16x32xf32>
    %322 = arith.addf %309, %321 : vector<16x32xf32>
    %cst_129 = arith.constant 0.000000e+00 : f32
    %323 = vector.broadcast %cst_129 : f32 to vector<16x32xf32>
    %324 = arith.cmpf ogt, %322, %323 : vector<16x32xf32>
    %cst_130 = arith.constant 2.000000e-01 : f32
    %325 = vector.broadcast %cst_130 : f32 to vector<16x32xf32>
    %326 = arith.mulf %325, %322 : vector<16x32xf32>
    %327 = arith.select %324, %322, %326 : vector<16x32xi1>, vector<16x32xf32>
    %328 = arith.maximumf %320, %327 : vector<16x32xf32>
    %329 = vector.extract_strided_slice %313 {offsets = [32, 0], sizes = [16, 32], strides = [1, 1]} : vector<64x32xf32> to vector<16x32xf32>
    %330 = arith.addf %309, %329 : vector<16x32xf32>
    %cst_131 = arith.constant 0.000000e+00 : f32
    %331 = vector.broadcast %cst_131 : f32 to vector<16x32xf32>
    %332 = arith.cmpf ogt, %330, %331 : vector<16x32xf32>
    %cst_132 = arith.constant 2.000000e-01 : f32
    %333 = vector.broadcast %cst_132 : f32 to vector<16x32xf32>
    %334 = arith.mulf %333, %330 : vector<16x32xf32>
    %335 = arith.select %332, %330, %334 : vector<16x32xi1>, vector<16x32xf32>
    %336 = arith.maximumf %328, %335 : vector<16x32xf32>
    %337 = vector.extract_strided_slice %313 {offsets = [48, 0], sizes = [16, 32], strides = [1, 1]} : vector<64x32xf32> to vector<16x32xf32>
    %338 = arith.addf %309, %337 : vector<16x32xf32>
    %cst_133 = arith.constant 0.000000e+00 : f32
    %339 = vector.broadcast %cst_133 : f32 to vector<16x32xf32>
    %340 = arith.cmpf ogt, %338, %339 : vector<16x32xf32>
    %cst_134 = arith.constant 2.000000e-01 : f32
    %341 = vector.broadcast %cst_134 : f32 to vector<16x32xf32>
    %342 = arith.mulf %341, %338 : vector<16x32xf32>
    %343 = arith.select %340, %338, %342 : vector<16x32xi1>, vector<16x32xf32>
    %344 = arith.maximumf %336, %343 : vector<16x32xf32>
    %345 = arith.addf %300, %344 : vector<16x32xf32>
    %346 = arith.addf %255, %345 : vector<16x32xf32>
    %cst_135 = arith.constant 5.000000e-01 : f32
    %347 = vector.broadcast %cst_135 : f32 to vector<16x32xf32>
    %348 = arith.mulf %346, %347 : vector<16x32xf32>
    %c0_136 = arith.constant 0 : index
    %c0_137 = arith.constant 0 : index
    %349 = vector.load %arg15[%c0_136, %c0_137] : memref<32x32xf32, #tpu.memory_space<vmem>>, vector<32x32xf32>
    %c0_138 = arith.constant 0 : index
    %c0_139 = arith.constant 0 : index
    %350 = vector.load %arg16[%c0_138, %c0_139] : memref<32x32xf32, #tpu.memory_space<vmem>>, vector<32x32xf32>
    %c0_140 = arith.constant 0 : index
    %c0_141 = arith.constant 0 : index
    %351 = vector.load %arg14[%c0_140, %c0_141] : memref<1x32xf32, #tpu.memory_space<vmem>>, vector<1x32xf32>
    %352 = arith.subf %349, %350 : vector<32x32xf32>
    %353 = arith.truncf %348 : vector<16x32xf32> to vector<16x32xbf16>
    %354 = arith.truncf %352 : vector<32x32xf32> to vector<32x32xbf16>
    %cst_142 = arith.constant dense<0.000000e+00> : vector<16x32xf32>
    %355 = tpu.matmul %353, %354, %cst_142 {dimension_numbers = #tpu.dot_dimension_numbers<[1], [0], [0], [1], [0, 0, 1, 1], [], []>} : vector<16x32xbf16>, vector<32x32xbf16>, vector<16x32xf32> -> vector<16x32xf32>
    %356 = vector.broadcast %351 : vector<1x32xf32> to vector<16x32xf32>
    %357 = arith.addf %355, %356 : vector<16x32xf32>
    %358 = arith.truncf %348 : vector<16x32xf32> to vector<16x32xbf16>
    %359 = arith.truncf %350 : vector<32x32xf32> to vector<32x32xbf16>
    %cst_143 = arith.constant dense<0.000000e+00> : vector<16x32xf32>
    %360 = tpu.matmul %358, %359, %cst_143 {dimension_numbers = #tpu.dot_dimension_numbers<[1], [0], [0], [1], [0, 0, 1, 1], [], []>} : vector<16x32xbf16>, vector<32x32xbf16>, vector<16x32xf32> -> vector<16x32xf32>
    %cst_144 = arith.constant dense<0.000000e+00> : vector<64x32xf32>
    %361 = tpu.matmul %120, %360, %cst_144 {dimension_numbers = #tpu.dot_dimension_numbers<[1], [0], [0], [1], [0, 0, 1, 1], [], []>} : vector<64x16xf32>, vector<16x32xf32>, vector<64x32xf32> -> vector<64x32xf32>
    %362 = vector.extract_strided_slice %361 {offsets = [0, 0], sizes = [16, 32], strides = [1, 1]} : vector<64x32xf32> to vector<16x32xf32>
    %363 = arith.addf %357, %362 : vector<16x32xf32>
    %cst_145 = arith.constant 0.000000e+00 : f32
    %364 = vector.broadcast %cst_145 : f32 to vector<16x32xf32>
    %365 = arith.cmpf ogt, %363, %364 : vector<16x32xf32>
    %cst_146 = arith.constant 2.000000e-01 : f32
    %366 = vector.broadcast %cst_146 : f32 to vector<16x32xf32>
    %367 = arith.mulf %366, %363 : vector<16x32xf32>
    %368 = arith.select %365, %363, %367 : vector<16x32xi1>, vector<16x32xf32>
    %369 = vector.extract_strided_slice %361 {offsets = [16, 0], sizes = [16, 32], strides = [1, 1]} : vector<64x32xf32> to vector<16x32xf32>
    %370 = arith.addf %357, %369 : vector<16x32xf32>
    %cst_147 = arith.constant 0.000000e+00 : f32
    %371 = vector.broadcast %cst_147 : f32 to vector<16x32xf32>
    %372 = arith.cmpf ogt, %370, %371 : vector<16x32xf32>
    %cst_148 = arith.constant 2.000000e-01 : f32
    %373 = vector.broadcast %cst_148 : f32 to vector<16x32xf32>
    %374 = arith.mulf %373, %370 : vector<16x32xf32>
    %375 = arith.select %372, %370, %374 : vector<16x32xi1>, vector<16x32xf32>
    %376 = arith.maximumf %368, %375 : vector<16x32xf32>
    %377 = vector.extract_strided_slice %361 {offsets = [32, 0], sizes = [16, 32], strides = [1, 1]} : vector<64x32xf32> to vector<16x32xf32>
    %378 = arith.addf %357, %377 : vector<16x32xf32>
    %cst_149 = arith.constant 0.000000e+00 : f32
    %379 = vector.broadcast %cst_149 : f32 to vector<16x32xf32>
    %380 = arith.cmpf ogt, %378, %379 : vector<16x32xf32>
    %cst_150 = arith.constant 2.000000e-01 : f32
    %381 = vector.broadcast %cst_150 : f32 to vector<16x32xf32>
    %382 = arith.mulf %381, %378 : vector<16x32xf32>
    %383 = arith.select %380, %378, %382 : vector<16x32xi1>, vector<16x32xf32>
    %384 = arith.maximumf %376, %383 : vector<16x32xf32>
    %385 = vector.extract_strided_slice %361 {offsets = [48, 0], sizes = [16, 32], strides = [1, 1]} : vector<64x32xf32> to vector<16x32xf32>
    %386 = arith.addf %357, %385 : vector<16x32xf32>
    %cst_151 = arith.constant 0.000000e+00 : f32
    %387 = vector.broadcast %cst_151 : f32 to vector<16x32xf32>
    %388 = arith.cmpf ogt, %386, %387 : vector<16x32xf32>
    %cst_152 = arith.constant 2.000000e-01 : f32
    %389 = vector.broadcast %cst_152 : f32 to vector<16x32xf32>
    %390 = arith.mulf %389, %386 : vector<16x32xf32>
    %391 = arith.select %388, %386, %390 : vector<16x32xi1>, vector<16x32xf32>
    %392 = arith.maximumf %384, %391 : vector<16x32xf32>
    %c0_153 = arith.constant 0 : index
    %c0_154 = arith.constant 0 : index
    %393 = vector.load %arg25[%c0_153, %c0_154] : memref<32x32xf32, #tpu.memory_space<vmem>>, vector<32x32xf32>
    %394 = arith.truncf %392 : vector<16x32xf32> to vector<16x32xbf16>
    %395 = arith.truncf %393 : vector<32x32xf32> to vector<32x32xbf16>
    %cst_155 = arith.constant dense<0.000000e+00> : vector<16x32xf32>
    %396 = tpu.matmul %394, %395, %cst_155 {dimension_numbers = #tpu.dot_dimension_numbers<[1], [0], [0], [1], [0, 0, 1, 1], [], []>} : vector<16x32xbf16>, vector<32x32xbf16>, vector<16x32xf32> -> vector<16x32xf32>
    %c0_156 = arith.constant 0 : index
    %c0_157 = arith.constant 0 : index
    %397 = vector.load %arg23[%c0_156, %c0_157] : memref<1x32xf32, #tpu.memory_space<vmem>>, vector<1x32xf32>
    %398 = vector.broadcast %397 : vector<1x32xf32> to vector<16x32xf32>
    %399 = arith.addf %396, %398 : vector<16x32xf32>
    %cst_158 = arith.constant 0.000000e+00 : f32
    %400 = vector.broadcast %cst_158 : f32 to vector<16x32xf32>
    %401 = arith.cmpf ogt, %399, %400 : vector<16x32xf32>
    %cst_159 = arith.constant 0.00999999977 : f32
    %402 = vector.broadcast %cst_159 : f32 to vector<16x32xf32>
    %403 = arith.mulf %402, %399 : vector<16x32xf32>
    %404 = arith.select %401, %399, %403 : vector<16x32xi1>, vector<16x32xf32>
    %c0_160 = arith.constant 0 : index
    %c0_161 = arith.constant 0 : index
    %405 = vector.load %arg26[%c0_160, %c0_161] : memref<32x3xf32, #tpu.memory_space<vmem>>, vector<32x3xf32>
    %406 = arith.truncf %404 : vector<16x32xf32> to vector<16x32xbf16>
    %407 = arith.truncf %405 : vector<32x3xf32> to vector<32x3xbf16>
    %cst_162 = arith.constant dense<0.000000e+00> : vector<16x3xf32>
    %408 = tpu.matmul %406, %407, %cst_162 {dimension_numbers = #tpu.dot_dimension_numbers<[1], [0], [0], [1], [0, 0, 1, 1], [], []>} : vector<16x32xbf16>, vector<32x3xbf16>, vector<16x3xf32> -> vector<16x3xf32>
    %c0_163 = arith.constant 0 : index
    %c0_164 = arith.constant 0 : index
    %409 = vector.load %arg24[%c0_163, %c0_164] : memref<1x3xf32, #tpu.memory_space<vmem>>, vector<1x3xf32>
    %410 = vector.broadcast %409 : vector<1x3xf32> to vector<16x3xf32>
    %411 = arith.addf %408, %410 : vector<16x3xf32>
    %c0_165 = arith.constant 0 : index
    %c0_166 = arith.constant 0 : index
    %c0_167 = arith.constant 0 : index
    %412 = vector.load %arg27[%c0_165, %c0_166, %c0_167] : memref<2x16x3xf32, #tpu.memory_space<vmem>>, vector<1x16x3xf32>
    %413 = vector.shape_cast %412 : vector<1x16x3xf32> to vector<16x3xf32>
    %414 = vector.shape_cast %411 : vector<16x3xf32> to vector<1x16x3xf32>
    tpu.vector_store %arg27[%c0_165, %c0_166, %c0_167], %414 {strides = array<i32>} : memref<2x16x3xf32, #tpu.memory_space<vmem>>, vector<1x16x3xf32>,
    %c0_168 = arith.constant 0 : index
    %c0_169 = arith.constant 0 : index
    %415 = vector.load %arg18[%c0_168, %c0_169] : memref<32x32xf32, #tpu.memory_space<vmem>>, vector<32x32xf32>
    %c0_170 = arith.constant 0 : index
    %c0_171 = arith.constant 0 : index
    %416 = vector.load %arg19[%c0_170, %c0_171] : memref<32x32xf32, #tpu.memory_space<vmem>>, vector<32x32xf32>
    %c0_172 = arith.constant 0 : index
    %c0_173 = arith.constant 0 : index
    %417 = vector.load %arg17[%c0_172, %c0_173] : memref<1x32xf32, #tpu.memory_space<vmem>>, vector<1x32xf32>
    %418 = arith.subf %415, %416 : vector<32x32xf32>
    %419 = arith.truncf %348 : vector<16x32xf32> to vector<16x32xbf16>
    %420 = arith.truncf %418 : vector<32x32xf32> to vector<32x32xbf16>
    %cst_174 = arith.constant dense<0.000000e+00> : vector<16x32xf32>
    %421 = tpu.matmul %419, %420, %cst_174 {dimension_numbers = #tpu.dot_dimension_numbers<[1], [0], [0], [1], [0, 0, 1, 1], [], []>} : vector<16x32xbf16>, vector<32x32xbf16>, vector<16x32xf32> -> vector<16x32xf32>
    %422 = vector.broadcast %417 : vector<1x32xf32> to vector<16x32xf32>
    %423 = arith.addf %421, %422 : vector<16x32xf32>
    %424 = arith.truncf %348 : vector<16x32xf32> to vector<16x32xbf16>
    %425 = arith.truncf %416 : vector<32x32xf32> to vector<32x32xbf16>
    %cst_175 = arith.constant dense<0.000000e+00> : vector<16x32xf32>
    %426 = tpu.matmul %424, %425, %cst_175 {dimension_numbers = #tpu.dot_dimension_numbers<[1], [0], [0], [1], [0, 0, 1, 1], [], []>} : vector<16x32xbf16>, vector<32x32xbf16>, vector<16x32xf32> -> vector<16x32xf32>
    %cst_176 = arith.constant dense<0.000000e+00> : vector<64x32xf32>
    %427 = tpu.matmul %120, %426, %cst_176 {dimension_numbers = #tpu.dot_dimension_numbers<[1], [0], [0], [1], [0, 0, 1, 1], [], []>} : vector<64x16xf32>, vector<16x32xf32>, vector<64x32xf32> -> vector<64x32xf32>
    %428 = vector.extract_strided_slice %427 {offsets = [0, 0], sizes = [16, 32], strides = [1, 1]} : vector<64x32xf32> to vector<16x32xf32>
    %429 = arith.addf %423, %428 : vector<16x32xf32>
    %cst_177 = arith.constant 0.000000e+00 : f32
    %430 = vector.broadcast %cst_177 : f32 to vector<16x32xf32>
    %431 = arith.cmpf ogt, %429, %430 : vector<16x32xf32>
    %cst_178 = arith.constant 2.000000e-01 : f32
    %432 = vector.broadcast %cst_178 : f32 to vector<16x32xf32>
    %433 = arith.mulf %432, %429 : vector<16x32xf32>
    %434 = arith.select %431, %429, %433 : vector<16x32xi1>, vector<16x32xf32>
    %435 = vector.extract_strided_slice %427 {offsets = [16, 0], sizes = [16, 32], strides = [1, 1]} : vector<64x32xf32> to vector<16x32xf32>
    %436 = arith.addf %423, %435 : vector<16x32xf32>
    %cst_179 = arith.constant 0.000000e+00 : f32
    %437 = vector.broadcast %cst_179 : f32 to vector<16x32xf32>
    %438 = arith.cmpf ogt, %436, %437 : vector<16x32xf32>
    %cst_180 = arith.constant 2.000000e-01 : f32
    %439 = vector.broadcast %cst_180 : f32 to vector<16x32xf32>
    %440 = arith.mulf %439, %436 : vector<16x32xf32>
    %441 = arith.select %438, %436, %440 : vector<16x32xi1>, vector<16x32xf32>
    %442 = arith.maximumf %434, %441 : vector<16x32xf32>
    %443 = vector.extract_strided_slice %427 {offsets = [32, 0], sizes = [16, 32], strides = [1, 1]} : vector<64x32xf32> to vector<16x32xf32>
    %444 = arith.addf %423, %443 : vector<16x32xf32>
    %cst_181 = arith.constant 0.000000e+00 : f32
    %445 = vector.broadcast %cst_181 : f32 to vector<16x32xf32>
    %446 = arith.cmpf ogt, %444, %445 : vector<16x32xf32>
    %cst_182 = arith.constant 2.000000e-01 : f32
    %447 = vector.broadcast %cst_182 : f32 to vector<16x32xf32>
    %448 = arith.mulf %447, %444 : vector<16x32xf32>
    %449 = arith.select %446, %444, %448 : vector<16x32xi1>, vector<16x32xf32>
    %450 = arith.maximumf %442, %449 : vector<16x32xf32>
    %451 = vector.extract_strided_slice %427 {offsets = [48, 0], sizes = [16, 32], strides = [1, 1]} : vector<64x32xf32> to vector<16x32xf32>
    %452 = arith.addf %423, %451 : vector<16x32xf32>
    %cst_183 = arith.constant 0.000000e+00 : f32
    %453 = vector.broadcast %cst_183 : f32 to vector<16x32xf32>
    %454 = arith.cmpf ogt, %452, %453 : vector<16x32xf32>
    %cst_184 = arith.constant 2.000000e-01 : f32
    %455 = vector.broadcast %cst_184 : f32 to vector<16x32xf32>
    %456 = arith.mulf %455, %452 : vector<16x32xf32>
    %457 = arith.select %454, %452, %456 : vector<16x32xi1>, vector<16x32xf32>
    %458 = arith.maximumf %450, %457 : vector<16x32xf32>
    %c0_185 = arith.constant 0 : index
    %c0_186 = arith.constant 0 : index
    %459 = vector.load %arg25[%c0_185, %c0_186] : memref<32x32xf32, #tpu.memory_space<vmem>>, vector<32x32xf32>
    %460 = arith.truncf %458 : vector<16x32xf32> to vector<16x32xbf16>
    %461 = arith.truncf %459 : vector<32x32xf32> to vector<32x32xbf16>
    %cst_187 = arith.constant dense<0.000000e+00> : vector<16x32xf32>
    %462 = tpu.matmul %460, %461, %cst_187 {dimension_numbers = #tpu.dot_dimension_numbers<[1], [0], [0], [1], [0, 0, 1, 1], [], []>} : vector<16x32xbf16>, vector<32x32xbf16>, vector<16x32xf32> -> vector<16x32xf32>
    %c0_188 = arith.constant 0 : index
    %c0_189 = arith.constant 0 : index
    %463 = vector.load %arg23[%c0_188, %c0_189] : memref<1x32xf32, #tpu.memory_space<vmem>>, vector<1x32xf32>
    %464 = vector.broadcast %463 : vector<1x32xf32> to vector<16x32xf32>
    %465 = arith.addf %462, %464 : vector<16x32xf32>
    %cst_190 = arith.constant 0.000000e+00 : f32
    %466 = vector.broadcast %cst_190 : f32 to vector<16x32xf32>
    %467 = arith.cmpf ogt, %465, %466 : vector<16x32xf32>
    %cst_191 = arith.constant 0.00999999977 : f32
    %468 = vector.broadcast %cst_191 : f32 to vector<16x32xf32>
    %469 = arith.mulf %468, %465 : vector<16x32xf32>
    %470 = arith.select %467, %465, %469 : vector<16x32xi1>, vector<16x32xf32>
    %c0_192 = arith.constant 0 : index
    %c0_193 = arith.constant 0 : index
    %471 = vector.load %arg26[%c0_192, %c0_193] : memref<32x3xf32, #tpu.memory_space<vmem>>, vector<32x3xf32>
    %472 = arith.truncf %470 : vector<16x32xf32> to vector<16x32xbf16>
    %473 = arith.truncf %471 : vector<32x3xf32> to vector<32x3xbf16>
    %cst_194 = arith.constant dense<0.000000e+00> : vector<16x3xf32>
    %474 = tpu.matmul %472, %473, %cst_194 {dimension_numbers = #tpu.dot_dimension_numbers<[1], [0], [0], [1], [0, 0, 1, 1], [], []>} : vector<16x32xbf16>, vector<32x3xbf16>, vector<16x3xf32> -> vector<16x3xf32>
    %c0_195 = arith.constant 0 : index
    %c0_196 = arith.constant 0 : index
    %475 = vector.load %arg24[%c0_195, %c0_196] : memref<1x3xf32, #tpu.memory_space<vmem>>, vector<1x3xf32>
    %476 = vector.broadcast %475 : vector<1x3xf32> to vector<16x3xf32>
    %477 = arith.addf %474, %476 : vector<16x3xf32>
    %c1 = arith.constant 1 : index
    %c0_197 = arith.constant 0 : index
    %c0_198 = arith.constant 0 : index
    %478 = vector.load %arg27[%c1, %c0_197, %c0_198] : memref<2x16x3xf32, #tpu.memory_space<vmem>>, vector<1x16x3xf32>
    %479 = vector.shape_cast %478 : vector<1x16x3xf32> to vector<16x3xf32>
    %480 = vector.shape_cast %477 : vector<16x3xf32> to vector<1x16x3xf32>
    tpu.vector_store %arg27[%c1, %c0_197, %c0_198], %480 {strides = array<i32>} : memref<2x16x3xf32, #tpu.memory_space<vmem>>, vector<1x16x3xf32>,
    return
  }
  func.func @transform_0(%arg0: i32) -> (i32, i32) {
    %c0_i32 = arith.constant 0 : i32
    %c0_i32_0 = arith.constant 0 : i32
    %c0_i32_1 = arith.constant 0 : i32
    return %c0_i32, %c0_i32_0 : i32, i32
  }
  func.func @transform_1(%arg0: i32) -> (i32, i32) {
    %c0_i32 = arith.constant 0 : i32
    %c0_i32_0 = arith.constant 0 : i32
    %c0_i32_1 = arith.constant 0 : i32
    return %c0_i32, %c0_i32_0 : i32, i32
  }
  func.func @transform_2(%arg0: i32) -> (i32, i32) {
    %c0_i32 = arith.constant 0 : i32
    %c0_i32_0 = arith.constant 0 : i32
    %c0_i32_1 = arith.constant 0 : i32
    return %c0_i32, %c0_i32_0 : i32, i32
  }
  func.func @transform_3(%arg0: i32) -> (i32, i32) {
    %c0_i32 = arith.constant 0 : i32
    %c0_i32_0 = arith.constant 0 : i32
    %c0_i32_1 = arith.constant 0 : i32
    return %c0_i32, %c0_i32_0 : i32, i32
  }
  func.func @transform_4(%arg0: i32) -> (i32, i32) {
    %c0_i32 = arith.constant 0 : i32
    %c0_i32_0 = arith.constant 0 : i32
    %c0_i32_1 = arith.constant 0 : i32
    return %c0_i32, %c0_i32_0 : i32, i32
  }
  func.func @transform_5(%arg0: i32) -> (i32, i32) {
    %c0_i32 = arith.constant 0 : i32
    %c0_i32_0 = arith.constant 0 : i32
    %c0_i32_1 = arith.constant 0 : i32
    return %c0_i32, %c0_i32_0 : i32, i32
  }
  func.func @transform_6(%arg0: i32) -> (i32, i32) {
    %c0_i32 = arith.constant 0 : i32
    %c0_i32_0 = arith.constant 0 : i32
    %c0_i32_1 = arith.constant 0 : i32
    return %c0_i32, %c0_i32_0 : i32, i32
  }
  func.func @transform_7(%arg0: i32) -> (i32, i32) {
    %c0_i32 = arith.constant 0 : i32
    %c0_i32_0 = arith.constant 0 : i32
    %c0_i32_1 = arith.constant 0 : i32
    return %c0_i32, %c0_i32_0 : i32, i32
  }
  func.func @transform_8(%arg0: i32) -> (i32, i32) {
    %c0_i32 = arith.constant 0 : i32
    %c0_i32_0 = arith.constant 0 : i32
    %c0_i32_1 = arith.constant 0 : i32
    return %c0_i32, %c0_i32_0 : i32, i32
  }
  func.func @transform_9(%arg0: i32) -> (i32, i32) {
    %c0_i32 = arith.constant 0 : i32
    %c0_i32_0 = arith.constant 0 : i32
    %c0_i32_1 = arith.constant 0 : i32
    return %c0_i32, %c0_i32_0 : i32, i32
  }
  func.func @transform_10(%arg0: i32) -> (i32, i32) {
    %c0_i32 = arith.constant 0 : i32
    %c0_i32_0 = arith.constant 0 : i32
    %c0_i32_1 = arith.constant 0 : i32
    return %c0_i32, %c0_i32_0 : i32, i32
  }
  func.func @transform_11(%arg0: i32) -> (i32, i32) {
    %c0_i32 = arith.constant 0 : i32
    %c0_i32_0 = arith.constant 0 : i32
    %c0_i32_1 = arith.constant 0 : i32
    return %c0_i32, %c0_i32_0 : i32, i32
  }
  func.func @transform_12(%arg0: i32) -> (i32, i32) {
    %c0_i32 = arith.constant 0 : i32
    %c0_i32_0 = arith.constant 0 : i32
    %c0_i32_1 = arith.constant 0 : i32
    return %c0_i32, %c0_i32_0 : i32, i32
  }
  func.func @transform_13(%arg0: i32) -> (i32, i32) {
    %c0_i32 = arith.constant 0 : i32
    %c0_i32_0 = arith.constant 0 : i32
    %c0_i32_1 = arith.constant 0 : i32
    return %c0_i32, %c0_i32_0 : i32, i32
  }
  func.func @transform_14(%arg0: i32) -> (i32, i32) {
    %c0_i32 = arith.constant 0 : i32
    %c0_i32_0 = arith.constant 0 : i32
    %c0_i32_1 = arith.constant 0 : i32
    return %c0_i32, %c0_i32_0 : i32, i32
  }
  func.func @transform_15(%arg0: i32) -> (i32, i32) {
    %c0_i32 = arith.constant 0 : i32
    %c0_i32_0 = arith.constant 0 : i32
    %c0_i32_1 = arith.constant 0 : i32
    return %c0_i32, %c0_i32_0 : i32, i32
  }
  func.func @transform_16(%arg0: i32) -> (i32, i32) {
    %c0_i32 = arith.constant 0 : i32
    %c0_i32_0 = arith.constant 0 : i32
    %c0_i32_1 = arith.constant 0 : i32
    return %c0_i32, %c0_i32_0 : i32, i32
  }
  func.func @transform_17(%arg0: i32) -> (i32, i32) {
    %c0_i32 = arith.constant 0 : i32
    %c0_i32_0 = arith.constant 0 : i32
    %c0_i32_1 = arith.constant 0 : i32
    return %c0_i32, %c0_i32_0 : i32, i32
  }
  func.func @transform_18(%arg0: i32) -> (i32, i32) {
    %c0_i32 = arith.constant 0 : i32
    %c0_i32_0 = arith.constant 0 : i32
    %c0_i32_1 = arith.constant 0 : i32
    return %c0_i32, %c0_i32_0 : i32, i32
  }
  func.func @transform_19(%arg0: i32) -> (i32, i32) {
    %c0_i32 = arith.constant 0 : i32
    %c0_i32_0 = arith.constant 0 : i32
    %c0_i32_1 = arith.constant 0 : i32
    return %c0_i32, %c0_i32_0 : i32, i32
  }
  func.func @transform_20(%arg0: i32) -> (i32, i32) {
    %c0_i32 = arith.constant 0 : i32
    %c0_i32_0 = arith.constant 0 : i32
    %c0_i32_1 = arith.constant 0 : i32
    return %c0_i32, %c0_i32_0 : i32, i32
  }
  func.func @transform_21(%arg0: i32) -> (i32, i32) {
    %c0_i32 = arith.constant 0 : i32
    %c0_i32_0 = arith.constant 0 : i32
    %c0_i32_1 = arith.constant 0 : i32
    return %c0_i32, %c0_i32_0 : i32, i32
  }
  func.func @transform_22(%arg0: i32) -> (i32, i32) {
    %c0_i32 = arith.constant 0 : i32
    %c0_i32_0 = arith.constant 0 : i32
    %c0_i32_1 = arith.constant 0 : i32
    return %c0_i32, %c0_i32_0 : i32, i32
  }
  func.func @transform_23(%arg0: i32) -> (i32, i32) {
    %c0_i32 = arith.constant 0 : i32
    %c0_i32_0 = arith.constant 0 : i32
    %c0_i32_1 = arith.constant 0 : i32
    return %c0_i32, %c0_i32_0 : i32, i32
  }
  func.func @transform_24(%arg0: i32) -> (i32, i32) {
    %c0_i32 = arith.constant 0 : i32
    %c0_i32_0 = arith.constant 0 : i32
    %c0_i32_1 = arith.constant 0 : i32
    return %c0_i32, %c0_i32_0 : i32, i32
  }
  func.func @transform_25(%arg0: i32) -> (i32, i32) {
    %c0_i32 = arith.constant 0 : i32
    %c0_i32_0 = arith.constant 0 : i32
    %c0_i32_1 = arith.constant 0 : i32
    return %c0_i32, %c0_i32_0 : i32, i32
  }
  func.func @transform_26(%arg0: i32) -> (i32, i32, i32) {
    %c0_i32 = arith.constant 0 : i32
    %c0_i32_0 = arith.constant 0 : i32
    %c0_i32_1 = arith.constant 0 : i32
    %c0_i32_2 = arith.constant 0 : i32
    return %c0_i32, %c0_i32_0, %c0_i32_1 : i32, i32, i32
  }
}

</mosaic_0001>

<llo_original>
// kernel: pugcn_forward.1
$region0: #{pugcn_forward.1}
  #allocation0 [shape = 'u32[]', space=smem, size = 0x4, offset = 0x4, fixed_abs, tag = 'smem constant byte address 0x4 - core index']
  #allocation1 [shape = 'u32[144,128]{1,0:T(1,128)}', space=vmem, size = 0x12000, scoped, tag = 'internal scratch']
  #allocation2 [shape = 'f32[64,16]{1,0:T(8,128)}', space=vmem, size = 0x8000, scoped, tag = 'scratch operand']
  #allocation3 [shape = 'f32[64,16]{1,0:T(8,128)}', space=vmem, size = 0x8000, scoped, tag = 'scratch operand']
  %s0 = inlined_call_operand.vmem [shape: f32[16,3], index: 0, kind: input, shape index: {}]
  %s1 = inlined_call_operand.vmem [shape: f32[1,32], index: 1, kind: input, shape index: {}]
  %s2 = inlined_call_operand.vmem [shape: f32[32,32], index: 2, kind: input, shape index: {}]
  %s3 = inlined_call_operand.vmem [shape: f32[32,32], index: 3, kind: input, shape index: {}]
  %s4 = inlined_call_operand.vmem [shape: f32[1,32], index: 4, kind: input, shape index: {}]
  %s5 = inlined_call_operand.vmem [shape: f32[32,32], index: 5, kind: input, shape index: {}]
  %s6 = inlined_call_operand.vmem [shape: f32[32,32], index: 6, kind: input, shape index: {}]
  %s7 = inlined_call_operand.vmem [shape: f32[1,32], index: 7, kind: input, shape index: {}]
  %s8 = inlined_call_operand.vmem [shape: f32[32,32], index: 8, kind: input, shape index: {}]
  %s9 = inlined_call_operand.vmem [shape: f32[32,32], index: 9, kind: input, shape index: {}]
  %s10 = inlined_call_operand.hbm [shape: f32[1,32], index: 10, kind: input, shape index: {}]
  %s11 = inlined_call_operand.vmem [shape: f32[32,32], index: 11, kind: input, shape index: {}]
  %s12 = inlined_call_operand.vmem [shape: f32[32,32], index: 12, kind: input, shape index: {}]
  %s13 = inlined_call_operand.vmem [shape: f32[1,32], index: 13, kind: input, shape index: {}]
  %s14 = inlined_call_operand.vmem [shape: f32[32,32], index: 14, kind: input, shape index: {}]
  %s15 = inlined_call_operand.vmem [shape: f32[32,32], index: 15, kind: input, shape index: {}]
  %s16 = inlined_call_operand.vmem [shape: f32[1,32], index: 16, kind: input, shape index: {}]
  %s17 = inlined_call_operand.vmem [shape: f32[32,32], index: 17, kind: input, shape index: {}]
  %s18 = inlined_call_operand.vmem [shape: f32[32,32], index: 18, kind: input, shape index: {}]
  %s19 = inlined_call_operand.hbm [shape: f32[1,32], index: 19, kind: input, shape index: {}]
  %s20 = inlined_call_operand.vmem [shape: f32[3,32], index: 20, kind: input, shape index: {}]
  %s21 = inlined_call_operand.hbm [shape: f32[3,32], index: 21, kind: input, shape index: {}]
  %s22 = inlined_call_operand.hbm [shape: f32[1,32], index: 22, kind: input, shape index: {}]
  %s23 = inlined_call_operand.hbm [shape: f32[1,3], index: 23, kind: input, shape index: {}]
  %s24 = inlined_call_operand.vmem [shape: f32[32,32], index: 24, kind: input, shape index: {}]
  %s25 = inlined_call_operand.vmem [shape: f32[32,3], index: 25, kind: input, shape index: {}]
  %s26 = inlined_call_operand.vmem [shape: f32[2,16,3], index: 26, kind: output, shape index: {}]
  %s27 = sld [smem:[#allocation0]]
  $region134: #{pugcn_forward.1} parent=0
    _
  %s29 = ssub.s32 1, %s27
  %s30 = scalar_select 0, %s29, %s27
  $region1: #{pugcn_forward.1} parent=0
    #allocation4 [shape = 'u8[512]{0}', space=vmem, size = 0x400, scoped, tag = 'input window, operand 10, single buffered']
    #allocation5 [shape = 's32[1]{0}', space=sflag, size = 0x4, scoped, tag = 'scoped memory for pugcn_forward.1']
    #allocation6 [shape = 'u8[512]{0}', space=vmem, size = 0x400, scoped, tag = 'input window, operand 19, single buffered']
    #allocation7 [shape = 's32[1]{0}', space=sflag, size = 0x4, scoped, tag = 'scoped memory for pugcn_forward.1']
    #allocation8 [shape = 'u8[2048]{0}', space=vmem, size = 0x800, scoped, tag = 'input window, operand 21, single buffered']
    #allocation9 [shape = 'u8[512]{0}', space=vmem, size = 0x400, scoped, tag = 'input window, operand 22, single buffered']
    #allocation10 [shape = 's32[1]{0}', space=sflag, size = 0x4, scoped, tag = 'scoped memory for pugcn_forward.1']
    #allocation11 [shape = 'u8[512]{0}', space=vmem, size = 0x400, scoped, tag = 'input window, operand 23, single buffered']
    %31 = vsyncpa [#allocation5], 0
    %32 = vsyncpa [#allocation7], 0
    %33 = vsyncpa [#allocation10], 0
    // Predicated region
    $region2: #{pugcn_forward.1} parent=1 // pred_check
      _
    $region3: #{pugcn_forward.1} parent=1 // pred_check_branch
      %35 = sbr.rel (0) target = $region5
    $region4: #{pugcn_forward.1} parent=1 // pred_region
      _
    $region5: #{pugcn_forward.1} parent=1 // pred_fallthru
      _
    // Predicated region
    $region6: #{pugcn_forward.1} parent=1 // pred_check
      _
    $region7: #{pugcn_forward.1} parent=1 // pred_check_branch
      %37 = sbr.rel (0) target = $region9
    $region8: #{pugcn_forward.1} parent=1 // pred_region
      _
    $region9: #{pugcn_forward.1} parent=1 // pred_fallthru
      _
    // Predicated region
    $region10: #{pugcn_forward.1} parent=1 // pred_check
      _
    $region11: #{pugcn_forward.1} parent=1 // pred_check_branch
      %39 = sbr.rel (0) target = $region13
    $region12: #{pugcn_forward.1} parent=1 // pred_region
      _
    $region13: #{pugcn_forward.1} parent=1 // pred_fallthru
      _
    // Predicated region
    $region14: #{pugcn_forward.1} parent=1 // pred_check
      _
    $region15: #{pugcn_forward.1} parent=1 // pred_check_branch
      %41 = sbr.rel (0) target = $region17
    $region16: #{pugcn_forward.1} parent=1 // pred_region
      _
    $region17: #{pugcn_forward.1} parent=1 // pred_fallthru
      _
    // Predicated region
    $region18: #{pugcn_forward.1} parent=1 // pred_check
      _
    $region19: #{pugcn_forward.1} parent=1 // pred_check_branch
      %43 = sbr.rel (0) target = $region21
    $region20: #{pugcn_forward.1} parent=1 // pred_region
      _
    $region21: #{pugcn_forward.1} parent=1 // pred_fallthru
      _
    // Predicated region
    $region22: #{pugcn_forward.1} parent=1 // pred_check
      _
    $region23: #{pugcn_forward.1} parent=1 // pred_check_branch
      %45 = sbr.rel (0) target = $region25
    $region24: #{pugcn_forward.1} parent=1 // pred_region
      _
    $region25: #{pugcn_forward.1} parent=1 // pred_fallthru
      _
    // Predicated region
    $region26: #{pugcn_forward.1} parent=1 // pred_check
      _
    $region27: #{pugcn_forward.1} parent=1 // pred_check_branch
      %47 = sbr.rel (0) target = $region29
    $region28: #{pugcn_forward.1} parent=1 // pred_region
      _
    $region29: #{pugcn_forward.1} parent=1 // pred_fallthru
      _
    // Predicated region
    $region30: #{pugcn_forward.1} parent=1 // pred_check
      _
    $region31: #{pugcn_forward.1} parent=1 // pred_check_branch
      %49 = sbr.rel (0) target = $region33
    $region32: #{pugcn_forward.1} parent=1 // pred_region
      _
    $region33: #{pugcn_forward.1} parent=1 // pred_fallthru
      _
    // Predicated region
    $region34: #{pugcn_forward.1} parent=1 // pred_check
      _
    $region35: #{pugcn_forward.1} parent=1 // pred_check_branch
      %51 = sbr.rel (0) target = $region37
    $region36: #{pugcn_forward.1} parent=1 // pred_region
      _
    $region37: #{pugcn_forward.1} parent=1 // pred_fallthru
      _
    // Predicated region
    $region38: #{pugcn_forward.1} parent=1 // pred_check
      _
    $region39: #{pugcn_forward.1} parent=1 // pred_check_branch
      %53 = sbr.rel (0) target = $region41
    $region40: #{pugcn_forward.1} parent=1 // pred_region
      _
    $region41: #{pugcn_forward.1} parent=1 // pred_fallthru
      _
    // Predicated region
    $region42: #{pugcn_forward.1} parent=1 // pred_check
      _
    $region43: #{pugcn_forward.1} parent=1 // pred_check_branch
      %55 = sbr.rel (0) target = $region45
    $region44: #{pugcn_forward.1} parent=1 // pred_region
      %s57 = ssub.s32 16, 16
      %58 = vsyncadd [#allocation5], %s57
      %s60 = sshll.u32 [#allocation4], 4
      %s61 = int_to_ptr.vmem [resolvable:$true] %s60
      %63 = dma.hbm_to_vmem [thread:$0]  %s10, 16, %s61, [#allocation5]
    $region45: #{pugcn_forward.1} parent=1 // pred_fallthru
      _
    // Predicated region
    $region46: #{pugcn_forward.1} parent=1 // pred_check
      _
    $region47: #{pugcn_forward.1} parent=1 // pred_check_branch
      %65 = sbr.rel (0) target = $region49
    $region48: #{pugcn_forward.1} parent=1 // pred_region
      _
    $region49: #{pugcn_forward.1} parent=1 // pred_fallthru
      _
    // Predicated region
    $region50: #{pugcn_forward.1} parent=1 // pred_check
      _
    $region51: #{pugcn_forward.1} parent=1 // pred_check_branch
      %67 = sbr.rel (0) target = $region53
    $region52: #{pugcn_forward.1} parent=1 // pred_region
      _
    $region53: #{pugcn_forward.1} parent=1 // pred_fallthru
      _
    // Predicated region
    $region54: #{pugcn_forward.1} parent=1 // pred_check
      _
    $region55: #{pugcn_forward.1} parent=1 // pred_check_branch
      %69 = sbr.rel (0) target = $region57
    $region56: #{pugcn_forward.1} parent=1 // pred_region
      _
    $region57: #{pugcn_forward.1} parent=1 // pred_fallthru
      _
    // Predicated region
    $region58: #{pugcn_forward.1} parent=1 // pred_check
      _
    $region59: #{pugcn_forward.1} parent=1 // pred_check_branch
      %71 = sbr.rel (0) target = $region61
    $region60: #{pugcn_forward.1} parent=1 // pred_region
      _
    $region61: #{pugcn_forward.1} parent=1 // pred_fallthru
      _
    // Predicated region
    $region62: #{pugcn_forward.1} parent=1 // pred_check
      _
    $region63: #{pugcn_forward.1} parent=1 // pred_check_branch
      %73 = sbr.rel (0) target = $region65
    $region64: #{pugcn_forward.1} parent=1 // pred_region
      _
    $region65: #{pugcn_forward.1} parent=1 // pred_fallthru
      _
    // Predicated region
    $region66: #{pugcn_forward.1} parent=1 // pred_check
      _
    $region67: #{pugcn_forward.1} parent=1 // pred_check_branch
      %75 = sbr.rel (0) target = $region69
    $region68: #{pugcn_forward.1} parent=1 // pred_region
      _
    $region69: #{pugcn_forward.1} parent=1 // pred_fallthru
      _
    // Predicated region
    $region70: #{pugcn_forward.1} parent=1 // pred_check
      _
    $region71: #{pugcn_forward.1} parent=1 // pred_check_branch
      %77 = sbr.rel (0) target = $region73
    $region72: #{pugcn_forward.1} parent=1 // pred_region
      _
    $region73: #{pugcn_forward.1} parent=1 // pred_fallthru
      _
    // Predicated region
    $region74: #{pugcn_forward.1} parent=1 // pred_check
      _
    $region75: #{pugcn_forward.1} parent=1 // pred_check_branch
      %79 = sbr.rel (0) target = $region77
    $region76: #{pugcn_forward.1} parent=1 // pred_region
      _
    $region77: #{pugcn_forward.1} parent=1 // pred_fallthru
      _
    // Predicated region
    $region78: #{pugcn_forward.1} parent=1 // pred_check
      _
    $region79: #{pugcn_forward.1} parent=1 // pred_check_branch
      %81 = sbr.rel (0) target = $region81
    $region80: #{pugcn_forward.1} parent=1 // pred_region
      %s83 = ssub.s32 16, 16
      %84 = vsyncadd [#allocation7], %s83
      %s86 = sshll.u32 [#allocation6], 4
      %s87 = int_to_ptr.vmem [resolvable:$true] %s86
      %89 = dma.hbm_to_vmem [thread:$0]  %s19, 16, %s87, [#allocation7]
    $region81: #{pugcn_forward.1} parent=1 // pred_fallthru
      _
    // Predicated region
    $region82: #{pugcn_forward.1} parent=1 // pred_check
      _
    $region83: #{pugcn_forward.1} parent=1 // pred_check_branch
      %91 = sbr.rel (0) target = $region85
    $region84: #{pugcn_forward.1} parent=1 // pred_region
      _
    $region85: #{pugcn_forward.1} parent=1 // pred_fallthru
      _
    // Predicated region
    $region86: #{pugcn_forward.1} parent=1 // pred_check
      _
    $region87: #{pugcn_forward.1} parent=1 // pred_check_branch
      %93 = sbr.rel (0) target = $region89
    $region88: #{pugcn_forward.1} parent=1 // pred_region
      %s95 = ssub.s32 64, 64
      %96 = vsyncadd [#allocation7], %s95
      %s98 = sshll.u32 [#allocation8], 4
      %s99 = int_to_ptr.vmem [resolvable:$true] %s98
      %101 = dma.hbm_to_vmem [thread:$0]  %s21, 64, %s99, [#allocation7]
    $region89: #{pugcn_forward.1} parent=1 // pred_fallthru
      _
    // Predicated region
    $region90: #{pugcn_forward.1} parent=1 // pred_check
      _
    $region91: #{pugcn_forward.1} parent=1 // pred_check_branch
      %103 = sbr.rel (0) target = $region93
    $region92: #{pugcn_forward.1} parent=1 // pred_region
      %s105 = ssub.s32 16, 16
      %106 = vsyncadd [#allocation10], %s105
      %s108 = sshll.u32 [#allocation9], 4
      %s109 = int_to_ptr.vmem [resolvable:$true] %s108
      %111 = dma.hbm_to_vmem [thread:$0]  %s22, 16, %s109, [#allocation10]
    $region93: #{pugcn_forward.1} parent=1 // pred_fallthru
      _
    // Predicated region
    $region94: #{pugcn_forward.1} parent=1 // pred_check
      _
    $region95: #{pugcn_forward.1} parent=1 // pred_check_branch
      %113 = sbr.rel (0) target = $region97
    $region96: #{pugcn_forward.1} parent=1 // pred_region
      %s115 = ssub.s32 16, 16
      %116 = vsyncadd [#allocation10], %s115
      %s118 = sshll.u32 [#allocation11], 4
      %s119 = int_to_ptr.vmem [resolvable:$true] %s118
      %121 = dma.hbm_to_vmem [thread:$0]  %s23, 16, %s119, [#allocation10]
    $region97: #{pugcn_forward.1} parent=1 // pred_fallthru
      _
    // Predicated region
    $region98: #{pugcn_forward.1} parent=1 // pred_check
      _
    $region99: #{pugcn_forward.1} parent=1 // pred_check_branch
      %123 = sbr.rel (0) target = $region101
    $region100: #{pugcn_forward.1} parent=1 // pred_region
      _
    $region101: #{pugcn_forward.1} parent=1 // pred_fallthru
      _
    // Predicated region
    $region102: #{pugcn_forward.1} parent=1 // pred_check
      _
    $region103: #{pugcn_forward.1} parent=1 // pred_check_branch
      %125 = sbr.rel (0) target = $region105
    $region104: #{pugcn_forward.1} parent=1 // pred_region
      _
    $region105: #{pugcn_forward.1} parent=1 // pred_fallthru
      _
    // Predicated region
    $region106: #{pugcn_forward.1} parent=1 // pred_check
      _
    $region107: #{pugcn_forward.1} parent=1 // pred_check_branch
      %127 = sbr.rel (0) target = $region109
    $region108: #{pugcn_forward.1} parent=1 // pred_region
      %128 = dma.done [#allocation5], 16
    $region109: #{pugcn_forward.1} parent=1 // pred_fallthru
      _
    // Predicated region
    $region110: #{pugcn_forward.1} parent=1 // pred_check
      _
    $region111: #{pugcn_forward.1} parent=1 // pred_check_branch
      %130 = sbr.rel (0) target = $region113
    $region112: #{pugcn_forward.1} parent=1 // pred_region
      %131 = dma.done [#allocation7], 16
    $region113: #{pugcn_forward.1} parent=1 // pred_fallthru
      _
    // Predicated region
    $region114: #{pugcn_forward.1} parent=1 // pred_check
      _
    $region115: #{pugcn_forward.1} parent=1 // pred_check_branch
      %133 = sbr.rel (0) target = $region117
    $region116: #{pugcn_forward.1} parent=1 // pred_region
      %134 = dma.done [#allocation7], 64
    $region117: #{pugcn_forward.1} parent=1 // pred_fallthru
      _
    // Predicated region
    $region118: #{pugcn_forward.1} parent=1 // pred_check
      _
    $region119: #{pugcn_forward.1} parent=1 // pred_check_branch
      %136 = sbr.rel (0) target = $region121
    $region120: #{pugcn_forward.1} parent=1 // pred_region
      %137 = dma.done [#allocation10], 16
    $region121: #{pugcn_forward.1} parent=1 // pred_fallthru
      _
    // Predicated region
    $region122: #{pugcn_forward.1} parent=1 // pred_check
      _
    $region123: #{pugcn_forward.1} parent=1 // pred_check_branch
      %139 = sbr.rel (0) target = $region125
    $region124: #{pugcn_forward.1} parent=1 // pred_region
      %140 = dma.done [#allocation10], 16
    $region125: #{pugcn_forward.1} parent=1 // pred_fallthru
      _
    %v142 = vld [vmem:[%s0] sm:$0xff]
    %v143 = vld [vmem:[%s0 + $0x8] sm:$0xff]
    %vm144 = vcmask 23552
    %v146 = vsel %vm144, %v142, 0
    %v149 = vsel %vm144, %v143, 0
    %151 = vmatprep.subr.mxu0 0.0
    %152 = vmatpush1.xpose.msra.mxu0 0.0
    %153 = vmatprep.subr.mxu0 0.0
    %154 = vmatpush1.xpose.msra.mxu0 0.0
    %155 = vmatprep.subr.mxu0 0.0
    %156 = vmatpush1.xpose.msra.mxu0 0.0
    %157 = vmatprep.subr.mxu0 0.0
    %158 = vmatpush1.xpose.msra.mxu0 0.0
    %159 = vmatprep.subr.mxu0 0.0
    %160 = vmatpush1.xpose.msra.mxu0 0.0
    %161 = vmatprep.subr.mxu0 0.0
    %162 = vmatpush1.xpose.msra.mxu0 0.0
    %163 = vmatprep.subr.mxu0 0.0
    %164 = vmatpush1.xpose.msra.mxu0 0.0
    %165 = vmatprep.subr.mxu0 0.0
    %166 = vmatpush1.xpose.msra.mxu0 0.0
    %167 = vmatprep.subr.mxu0 0.0
    %168 = vmatpush1.xpose.msra.mxu0 0.0
    %169 = vmatprep.subr.mxu0 0.0
    %170 = vmatpush1.xpose.msra.mxu0 0.0
    %171 = vmatprep.subr.mxu0 0.0
    %172 = vmatpush1.xpose.msra.mxu0 0.0
    %173 = vmatprep.subr.mxu0 0.0
    %174 = vmatpush1.xpose.msra.mxu0 0.0
    %175 = vmatprep.subr.mxu0 0.0
    %176 = vmatpush1.xpose.msra.mxu0 0.0
    %177 = vmatprep.subr.mxu0 0.0
    %178 = vmatpush1.xpose.msra.mxu0 0.0
    %179 = vmatprep.subr.mxu0 0.0
    %180 = vmatpush1.xpose.msra.mxu0 %v149
    %181 = vmatprep.subr.mxu0 0.0
    %182 = vmatpush1.xpose.msra.mxu0 %v146
    %183 = vmatprep.subr.mxu0 0.0
    %184 = vmatpush2.xpose.msra.mxu0 0.0
    %185 = vmatprep.subr.mxu0 0.0
    %186 = vmatpush2.xpose.msra.mxu0 0.0
    %187 = vmatprep.subr.mxu0 0.0
    %188 = vmatpush2.xpose.msra.mxu0 0.0
    %189 = vmatprep.subr.mxu0 0.0
    %190 = vmatpush2.xpose.msra.mxu0 0.0
    %191 = vmatprep.subr.mxu0 0.0
    %192 = vmatpush2.xpose.msra.mxu0 0.0
    %193 = vmatprep.subr.mxu0 0.0
    %194 = vmatpush2.xpose.msra.mxu0 0.0
    %195 = vmatprep.subr.mxu0 0.0
    %196 = vmatpush2.xpose.msra.mxu0 0.0
    %197 = vmatprep.subr.mxu0 0.0
    %198 = vmatpush2.xpose.msra.mxu0 0.0
    %199 = vmatprep.subr.mxu0 0.0
    %200 = vmatpush2.xpose.msra.mxu0 0.0
    %201 = vmatprep.subr.mxu0 0.0
    %202 = vmatpush2.xpose.msra.mxu0 0.0
    %203 = vmatprep.subr.mxu0 0.0
    %204 = vmatpush2.xpose.msra.mxu0 0.0
    %205 = vmatprep.subr.mxu0 0.0
    %206 = vmatpush2.xpose.msra.mxu0 0.0
    %207 = vmatprep.subr.mxu0 0.0
    %208 = vmatpush2.xpose.msra.mxu0 0.0
    %209 = vmatprep.subr.mxu0 0.0
    %210 = vmatpush2.xpose.msra.mxu0 0.0
    %211 = vmatprep.subr.mxu0 0.0
    %212 = vmatpush2.xpose.msra.mxu0 0.0
    %213 = vmatprep.subr.mxu0 0.0
    %214 = vmatpush2.xpose.msra.mxu0 0.0
    %215 = vmatprep.mubr.f32.mxu0 0.0
    %216 = vmatmul.mubr.f32.gmra.mxu0 %v146
    %v217 = vpop.f32.mrf.mxu0
    %v218 = vadd.f32 0.0, %v217
    %v219 = vpop.f32.mrf.mxu0
    %220 = vmatprep.mubr.f32.mxu0 0.0
    %221 = vmatmul.mubr.f32.gmra.mxu0 %v149
    %v222 = vpop.f32.mrf.mxu0
    %v223 = vadd.f32 0.0, %v222
    %v224 = vpop.f32.mrf.mxu0
    %225 = vdwg.mxu0
    %v226 = vmul.f32 %v142, %v142
    %v227 = vmul.f32 %v143, %v143
    %v228 = vsel %vm144, %v226, 0.0
    %229 = vadd.xlane.f32.xlu0 %v228
    %v230 = vpop.xlane.xlu0 %229
    %v231 = vsel %vm144, %v227, 0.0
    %232 = vadd.xlane.f32.xlu0 %v231
    %v233 = vpop.xlane.xlu0 %232
    %vm234 = vcmask 7168
    %v236 = vsel %vm234, 1.0, 0
    %v239 = vsel %vm234, %v230, 0
    %v242 = vsel %vm234, %v233, 0
    %244 = vmatprep.subr.mxu0 0.0
    %245 = vmatpush1.xpose.msra.mxu0 0.0
    %246 = vmatprep.subr.mxu0 0.0
    %247 = vmatpush1.xpose.msra.mxu0 0.0
    %248 = vmatprep.subr.mxu0 0.0
    %249 = vmatpush1.xpose.msra.mxu0 0.0
    %250 = vmatprep.subr.mxu0 0.0
    %251 = vmatpush1.xpose.msra.mxu0 0.0
    %252 = vmatprep.subr.mxu0 0.0
    %253 = vmatpush1.xpose.msra.mxu0 0.0
    %254 = vmatprep.subr.mxu0 0.0
    %255 = vmatpush1.xpose.msra.mxu0 0.0
    %256 = vmatprep.subr.mxu0 0.0
    %257 = vmatpush1.xpose.msra.mxu0 0.0
    %258 = vmatprep.subr.mxu0 0.0
    %259 = vmatpush1.xpose.msra.mxu0 0.0
    %260 = vmatprep.subr.mxu0 0.0
    %261 = vmatpush1.xpose.msra.mxu0 0.0
    %262 = vmatprep.subr.mxu0 0.0
    %263 = vmatpush1.xpose.msra.mxu0 0.0
    %264 = vmatprep.subr.mxu0 0.0
    %265 = vmatpush1.xpose.msra.mxu0 0.0
    %266 = vmatprep.subr.mxu0 0.0
    %267 = vmatpush1.xpose.msra.mxu0 0.0
    %268 = vmatprep.subr.mxu0 0.0
    %269 = vmatpush1.xpose.msra.mxu0 0.0
    %270 = vmatprep.subr.mxu0 0.0
    %271 = vmatpush1.xpose.msra.mxu0 0.0
    %272 = vmatprep.subr.mxu0 0.0
    %273 = vmatpush1.xpose.msra.mxu0 %v242
    %274 = vmatprep.subr.mxu0 0.0
    %275 = vmatpush1.xpose.msra.mxu0 %v239
    %276 = vmatprep.subr.mxu0 0.0
    %277 = vmatpush2.xpose.msra.mxu0 0.0
    %278 = vmatprep.subr.mxu0 0.0
    %279 = vmatpush2.xpose.msra.mxu0 0.0
    %280 = vmatprep.subr.mxu0 0.0
    %281 = vmatpush2.xpose.msra.mxu0 0.0
    %282 = vmatprep.subr.mxu0 0.0
    %283 = vmatpush2.xpose.msra.mxu0 0.0
    %284 = vmatprep.subr.mxu0 0.0
    %285 = vmatpush2.xpose.msra.mxu0 0.0
    %286 = vmatprep.subr.mxu0 0.0
    %287 = vmatpush2.xpose.msra.mxu0 0.0
    %288 = vmatprep.subr.mxu0 0.0
    %289 = vmatpush2.xpose.msra.mxu0 0.0
    %290 = vmatprep.subr.mxu0 0.0
    %291 = vmatpush2.xpose.msra.mxu0 0.0
    %292 = vmatprep.subr.mxu0 0.0
    %293 = vmatpush2.xpose.msra.mxu0 0.0
    %294 = vmatprep.subr.mxu0 0.0
    %295 = vmatpush2.xpose.msra.mxu0 0.0
    %296 = vmatprep.subr.mxu0 0.0
    %297 = vmatpush2.xpose.msra.mxu0 0.0
    %298 = vmatprep.subr.mxu0 0.0
    %299 = vmatpush2.xpose.msra.mxu0 0.0
    %300 = vmatprep.subr.mxu0 0.0
    %301 = vmatpush2.xpose.msra.mxu0 0.0
    %302 = vmatprep.subr.mxu0 0.0
    %303 = vmatpush2.xpose.msra.mxu0 0.0
    %304 = vmatprep.subr.mxu0 0.0
    %305 = vmatpush2.xpose.msra.mxu0 0.0
    %306 = vmatprep.subr.mxu0 0.0
    %307 = vmatpush2.xpose.msra.mxu0 0.0
    %308 = vmatprep.mubr.f32.mxu0 0.0
    %309 = vmatmul.mubr.f32.gmra.mxu0 %v236
    %v310 = vpop.f32.mrf.mxu0
    %v311 = vadd.f32 0.0, %v310
    %v312 = vpop.f32.mrf.mxu0
    %313 = vmatprep.mubr.f32.mxu0 0.0
    %314 = vmatmul.mubr.f32.gmra.mxu0 %v236
    %v315 = vpop.f32.mrf.mxu0
    %v316 = vadd.f32 0.0, %v315
    %v317 = vpop.f32.mrf.mxu0
    %318 = vdwg.mxu0
    %v319 = vadd.f32 %v230, %v311
    %v320 = vadd.f32 %v233, %v316
    %v321 = vmul.f32 %v218, 2.0
    %v322 = vmul.f32 %v223, 2.0
    %v323 = vsub.f32 %v319, %v321
    %v324 = vsub.f32 %v320, %v322
    %v325 = vlaneseq
    %v326 = vand.u32 %v325, 127
    %v327 = vlaneseq
    %v328 = vshrl.u32 %v327, 7
    %v329 = vadd.s32 %v328, 8
    %v330 = vcvt.s32.f32 %v326
    %vm331 = vcmp.eq.s32.totalorder %v328, %v326
    %vm332 = vcmp.eq.s32.totalorder %v329, %v326
    %v333 = vsel %vm331, 1e+30, %v323
    %v334 = vsel %vm332, 1e+30, %v324
    %vm335 = vcmask 130048
    %v336 = vsel %vm335, %v333, inf
    %337 = vmin.xlane.f32.xlu0 %v336
    %v338 = vpop.xlane.xlu0 %337
    %v339 = vsel %vm335, %v334, inf
    %340 = vmin.xlane.f32.xlu0 %v339
    %v341 = vpop.xlane.xlu0 %340
    %vm342 = vcmp.le.f32.partialorder %v333, %v338
    %vm343 = vcmp.le.f32.partialorder %v334, %v341
    %v344 = vsel %vm342, %v330, 16.0
    %v345 = vsel %vm343, %v330, 16.0
    %v346 = vsel %vm335, %v344, inf
    %347 = vmin.xlane.f32.xlu0 %v346
    %v348 = vpop.xlane.xlu0 %347
    %v349 = vsel %vm335, %v345, inf
    %350 = vmin.xlane.f32.xlu0 %v349
    %v351 = vpop.xlane.xlu0 %350
    %vm352 = vcmp.eq.f32.partialorder %v330, %v348
    %vm353 = vcmp.eq.f32.partialorder %v330, %v351
    %v354 = vsel %vm352, 1e+30, %v333
    %v355 = vsel %vm353, 1e+30, %v334
    %v356 = vsel %vm352, 1, 0
    %v357 = vsel %vm353, 1, 0
    %v358 = vcvt.s32.f32 %v356
    %v359 = vcvt.s32.f32 %v357
    %360 = vst.msk [vmem:[#allocation2] sm:$0xff] %vm335, %v358
    %361 = vst.msk [vmem:[#allocation2 + $0x8] sm:$0xff] %vm335, %v359
    %362 = vst.msk [vmem:[#allocation3] sm:$0xff] %vm335, %v358
    %363 = vst.msk [vmem:[#allocation3 + $0x8] sm:$0xff] %vm335, %v359
    %v364 = vsel %vm335, %v354, inf
    %365 = vmin.xlane.f32.xlu0 %v364
    %v366 = vpop.xlane.xlu0 %365
    %v367 = vsel %vm335, %v355, inf
    %368 = vmin.xlane.f32.xlu0 %v367
    %v369 = vpop.xlane.xlu0 %368
    %vm370 = vcmp.le.f32.partialorder %v354, %v366
    %vm371 = vcmp.le.f32.partialorder %v355, %v369
    %v372 = vsel %vm370, %v330, 16.0
    %v373 = vsel %vm371, %v330, 16.0
    %v374 = vsel %vm335, %v372, inf
    %375 = vmin.xlane.f32.xlu0 %v374
    %v376 = vpop.xlane.xlu0 %375
    %v377 = vsel %vm335, %v373, inf
    %378 = vmin.xlane.f32.xlu0 %v377
    %v379 = vpop.xlane.xlu0 %378
    %vm380 = vcmp.eq.f32.partialorder %v330, %v376
    %vm381 = vcmp.eq.f32.partialorder %v330, %v379
    %v382 = vsel %vm380, 1e+30, %v354
    %v383 = vsel %vm381, 1e+30, %v355
    %v384 = vsel %vm380, 1, 0
    %v385 = vsel %vm381, 1, 0
    %v386 = vcvt.s32.f32 %v384
    %v387 = vcvt.s32.f32 %v385
    %388 = vst.msk [vmem:[#allocation2 + $0x10] sm:$0xff] %vm335, %v386
    %389 = vst.msk [vmem:[#allocation2 + $0x18] sm:$0xff] %vm335, %v387
    %v390 = vsel %vm335, %v382, inf
    %391 = vmin.xlane.f32.xlu0 %v390
    %v392 = vpop.xlane.xlu0 %391
    %v393 = vsel %vm335, %v383, inf
    %394 = vmin.xlane.f32.xlu0 %v393
    %v395 = vpop.xlane.xlu0 %394
    %vm396 = vcmp.le.f32.partialorder %v382, %v392
    %vm397 = vcmp.le.f32.partialorder %v383, %v395
    %v398 = vsel %vm396, %v330, 16.0
    %v399 = vsel %vm397, %v330, 16.0
    %v400 = vsel %vm335, %v398, inf
    %401 = vmin.xlane.f32.xlu0 %v400
    %v402 = vpop.xlane.xlu0 %401
    %v403 = vsel %vm335, %v399, inf
    %404 = vmin.xlane.f32.xlu0 %v403
    %v405 = vpop.xlane.xlu0 %404
    %vm406 = vcmp.eq.f32.partialorder %v330, %v402
    %vm407 = vcmp.eq.f32.partialorder %v330, %v405
    %v408 = vsel %vm406, 1e+30, %v382
    %v409 = vsel %vm407, 1e+30, %v383
    %v410 = vsel %vm406, 1, 0
    %v411 = vsel %vm407, 1, 0
    %v412 = vcvt.s32.f32 %v410
    %v413 = vcvt.s32.f32 %v411
    %414 = vst.msk [vmem:[#allocation2 + $0x20] sm:$0xff] %vm335, %v412
    %415 = vst.msk [vmem:[#allocation2 + $0x28] sm:$0xff] %vm335, %v413
    %416 = vst.msk [vmem:[#allocation3 + $0x10] sm:$0xff] %vm335, %v412
    %417 = vst.msk [vmem:[#allocation3 + $0x18] sm:$0xff] %vm335, %v413
    %v418 = vsel %vm335, %v408, inf
    %419 = vmin.xlane.f32.xlu0 %v418
    %v420 = vpop.xlane.xlu0 %419
    %v421 = vsel %vm335, %v409, inf
    %422 = vmin.xlane.f32.xlu0 %v421
    %v423 = vpop.xlane.xlu0 %422
    %vm424 = vcmp.le.f32.partialorder %v408, %v420
    %vm425 = vcmp.le.f32.partialorder %v409, %v423
    %v426 = vsel %vm424, %v330, 16.0
    %v427 = vsel %vm425, %v330, 16.0
    %v428 = vsel %vm335, %v426, inf
    %429 = vmin.xlane.f32.xlu0 %v428
    %v430 = vpop.xlane.xlu0 %429
    %v431 = vsel %vm335, %v427, inf
    %432 = vmin.xlane.f32.xlu0 %v431
    %v433 = vpop.xlane.xlu0 %432
    %vm434 = vcmp.eq.f32.partialorder %v330, %v430
    %vm435 = vcmp.eq.f32.partialorder %v330, %v433
    %v436 = vsel %vm434, 1e+30, %v408
    %v437 = vsel %vm435, 1e+30, %v409
    %v438 = vsel %vm434, 1, 0
    %v439 = vsel %vm435, 1, 0
    %v440 = vcvt.s32.f32 %v438
    %v441 = vcvt.s32.f32 %v439
    %442 = vst.msk [vmem:[#allocation2 + $0x30] sm:$0xff] %vm335, %v440
    %443 = vst.msk [vmem:[#allocation2 + $0x38] sm:$0xff] %vm335, %v441
    %v444 = vsel %vm335, %v436, inf
    %445 = vmin.xlane.f32.xlu0 %v444
    %v446 = vpop.xlane.xlu0 %445
    %v447 = vsel %vm335, %v437, inf
    %448 = vmin.xlane.f32.xlu0 %v447
    %v449 = vpop.xlane.xlu0 %448
    %vm450 = vcmp.le.f32.partialorder %v436, %v446
    %vm451 = vcmp.le.f32.partialorder %v437, %v449
    %v452 = vsel %vm450, %v330, 16.0
    %v453 = vsel %vm451, %v330, 16.0
    %v454 = vsel %vm335, %v452, inf
    %455 = vmin.xlane.f32.xlu0 %v454
    %v456 = vpop.xlane.xlu0 %455
    %v457 = vsel %vm335, %v453, inf
    %458 = vmin.xlane.f32.xlu0 %v457
    %v459 = vpop.xlane.xlu0 %458
    %vm460 = vcmp.eq.f32.partialorder %v330, %v456
    %vm461 = vcmp.eq.f32.partialorder %v330, %v459
    %v462 = vsel %vm460, 1e+30, %v436
    %v463 = vsel %vm461, 1e+30, %v437
    %v464 = vsel %vm460, 1, 0
    %v465 = vsel %vm461, 1, 0
    %v466 = vcvt.s32.f32 %v464
    %v467 = vcvt.s32.f32 %v465
    %468 = vst.msk [vmem:[#allocation3 + $0x20] sm:$0xff] %vm335, %v466
    %469 = vst.msk [vmem:[#allocation3 + $0x28] sm:$0xff] %vm335, %v467
    %v470 = vsel %vm335, %v462, inf
    %471 = vmin.xlane.f32.xlu0 %v470
    %v472 = vpop.xlane.xlu0 %471
    %v473 = vsel %vm335, %v463, inf
    %474 = vmin.xlane.f32.xlu0 %v473
    %v475 = vpop.xlane.xlu0 %474
    %vm476 = vcmp.le.f32.partialorder %v462, %v472
    %vm477 = vcmp.le.f32.partialorder %v463, %v475
    %v478 = vsel %vm476, %v330, 16.0
    %v479 = vsel %vm477, %v330, 16.0
    %v480 = vsel %vm335, %v478, inf
    %481 = vmin.xlane.f32.xlu0 %v480
    %v482 = vpop.xlane.xlu0 %481
    %v483 = vsel %vm335, %v479, inf
    %484 = vmin.xlane.f32.xlu0 %v483
    %v485 = vpop.xlane.xlu0 %484
    %vm486 = vcmp.eq.f32.partialorder %v330, %v482
    %vm487 = vcmp.eq.f32.partialorder %v330, %v485
    %v488 = vsel %vm486, 1e+30, %v462
    %v489 = vsel %vm487, 1e+30, %v463
    %v490 = vsel %vm335, %v488, inf
    %491 = vmin.xlane.f32.xlu0 %v490
    %v492 = vpop.xlane.xlu0 %491
    %v493 = vsel %vm335, %v489, inf
    %494 = vmin.xlane.f32.xlu0 %v493
    %v495 = vpop.xlane.xlu0 %494
    %vm496 = vcmp.le.f32.partialorder %v488, %v492
    %vm497 = vcmp.le.f32.partialorder %v489, %v495
    %v498 = vsel %vm496, %v330, 16.0
    %v499 = vsel %vm497, %v330, 16.0
    %v500 = vsel %vm335, %v498, inf
    %501 = vmin.xlane.f32.xlu0 %v500
    %v502 = vpop.xlane.xlu0 %501
    %v503 = vsel %vm335, %v499, inf
    %504 = vmin.xlane.f32.xlu0 %v503
    %v505 = vpop.xlane.xlu0 %504
    %vm506 = vcmp.eq.f32.partialorder %v330, %v502
    %vm507 = vcmp.eq.f32.partialorder %v330, %v505
    %v508 = vsel %vm506, 1, 0
    %v509 = vsel %vm507, 1, 0
    %v510 = vcvt.s32.f32 %v508
    %v511 = vcvt.s32.f32 %v509
    %512 = vst.msk [vmem:[#allocation3 + $0x30] sm:$0xff] %vm335, %v510
    %513 = vst.msk [vmem:[#allocation3 + $0x38] sm:$0xff] %vm335, %v511
    %v514 = vld [vmem:[#allocation2] sm:$0xff]
    %v515 = vld [vmem:[#allocation2 + $0x8] sm:$0xff]
    %v516 = vld [vmem:[#allocation2 + $0x10] sm:$0xff]
    %v517 = vld [vmem:[#allocation2 + $0x18] sm:$0xff]
    %v518 = vld [vmem:[#allocation2 + $0x20] sm:$0xff]
    %v519 = vld [vmem:[#allocation2 + $0x28] sm:$0xff]
    %v520 = vld [vmem:[#allocation2 + $0x30] sm:$0xff]
    %v521 = vld [vmem:[#allocation2 + $0x38] sm:$0xff]
    %v522 = vld [vmem:[#allocation3] sm:$0xff]
    %v523 = vld [vmem:[#allocation3 + $0x8] sm:$0xff]
    %v524 = vld [vmem:[#allocation3 + $0x10] sm:$0xff]
    %v525 = vld [vmem:[#allocation3 + $0x18] sm:$0xff]
    %v526 = vld [vmem:[#allocation3 + $0x20] sm:$0xff]
    %v527 = vld [vmem:[#allocation3 + $0x28] sm:$0xff]
    %v528 = vld [vmem:[#allocation3 + $0x30] sm:$0xff]
    %v529 = vld [vmem:[#allocation3 + $0x38] sm:$0xff]
    %v530 = vld [vmem:[%s20] sm:$0x7]
    %v531 = vld [vmem:[#allocation8] sm:$0x7]
    %v532 = vld [vmem:[#allocation6] sm:$0x1]
    %v533 = vsub.f32 %v530, %v531
    %v534 = vpack.c.bf16 %v143, %v142
    %v535 = vpack.c.bf16 %v533, %v533
    %v537 = vlaneseq
    %v538 = vshrl.u32 %v537, 7
    %v539 = vsub.s32 0, %v538
    %v540 = vrot.slane %v532, %v539
    %v543 = vsel %vm144, %v534, 0
    %vm545 = vcmask 1040384
    %vm546 = vcmask 1041408
    %v547 = vsel %vm545, 4294967295, 65535
    %v548 = vsel %vm546, %v547, 0
    %v550 = vand.u32 %v535, %v548
    %552 = vmatprep.subr.bf16.mxu0 0
    %553 = vmatpush1.bf16.msra.mxu0 0
    %554 = vmatprep.subr.bf16.mxu0 0
    %555 = vmatpush1.bf16.msra.mxu0 0
    %556 = vmatprep.subr.bf16.mxu0 0
    %557 = vmatpush1.bf16.msra.mxu0 0
    %558 = vmatprep.subr.bf16.mxu0 0
    %559 = vmatpush1.bf16.msra.mxu0 0
    %560 = vmatprep.subr.bf16.mxu0 0
    %561 = vmatpush1.bf16.msra.mxu0 0
    %562 = vmatprep.subr.bf16.mxu0 0
    %563 = vmatpush1.bf16.msra.mxu0 0
    %564 = vmatprep.subr.bf16.mxu0 0
    %565 = vmatpush1.bf16.msra.mxu0 0
    %566 = vmatprep.subr.bf16.mxu0 0
    %567 = vmatpush1.bf16.msra.mxu0 %v550
    %568 = vmatprep.subr.bf16.mxu0 0
    %569 = vmatpush2.bf16.msra.mxu0 0
    %570 = vmatprep.subr.bf16.mxu0 0
    %571 = vmatpush2.bf16.msra.mxu0 0
    %572 = vmatprep.subr.bf16.mxu0 0
    %573 = vmatpush2.bf16.msra.mxu0 0
    %574 = vmatprep.subr.bf16.mxu0 0
    %575 = vmatpush2.bf16.msra.mxu0 0
    %576 = vmatprep.subr.bf16.mxu0 0
    %577 = vmatpush2.bf16.msra.mxu0 0
    %578 = vmatprep.subr.bf16.mxu0 0
    %579 = vmatpush2.bf16.msra.mxu0 0
    %580 = vmatprep.subr.bf16.mxu0 0
    %581 = vmatpush2.bf16.msra.mxu0 0
    %582 = vmatprep.subr.bf16.mxu0 0
    %583 = vmatpush2.bf16.msra.mxu0 0
    %584 = vmatprep.mubr.bf16.mxu0 0
    %585 = vmatmul.mubr.bf16.gmra.mxu0 %v543
    %v586 = vpop.f32.mrf.mxu0
    %v587 = vadd.f32 %v540, %v586
    %v588 = vpop.f32.mrf.mxu0
    %v589 = vpop.f32.mrf.mxu0
    %v590 = vadd.f32 %v540, %v589
    %v591 = vpop.f32.mrf.mxu0
    %592 = vdwg.mxu0
    %v593 = vpack.c.bf16 %v531, %v531
    %v595 = vand.u32 %v593, %v548
    %597 = vmatprep.subr.bf16.mxu0 0
    %598 = vmatpush1.bf16.msra.mxu0 0
    %599 = vmatprep.subr.bf16.mxu0 0
    %600 = vmatpush1.bf16.msra.mxu0 0
    %601 = vmatprep.subr.bf16.mxu0 0
    %602 = vmatpush1.bf16.msra.mxu0 0
    %603 = vmatprep.subr.bf16.mxu0 0
    %604 = vmatpush1.bf16.msra.mxu0 0
    %605 = vmatprep.subr.bf16.mxu0 0
    %606 = vmatpush1.bf16.msra.mxu0 0
    %607 = vmatprep.subr.bf16.mxu0 0
    %608 = vmatpush1.bf16.msra.mxu0 0
    %609 = vmatprep.subr.bf16.mxu0 0
    %610 = vmatpush1.bf16.msra.mxu0 0
    %611 = vmatprep.subr.bf16.mxu0 0
    %612 = vmatpush1.bf16.msra.mxu0 %v595
    %613 = vmatprep.subr.bf16.mxu0 0
    %614 = vmatpush2.bf16.msra.mxu0 0
    %615 = vmatprep.subr.bf16.mxu0 0
    %616 = vmatpush2.bf16.msra.mxu0 0
    %617 = vmatprep.subr.bf16.mxu0 0
    %618 = vmatpush2.bf16.msra.mxu0 0
    %619 = vmatprep.subr.bf16.mxu0 0
    %620 = vmatpush2.bf16.msra.mxu0 0
    %621 = vmatprep.subr.bf16.mxu0 0
    %622 = vmatpush2.bf16.msra.mxu0 0
    %623 = vmatprep.subr.bf16.mxu0 0
    %624 = vmatpush2.bf16.msra.mxu0 0
    %625 = vmatprep.subr.bf16.mxu0 0
    %626 = vmatpush2.bf16.msra.mxu0 0
    %627 = vmatprep.subr.bf16.mxu0 0
    %628 = vmatpush2.bf16.msra.mxu0 0
    %629 = vmatprep.mubr.bf16.mxu0 0
    %630 = vmatmul.mubr.bf16.gmra.mxu0 %v543
    %v631 = vpop.f32.mrf.mxu0
    %v632 = vadd.f32 0.0, %v631
    %v633 = vpop.f32.mrf.mxu0
    %v634 = vpop.f32.mrf.mxu0
    %v635 = vadd.f32 0.0, %v634
    %v636 = vpop.f32.mrf.mxu0
    %637 = vdwg.mxu0
    %v639 = vsel %vm335, %v514, 0
    %v642 = vsel %vm335, %v515, 0
    %v645 = vsel %vm335, %v516, 0
    %v648 = vsel %vm335, %v517, 0
    %v651 = vsel %vm335, %v518, 0
    %v654 = vsel %vm335, %v519, 0
    %v657 = vsel %vm335, %v520, 0
    %v660 = vsel %vm335, %v521, 0
    %662 = vmatprep.subr.mxu0 0.0
    %663 = vmatpush1.msra.mxu0 0.0
    %664 = vmatprep.subr.mxu0 0.0
    %665 = vmatpush1.msra.mxu0 0.0
    %666 = vmatprep.subr.mxu0 0.0
    %667 = vmatpush1.msra.mxu0 0.0
    %668 = vmatprep.subr.mxu0 0.0
    %669 = vmatpush1.msra.mxu0 0.0
    %670 = vmatprep.subr.mxu0 0.0
    %671 = vmatpush1.msra.mxu0 0.0
    %672 = vmatprep.subr.mxu0 0.0
    %673 = vmatpush1.msra.mxu0 0.0
    %674 = vmatprep.subr.mxu0 0.0
    %675 = vmatpush1.msra.mxu0 0.0
    %676 = vmatprep.subr.mxu0 0.0
    %677 = vmatpush1.msra.mxu0 0.0
    %678 = vmatprep.subr.mxu0 0.0
    %679 = vmatpush1.msra.mxu0 0.0
    %680 = vmatprep.subr.mxu0 0.0
    %681 = vmatpush1.msra.mxu0 0.0
    %682 = vmatprep.subr.mxu0 0.0
    %683 = vmatpush1.msra.mxu0 0.0
    %684 = vmatprep.subr.mxu0 0.0
    %685 = vmatpush1.msra.mxu0 0.0
    %686 = vmatprep.subr.mxu0 0.0
    %687 = vmatpush1.msra.mxu0 0.0
    %688 = vmatprep.subr.mxu0 0.0
    %689 = vmatpush1.msra.mxu0 0.0
    %690 = vmatprep.subr.mxu0 0.0
    %691 = vmatpush1.msra.mxu0 %v635
    %692 = vmatprep.subr.mxu0 0.0
    %693 = vmatpush1.msra.mxu0 %v632
    %694 = vmatprep.subr.mxu0 0.0
    %695 = vmatpush2.msra.mxu0 0.0
    %696 = vmatprep.subr.mxu0 0.0
    %697 = vmatpush2.msra.mxu0 0.0
    %698 = vmatprep.subr.mxu0 0.0
    %699 = vmatpush2.msra.mxu0 0.0
    %700 = vmatprep.subr.mxu0 0.0
    %701 = vmatpush2.msra.mxu0 0.0
    %702 = vmatprep.subr.mxu0 0.0
    %703 = vmatpush2.msra.mxu0 0.0
    %704 = vmatprep.subr.mxu0 0.0
    %705 = vmatpush2.msra.mxu0 0.0
    %706 = vmatprep.subr.mxu0 0.0
    %707 = vmatpush2.msra.mxu0 0.0
    %708 = vmatprep.subr.mxu0 0.0
    %709 = vmatpush2.msra.mxu0 0.0
    %710 = vmatprep.subr.mxu0 0.0
    %711 = vmatpush2.msra.mxu0 0.0
    %712 = vmatprep.subr.mxu0 0.0
    %713 = vmatpush2.msra.mxu0 0.0
    %714 = vmatprep.subr.mxu0 0.0
    %715 = vmatpush2.msra.mxu0 0.0
    %716 = vmatprep.subr.mxu0 0.0
    %717 = vmatpush2.msra.mxu0 0.0
    %718 = vmatprep.subr.mxu0 0.0
    %719 = vmatpush2.msra.mxu0 0.0
    %720 = vmatprep.subr.mxu0 0.0
    %721 = vmatpush2.msra.mxu0 0.0
    %722 = vmatprep.subr.mxu0 0.0
    %723 = vmatpush2.msra.mxu0 0.0
    %724 = vmatprep.subr.mxu0 0.0
    %725 = vmatpush2.msra.mxu0 0.0
    %726 = vmatprep.mubr.f32.mxu0 0.0
    %727 = vmatmul.mubr.f32.gmra.mxu0 %v639
    %v728 = vpop.f32.mrf.mxu0
    %v729 = vadd.f32 0.0, %v728
    %v730 = vpop.f32.mrf.mxu0
    %731 = vmatprep.mubr.f32.mxu0 0.0
    %732 = vmatmul.mubr.f32.gmra.mxu0 %v642
    %v733 = vpop.f32.mrf.mxu0
    %v734 = vadd.f32 0.0, %v733
    %v735 = vpop.f32.mrf.mxu0
    %736 = vmatprep.mubr.f32.mxu0 0.0
    %737 = vmatmul.mubr.f32.gmra.mxu0 %v645
    %v738 = vpop.f32.mrf.mxu0
    %v739 = vadd.f32 0.0, %v738
    %v740 = vpop.f32.mrf.mxu0
    %741 = vmatprep.mubr.f32.mxu0 0.0
    %742 = vmatmul.mubr.f32.gmra.mxu0 %v648
    %v743 = vpop.f32.mrf.mxu0
    %v744 = vadd.f32 0.0, %v743
    %v745 = vpop.f32.mrf.mxu0
    %746 = vmatprep.mubr.f32.mxu0 0.0
    %747 = vmatmul.mubr.f32.gmra.mxu0 %v651
    %v748 = vpop.f32.mrf.mxu0
    %v749 = vadd.f32 0.0, %v748
    %v750 = vpop.f32.mrf.mxu0
    %751 = vmatprep.mubr.f32.mxu0 0.0
    %752 = vmatmul.mubr.f32.gmra.mxu0 %v654
    %v753 = vpop.f32.mrf.mxu0
    %v754 = vadd.f32 0.0, %v753
    %v755 = vpop.f32.mrf.mxu0
    %756 = vmatprep.mubr.f32.mxu0 0.0
    %757 = vmatmul.mubr.f32.gmra.mxu0 %v657
    %v758 = vpop.f32.mrf.mxu0
    %v759 = vadd.f32 0.0, %v758
    %v760 = vpop.f32.mrf.mxu0
    %761 = vmatprep.mubr.f32.mxu0 0.0
    %762 = vmatmul.mubr.f32.gmra.mxu0 %v660
    %v763 = vpop.f32.mrf.mxu0
    %v764 = vadd.f32 0.0, %v763
    %v765 = vpop.f32.mrf.mxu0
    %766 = vdwg.mxu0
    %v767 = vadd.f32 %v587, %v729
    %v768 = vadd.f32 %v590, %v734
    %vm769 = vcmp.gt.f32.partialorder %v767, 0.0
    %vm770 = vcmp.gt.f32.partialorder %v768, 0.0
    %v771 = vmul.f32 %v767, 0.2
    %v772 = vmul.f32 %v768, 0.2
    %v773 = vsel %vm769, %v767, %v771
    %v774 = vsel %vm770, %v768, %v772
    %v775 = vadd.f32 %v587, %v739
    %v776 = vadd.f32 %v590, %v744
    %vm777 = vcmp.gt.f32.partialorder %v775, 0.0
    %vm778 = vcmp.gt.f32.partialorder %v776, 0.0
    %v779 = vmul.f32 %v775, 0.2
    %v780 = vmul.f32 %v776, 0.2
    %v781 = vsel %vm777, %v775, %v779
    %v782 = vsel %vm778, %v776, %v780
    %v783 = vmax.f32 %v773, %v781
    %v784 = vmax.f32 %v774, %v782
    %v785 = vadd.f32 %v587, %v749
    %v786 = vadd.f32 %v590, %v754
    %vm787 = vcmp.gt.f32.partialorder %v785, 0.0
    %vm788 = vcmp.gt.f32.partialorder %v786, 0.0
    %v789 = vmul.f32 %v785, 0.2
    %v790 = vmul.f32 %v786, 0.2
    %v791 = vsel %vm787, %v785, %v789
    %v792 = vsel %vm788, %v786, %v790
    %v793 = vmax.f32 %v783, %v791
    %v794 = vmax.f32 %v784, %v792
    %v795 = vadd.f32 %v587, %v759
    %v796 = vadd.f32 %v590, %v764
    %vm797 = vcmp.gt.f32.partialorder %v795, 0.0
    %vm798 = vcmp.gt.f32.partialorder %v796, 0.0
    %v799 = vmul.f32 %v795, 0.2
    %v800 = vmul.f32 %v796, 0.2
    %v801 = vsel %vm797, %v795, %v799
    %v802 = vsel %vm798, %v796, %v800
    %v803 = vmax.f32 %v793, %v801
    %v804 = vmax.f32 %v794, %v802
    %v805 = vld [vmem:[%s2] sm:$0xff]
    %v806 = vld [vmem:[%s2 + $0x8] sm:$0xff]
    %v807 = vld [vmem:[%s2 + $0x10] sm:$0xff]
    %v808 = vld [vmem:[%s2 + $0x18] sm:$0xff]
    %v809 = vld [vmem:[%s3] sm:$0xff]
    %v810 = vld [vmem:[%s3 + $0x8] sm:$0xff]
    %v811 = vld [vmem:[%s3 + $0x10] sm:$0xff]
    %v812 = vld [vmem:[%s3 + $0x18] sm:$0xff]
    %v813 = vld [vmem:[%s1] sm:$0x1]
    %v814 = vsub.f32 %v805, %v809
    %v815 = vsub.f32 %v806, %v810
    %v816 = vsub.f32 %v807, %v811
    %v817 = vsub.f32 %v808, %v812
    %v818 = vpack.c.bf16 %v804, %v803
    %v819 = vpack.c.bf16 %v815, %v814
    %v820 = vpack.c.bf16 %v817, %v816
    %v822 = vlaneseq
    %v823 = vshrl.u32 %v822, 7
    %v824 = vsub.s32 0, %v823
    %v825 = vrot.slane %v813, %v824
    %vm827 = vcmask 261120
    %v829 = vsel %vm827, %v818, 0
    %831 = vmatprep.subr.bf16.mxu0 0
    %832 = vmatpush1.bf16.msra.mxu0 0
    %833 = vmatprep.subr.bf16.mxu0 0
    %834 = vmatpush1.bf16.msra.mxu0 0
    %835 = vmatprep.subr.bf16.mxu0 0
    %836 = vmatpush1.bf16.msra.mxu0 0
    %837 = vmatprep.subr.bf16.mxu0 0
    %838 = vmatpush1.bf16.msra.mxu0 0
    %839 = vmatprep.subr.bf16.mxu0 0
    %840 = vmatpush1.bf16.msra.mxu0 0
    %841 = vmatprep.subr.bf16.mxu0 0
    %842 = vmatpush1.bf16.msra.mxu0 0
    %843 = vmatprep.subr.bf16.mxu0 0
    %844 = vmatpush1.bf16.msra.mxu0 %v820
    %845 = vmatprep.subr.bf16.mxu0 0
    %846 = vmatpush1.bf16.msra.mxu0 %v819
    %847 = vmatprep.subr.bf16.mxu0 0
    %848 = vmatpush2.bf16.msra.mxu0 0
    %849 = vmatprep.subr.bf16.mxu0 0
    %850 = vmatpush2.bf16.msra.mxu0 0
    %851 = vmatprep.subr.bf16.mxu0 0
    %852 = vmatpush2.bf16.msra.mxu0 0
    %853 = vmatprep.subr.bf16.mxu0 0
    %854 = vmatpush2.bf16.msra.mxu0 0
    %855 = vmatprep.subr.bf16.mxu0 0
    %856 = vmatpush2.bf16.msra.mxu0 0
    %857 = vmatprep.subr.bf16.mxu0 0
    %858 = vmatpush2.bf16.msra.mxu0 0
    %859 = vmatprep.subr.bf16.mxu0 0
    %860 = vmatpush2.bf16.msra.mxu0 0
    %861 = vmatprep.subr.bf16.mxu0 0
    %862 = vmatpush2.bf16.msra.mxu0 0
    %863 = vmatprep.mubr.bf16.mxu0 0
    %864 = vmatmul.mubr.bf16.gmra.mxu0 %v829
    %v865 = vpop.f32.mrf.mxu0
    %v866 = vadd.f32 %v825, %v865
    %v867 = vpop.f32.mrf.mxu0
    %v868 = vpop.f32.mrf.mxu0
    %v869 = vadd.f32 %v825, %v868
    %v870 = vpop.f32.mrf.mxu0
    %871 = vdwg.mxu0
    %v872 = vpack.c.bf16 %v810, %v809
    %v873 = vpack.c.bf16 %v812, %v811
    %874 = vmatprep.subr.bf16.mxu0 0
    %875 = vmatpush1.bf16.msra.mxu0 0
    %876 = vmatprep.subr.bf16.mxu0 0
    %877 = vmatpush1.bf16.msra.mxu0 0
    %878 = vmatprep.subr.bf16.mxu0 0
    %879 = vmatpush1.bf16.msra.mxu0 0
    %880 = vmatprep.subr.bf16.mxu0 0
    %881 = vmatpush1.bf16.msra.mxu0 0
    %882 = vmatprep.subr.bf16.mxu0 0
    %883 = vmatpush1.bf16.msra.mxu0 0
    %884 = vmatprep.subr.bf16.mxu0 0
    %885 = vmatpush1.bf16.msra.mxu0 0
    %886 = vmatprep.subr.bf16.mxu0 0
    %887 = vmatpush1.bf16.msra.mxu0 %v873
    %888 = vmatprep.subr.bf16.mxu0 0
    %889 = vmatpush1.bf16.msra.mxu0 %v872
    %890 = vmatprep.subr.bf16.mxu0 0
    %891 = vmatpush2.bf16.msra.mxu0 0
    %892 = vmatprep.subr.bf16.mxu0 0
    %893 = vmatpush2.bf16.msra.mxu0 0
    %894 = vmatprep.subr.bf16.mxu0 0
    %895 = vmatpush2.bf16.msra.mxu0 0
    %896 = vmatprep.subr.bf16.mxu0 0
    %897 = vmatpush2.bf16.msra.mxu0 0
    %898 = vmatprep.subr.bf16.mxu0 0
    %899 = vmatpush2.bf16.msra.mxu0 0
    %900 = vmatprep.subr.bf16.mxu0 0
    %901 = vmatpush2.bf16.msra.mxu0 0
    %902 = vmatprep.subr.bf16.mxu0 0
    %903 = vmatpush2.bf16.msra.mxu0 0
    %904 = vmatprep.subr.bf16.mxu0 0
    %905 = vmatpush2.bf16.msra.mxu0 0
    %906 = vmatprep.mubr.bf16.mxu0 0
    %907 = vmatmul.mubr.bf16.gmra.mxu0 %v829
    %v908 = vpop.f32.mrf.mxu0
    %v909 = vadd.f32 0.0, %v908
    %v910 = vpop.f32.mrf.mxu0
    %v911 = vpop.f32.mrf.mxu0
    %v912 = vadd.f32 0.0, %v911
    %v913 = vpop.f32.mrf.mxu0
    %914 = vdwg.mxu0
    %915 = vmatprep.subr.mxu0 0.0
    %916 = vmatpush1.msra.mxu0 0.0
    %917 = vmatprep.subr.mxu0 0.0
    %918 = vmatpush1.msra.mxu0 0.0
    %919 = vmatprep.subr.mxu0 0.0
    %920 = vmatpush1.msra.mxu0 0.0
    %921 = vmatprep.subr.mxu0 0.0
    %922 = vmatpush1.msra.mxu0 0.0
    %923 = vmatprep.subr.mxu0 0.0
    %924 = vmatpush1.msra.mxu0 0.0
    %925 = vmatprep.subr.mxu0 0.0
    %926 = vmatpush1.msra.mxu0 0.0
    %927 = vmatprep.subr.mxu0 0.0
    %928 = vmatpush1.msra.mxu0 0.0
    %929 = vmatprep.subr.mxu0 0.0
    %930 = vmatpush1.msra.mxu0 0.0
    %931 = vmatprep.subr.mxu0 0.0
    %932 = vmatpush1.msra.mxu0 0.0
    %933 = vmatprep.subr.mxu0 0.0
    %934 = vmatpush1.msra.mxu0 0.0
    %935 = vmatprep.subr.mxu0 0.0
    %936 = vmatpush1.msra.mxu0 0.0
    %937 = vmatprep.subr.mxu0 0.0
    %938 = vmatpush1.msra.mxu0 0.0
    %939 = vmatprep.subr.mxu0 0.0
    %940 = vmatpush1.msra.mxu0 0.0
    %941 = vmatprep.subr.mxu0 0.0
    %942 = vmatpush1.msra.mxu0 0.0
    %943 = vmatprep.subr.mxu0 0.0
    %944 = vmatpush1.msra.mxu0 %v912
    %945 = vmatprep.subr.mxu0 0.0
    %946 = vmatpush1.msra.mxu0 %v909
    %947 = vmatprep.subr.mxu0 0.0
    %948 = vmatpush2.msra.mxu0 0.0
    %949 = vmatprep.subr.mxu0 0.0
    %950 = vmatpush2.msra.mxu0 0.0
    %951 = vmatprep.subr.mxu0 0.0
    %952 = vmatpush2.msra.mxu0 0.0
    %953 = vmatprep.subr.mxu0 0.0
    %954 = vmatpush2.msra.mxu0 0.0
    %955 = vmatprep.subr.mxu0 0.0
    %956 = vmatpush2.msra.mxu0 0.0
    %957 = vmatprep.subr.mxu0 0.0
    %958 = vmatpush2.msra.mxu0 0.0
    %959 = vmatprep.subr.mxu0 0.0
    %960 = vmatpush2.msra.mxu0 0.0
    %961 = vmatprep.subr.mxu0 0.0
    %962 = vmatpush2.msra.mxu0 0.0
    %963 = vmatprep.subr.mxu0 0.0
    %964 = vmatpush2.msra.mxu0 0.0
    %965 = vmatprep.subr.mxu0 0.0
    %966 = vmatpush2.msra.mxu0 0.0
    %967 = vmatprep.subr.mxu0 0.0
    %968 = vmatpush2.msra.mxu0 0.0
    %969 = vmatprep.subr.mxu0 0.0
    %970 = vmatpush2.msra.mxu0 0.0
    %971 = vmatprep.subr.mxu0 0.0
    %972 = vmatpush2.msra.mxu0 0.0
    %973 = vmatprep.subr.mxu0 0.0
    %974 = vmatpush2.msra.mxu0 0.0
    %975 = vmatprep.subr.mxu0 0.0
    %976 = vmatpush2.msra.mxu0 0.0
    %977 = vmatprep.subr.mxu0 0.0
    %978 = vmatpush2.msra.mxu0 0.0
    %979 = vmatprep.mubr.f32.mxu0 0.0
    %980 = vmatmul.mubr.f32.gmra.mxu0 %v639
    %v981 = vpop.f32.mrf.mxu0
    %v982 = vadd.f32 0.0, %v981
    %v983 = vpop.f32.mrf.mxu0
    %984 = vmatprep.mubr.f32.mxu0 0.0
    %985 = vmatmul.mubr.f32.gmra.mxu0 %v642
    %v986 = vpop.f32.mrf.mxu0
    %v987 = vadd.f32 0.0, %v986
    %v988 = vpop.f32.mrf.mxu0
    %989 = vmatprep.mubr.f32.mxu0 0.0
    %990 = vmatmul.mubr.f32.gmra.mxu0 %v645
    %v991 = vpop.f32.mrf.mxu0
    %v992 = vadd.f32 0.0, %v991
    %v993 = vpop.f32.mrf.mxu0
    %994 = vmatprep.mubr.f32.mxu0 0.0
    %995 = vmatmul.mubr.f32.gmra.mxu0 %v648
    %v996 = vpop.f32.mrf.mxu0
    %v997 = vadd.f32 0.0, %v996
    %v998 = vpop.f32.mrf.mxu0
    %999 = vmatprep.mubr.f32.mxu0 0.0
    %1000 = vmatmul.mubr.f32.gmra.mxu0 %v651
    %v1001 = vpop.f32.mrf.mxu0
    %v1002 = vadd.f32 0.0, %v1001
    %v1003 = vpop.f32.mrf.mxu0
    %1004 = vmatprep.mubr.f32.mxu0 0.0
    %1005 = vmatmul.mubr.f32.gmra.mxu0 %v654
    %v1006 = vpop.f32.mrf.mxu0
    %v1007 = vadd.f32 0.0, %v1006
    %v1008 = vpop.f32.mrf.mxu0
    %1009 = vmatprep.mubr.f32.mxu0 0.0
    %1010 = vmatmul.mubr.f32.gmra.mxu0 %v657
    %v1011 = vpop.f32.mrf.mxu0
    %v1012 = vadd.f32 0.0, %v1011
    %v1013 = vpop.f32.mrf.mxu0
    %1014 = vmatprep.mubr.f32.mxu0 0.0
    %1015 = vmatmul.mubr.f32.gmra.mxu0 %v660
    %v1016 = vpop.f32.mrf.mxu0
    %v1017 = vadd.f32 0.0, %v1016
    %v1018 = vpop.f32.mrf.mxu0
    %1019 = vdwg.mxu0
    %v1020 = vadd.f32 %v866, %v982
    %v1021 = vadd.f32 %v869, %v987
    %vm1022 = vcmp.gt.f32.partialorder %v1020, 0.0
    %vm1023 = vcmp.gt.f32.partialorder %v1021, 0.0
    %v1024 = vmul.f32 %v1020, 0.2
    %v1025 = vmul.f32 %v1021, 0.2
    %v1026 = vsel %vm1022, %v1020, %v1024
    %v1027 = vsel %vm1023, %v1021, %v1025
    %v1028 = vadd.f32 %v866, %v992
    %v1029 = vadd.f32 %v869, %v997
    %vm1030 = vcmp.gt.f32.partialorder %v1028, 0.0
    %vm1031 = vcmp.gt.f32.partialorder %v1029, 0.0
    %v1032 = vmul.f32 %v1028, 0.2
    %v1033 = vmul.f32 %v1029, 0.2
    %v1034 = vsel %vm1030, %v1028, %v1032
    %v1035 = vsel %vm1031, %v1029, %v1033
    %v1036 = vmax.f32 %v1026, %v1034
    %v1037 = vmax.f32 %v1027, %v1035
    %v1038 = vadd.f32 %v866, %v1002
    %v1039 = vadd.f32 %v869, %v1007
    %vm1040 = vcmp.gt.f32.partialorder %v1038, 0.0
    %vm1041 = vcmp.gt.f32.partialorder %v1039, 0.0
    %v1042 = vmul.f32 %v1038, 0.2
    %v1043 = vmul.f32 %v1039, 0.2
    %v1044 = vsel %vm1040, %v1038, %v1042
    %v1045 = vsel %vm1041, %v1039, %v1043
    %v1046 = vmax.f32 %v1036, %v1044
    %v1047 = vmax.f32 %v1037, %v1045
    %v1048 = vadd.f32 %v866, %v1012
    %v1049 = vadd.f32 %v869, %v1017
    %vm1050 = vcmp.gt.f32.partialorder %v1048, 0.0
    %vm1051 = vcmp.gt.f32.partialorder %v1049, 0.0
    %v1052 = vmul.f32 %v1048, 0.2
    %v1053 = vmul.f32 %v1049, 0.2
    %v1054 = vsel %vm1050, %v1048, %v1052
    %v1055 = vsel %vm1051, %v1049, %v1053
    %v1056 = vmax.f32 %v1046, %v1054
    %v1057 = vmax.f32 %v1047, %v1055
    %v1058 = vadd.f32 %v803, %v1056
    %v1059 = vadd.f32 %v804, %v1057
    %v1060 = vld [vmem:[%s5] sm:$0xff]
    %v1061 = vld [vmem:[%s5 + $0x8] sm:$0xff]
    %v1062 = vld [vmem:[%s5 + $0x10] sm:$0xff]
    %v1063 = vld [vmem:[%s5 + $0x18] sm:$0xff]
    %v1064 = vld [vmem:[%s6] sm:$0xff]
    %v1065 = vld [vmem:[%s6 + $0x8] sm:$0xff]
    %v1066 = vld [vmem:[%s6 + $0x10] sm:$0xff]
    %v1067 = vld [vmem:[%s6 + $0x18] sm:$0xff]
    %v1068 = vld [vmem:[%s4] sm:$0x1]
    %v1069 = vsub.f32 %v1060, %v1064
    %v1070 = vsub.f32 %v1061, %v1065
    %v1071 = vsub.f32 %v1062, %v1066
    %v1072 = vsub.f32 %v1063, %v1067
    %v1073 = vpack.c.bf16 %v1059, %v1058
    %v1074 = vpack.c.bf16 %v1070, %v1069
    %v1075 = vpack.c.bf16 %v1072, %v1071
    %v1077 = vlaneseq
    %v1078 = vshrl.u32 %v1077, 7
    %v1079 = vsub.s32 0, %v1078
    %v1080 = vrot.slane %v1068, %v1079
    %v1083 = vsel %vm827, %v1073, 0
    %1085 = vmatprep.subr.bf16.mxu0 0
    %1086 = vmatpush1.bf16.msra.mxu0 0
    %1087 = vmatprep.subr.bf16.mxu0 0
    %1088 = vmatpush1.bf16.msra.mxu0 0
    %1089 = vmatprep.subr.bf16.mxu0 0
    %1090 = vmatpush1.bf16.msra.mxu0 0
    %1091 = vmatprep.subr.bf16.mxu0 0
    %1092 = vmatpush1.bf16.msra.mxu0 0
    %1093 = vmatprep.subr.bf16.mxu0 0
    %1094 = vmatpush1.bf16.msra.mxu0 0
    %1095 = vmatprep.subr.bf16.mxu0 0
    %1096 = vmatpush1.bf16.msra.mxu0 0
    %1097 = vmatprep.subr.bf16.mxu0 0
    %1098 = vmatpush1.bf16.msra.mxu0 %v1075
    %1099 = vmatprep.subr.bf16.mxu0 0
    %1100 = vmatpush1.bf16.msra.mxu0 %v1074
    %1101 = vmatprep.subr.bf16.mxu0 0
    %1102 = vmatpush2.bf16.msra.mxu0 0
    %1103 = vmatprep.subr.bf16.mxu0 0
    %1104 = vmatpush2.bf16.msra.mxu0 0
    %1105 = vmatprep.subr.bf16.mxu0 0
    %1106 = vmatpush2.bf16.msra.mxu0 0
    %1107 = vmatprep.subr.bf16.mxu0 0
    %1108 = vmatpush2.bf16.msra.mxu0 0
    %1109 = vmatprep.subr.bf16.mxu0 0
    %1110 = vmatpush2.bf16.msra.mxu0 0
    %1111 = vmatprep.subr.bf16.mxu0 0
    %1112 = vmatpush2.bf16.msra.mxu0 0
    %1113 = vmatprep.subr.bf16.mxu0 0
    %1114 = vmatpush2.bf16.msra.mxu0 0
    %1115 = vmatprep.subr.bf16.mxu0 0
    %1116 = vmatpush2.bf16.msra.mxu0 0
    %1117 = vmatprep.mubr.bf16.mxu0 0
    %1118 = vmatmul.mubr.bf16.gmra.mxu0 %v1083
    %v1119 = vpop.f32.mrf.mxu0
    %v1120 = vadd.f32 %v1080, %v1119
    %v1121 = vpop.f32.mrf.mxu0
    %v1122 = vpop.f32.mrf.mxu0
    %v1123 = vadd.f32 %v1080, %v1122
    %v1124 = vpop.f32.mrf.mxu0
    %1125 = vdwg.mxu0
    %v1126 = vpack.c.bf16 %v1065, %v1064
    %v1127 = vpack.c.bf16 %v1067, %v1066
    %1128 = vmatprep.subr.bf16.mxu0 0
    %1129 = vmatpush1.bf16.msra.mxu0 0
    %1130 = vmatprep.subr.bf16.mxu0 0
    %1131 = vmatpush1.bf16.msra.mxu0 0
    %1132 = vmatprep.subr.bf16.mxu0 0
    %1133 = vmatpush1.bf16.msra.mxu0 0
    %1134 = vmatprep.subr.bf16.mxu0 0
    %1135 = vmatpush1.bf16.msra.mxu0 0
    %1136 = vmatprep.subr.bf16.mxu0 0
    %1137 = vmatpush1.bf16.msra.mxu0 0
    %1138 = vmatprep.subr.bf16.mxu0 0
    %1139 = vmatpush1.bf16.msra.mxu0 0
    %1140 = vmatprep.subr.bf16.mxu0 0
    %1141 = vmatpush1.bf16.msra.mxu0 %v1127
    %1142 = vmatprep.subr.bf16.mxu0 0
    %1143 = vmatpush1.bf16.msra.mxu0 %v1126
    %1144 = vmatprep.subr.bf16.mxu0 0
    %1145 = vmatpush2.bf16.msra.mxu0 0
    %1146 = vmatprep.subr.bf16.mxu0 0
    %1147 = vmatpush2.bf16.msra.mxu0 0
    %1148 = vmatprep.subr.bf16.mxu0 0
    %1149 = vmatpush2.bf16.msra.mxu0 0
    %1150 = vmatprep.subr.bf16.mxu0 0
    %1151 = vmatpush2.bf16.msra.mxu0 0
    %1152 = vmatprep.subr.bf16.mxu0 0
    %1153 = vmatpush2.bf16.msra.mxu0 0
    %1154 = vmatprep.subr.bf16.mxu0 0
    %1155 = vmatpush2.bf16.msra.mxu0 0
    %1156 = vmatprep.subr.bf16.mxu0 0
    %1157 = vmatpush2.bf16.msra.mxu0 0
    %1158 = vmatprep.subr.bf16.mxu0 0
    %1159 = vmatpush2.bf16.msra.mxu0 0
    %1160 = vmatprep.mubr.bf16.mxu0 0
    %1161 = vmatmul.mubr.bf16.gmra.mxu0 %v1083
    %v1162 = vpop.f32.mrf.mxu0
    %v1163 = vadd.f32 0.0, %v1162
    %v1164 = vpop.f32.mrf.mxu0
    %v1165 = vpop.f32.mrf.mxu0
    %v1166 = vadd.f32 0.0, %v1165
    %v1167 = vpop.f32.mrf.mxu0
    %1168 = vdwg.mxu0
    %1169 = vmatprep.subr.mxu0 0.0
    %1170 = vmatpush1.msra.mxu0 0.0
    %1171 = vmatprep.subr.mxu0 0.0
    %1172 = vmatpush1.msra.mxu0 0.0
    %1173 = vmatprep.subr.mxu0 0.0
    %1174 = vmatpush1.msra.mxu0 0.0
    %1175 = vmatprep.subr.mxu0 0.0
    %1176 = vmatpush1.msra.mxu0 0.0
    %1177 = vmatprep.subr.mxu0 0.0
    %1178 = vmatpush1.msra.mxu0 0.0
    %1179 = vmatprep.subr.mxu0 0.0
    %1180 = vmatpush1.msra.mxu0 0.0
    %1181 = vmatprep.subr.mxu0 0.0
    %1182 = vmatpush1.msra.mxu0 0.0
    %1183 = vmatprep.subr.mxu0 0.0
    %1184 = vmatpush1.msra.mxu0 0.0
    %1185 = vmatprep.subr.mxu0 0.0
    %1186 = vmatpush1.msra.mxu0 0.0
    %1187 = vmatprep.subr.mxu0 0.0
    %1188 = vmatpush1.msra.mxu0 0.0
    %1189 = vmatprep.subr.mxu0 0.0
    %1190 = vmatpush1.msra.mxu0 0.0
    %1191 = vmatprep.subr.mxu0 0.0
    %1192 = vmatpush1.msra.mxu0 0.0
    %1193 = vmatprep.subr.mxu0 0.0
    %1194 = vmatpush1.msra.mxu0 0.0
    %1195 = vmatprep.subr.mxu0 0.0
    %1196 = vmatpush1.msra.mxu0 0.0
    %1197 = vmatprep.subr.mxu0 0.0
    %1198 = vmatpush1.msra.mxu0 %v1166
    %1199 = vmatprep.subr.mxu0 0.0
    %1200 = vmatpush1.msra.mxu0 %v1163
    %1201 = vmatprep.subr.mxu0 0.0
    %1202 = vmatpush2.msra.mxu0 0.0
    %1203 = vmatprep.subr.mxu0 0.0
    %1204 = vmatpush2.msra.mxu0 0.0
    %1205 = vmatprep.subr.mxu0 0.0
    %1206 = vmatpush2.msra.mxu0 0.0
    %1207 = vmatprep.subr.mxu0 0.0
    %1208 = vmatpush2.msra.mxu0 0.0
    %1209 = vmatprep.subr.mxu0 0.0
    %1210 = vmatpush2.msra.mxu0 0.0
    %1211 = vmatprep.subr.mxu0 0.0
    %1212 = vmatpush2.msra.mxu0 0.0
    %1213 = vmatprep.subr.mxu0 0.0
    %1214 = vmatpush2.msra.mxu0 0.0
    %1215 = vmatprep.subr.mxu0 0.0
    %1216 = vmatpush2.msra.mxu0 0.0
    %1217 = vmatprep.subr.mxu0 0.0
    %1218 = vmatpush2.msra.mxu0 0.0
    %1219 = vmatprep.subr.mxu0 0.0
    %1220 = vmatpush2.msra.mxu0 0.0
    %1221 = vmatprep.subr.mxu0 0.0
    %1222 = vmatpush2.msra.mxu0 0.0
    %1223 = vmatprep.subr.mxu0 0.0
    %1224 = vmatpush2.msra.mxu0 0.0
    %1225 = vmatprep.subr.mxu0 0.0
    %1226 = vmatpush2.msra.mxu0 0.0
    %1227 = vmatprep.subr.mxu0 0.0
    %1228 = vmatpush2.msra.mxu0 0.0
    %1229 = vmatprep.subr.mxu0 0.0
    %1230 = vmatpush2.msra.mxu0 0.0
    %1231 = vmatprep.subr.mxu0 0.0
    %1232 = vmatpush2.msra.mxu0 0.0
    %1233 = vmatprep.mubr.f32.mxu0 0.0
    %1234 = vmatmul.mubr.f32.gmra.mxu0 %v639
    %v1235 = vpop.f32.mrf.mxu0
    %v1236 = vadd.f32 0.0, %v1235
    %v1237 = vpop.f32.mrf.mxu0
    %1238 = vmatprep.mubr.f32.mxu0 0.0
    %1239 = vmatmul.mubr.f32.gmra.mxu0 %v642
    %v1240 = vpop.f32.mrf.mxu0
    %v1241 = vadd.f32 0.0, %v1240
    %v1242 = vpop.f32.mrf.mxu0
    %1243 = vmatprep.mubr.f32.mxu0 0.0
    %1244 = vmatmul.mubr.f32.gmra.mxu0 %v645
    %v1245 = vpop.f32.mrf.mxu0
    %v1246 = vadd.f32 0.0, %v1245
    %v1247 = vpop.f32.mrf.mxu0
    %1248 = vmatprep.mubr.f32.mxu0 0.0
    %1249 = vmatmul.mubr.f32.gmra.mxu0 %v648
    %v1250 = vpop.f32.mrf.mxu0
    %v1251 = vadd.f32 0.0, %v1250
    %v1252 = vpop.f32.mrf.mxu0
    %1253 = vmatprep.mubr.f32.mxu0 0.0
    %1254 = vmatmul.mubr.f32.gmra.mxu0 %v651
    %v1255 = vpop.f32.mrf.mxu0
    %v1256 = vadd.f32 0.0, %v1255
    %v1257 = vpop.f32.mrf.mxu0
    %1258 = vmatprep.mubr.f32.mxu0 0.0
    %1259 = vmatmul.mubr.f32.gmra.mxu0 %v654
    %v1260 = vpop.f32.mrf.mxu0
    %v1261 = vadd.f32 0.0, %v1260
    %v1262 = vpop.f32.mrf.mxu0
    %1263 = vmatprep.mubr.f32.mxu0 0.0
    %1264 = vmatmul.mubr.f32.gmra.mxu0 %v657
    %v1265 = vpop.f32.mrf.mxu0
    %v1266 = vadd.f32 0.0, %v1265
    %v1267 = vpop.f32.mrf.mxu0
    %1268 = vmatprep.mubr.f32.mxu0 0.0
    %1269 = vmatmul.mubr.f32.gmra.mxu0 %v660
    %v1270 = vpop.f32.mrf.mxu0
    %v1271 = vadd.f32 0.0, %v1270
    %v1272 = vpop.f32.mrf.mxu0
    %1273 = vdwg.mxu0
    %v1274 = vadd.f32 %v1120, %v1236
    %v1275 = vadd.f32 %v1123, %v1241
    %vm1276 = vcmp.gt.f32.partialorder %v1274, 0.0
    %vm1277 = vcmp.gt.f32.partialorder %v1275, 0.0
    %v1278 = vmul.f32 %v1274, 0.2
    %v1279 = vmul.f32 %v1275, 0.2
    %v1280 = vsel %vm1276, %v1274, %v1278
    %v1281 = vsel %vm1277, %v1275, %v1279
    %v1282 = vadd.f32 %v1120, %v1246
    %v1283 = vadd.f32 %v1123, %v1251
    %vm1284 = vcmp.gt.f32.partialorder %v1282, 0.0
    %vm1285 = vcmp.gt.f32.partialorder %v1283, 0.0
    %v1286 = vmul.f32 %v1282, 0.2
    %v1287 = vmul.f32 %v1283, 0.2
    %v1288 = vsel %vm1284, %v1282, %v1286
    %v1289 = vsel %vm1285, %v1283, %v1287
    %v1290 = vmax.f32 %v1280, %v1288
    %v1291 = vmax.f32 %v1281, %v1289
    %v1292 = vadd.f32 %v1120, %v1256
    %v1293 = vadd.f32 %v1123, %v1261
    %vm1294 = vcmp.gt.f32.partialorder %v1292, 0.0
    %vm1295 = vcmp.gt.f32.partialorder %v1293, 0.0
    %v1296 = vmul.f32 %v1292, 0.2
    %v1297 = vmul.f32 %v1293, 0.2
    %v1298 = vsel %vm1294, %v1292, %v1296
    %v1299 = vsel %vm1295, %v1293, %v1297
    %v1300 = vmax.f32 %v1290, %v1298
    %v1301 = vmax.f32 %v1291, %v1299
    %v1302 = vadd.f32 %v1120, %v1266
    %v1303 = vadd.f32 %v1123, %v1271
    %vm1304 = vcmp.gt.f32.partialorder %v1302, 0.0
    %vm1305 = vcmp.gt.f32.partialorder %v1303, 0.0
    %v1306 = vmul.f32 %v1302, 0.2
    %v1307 = vmul.f32 %v1303, 0.2
    %v1308 = vsel %vm1304, %v1302, %v1306
    %v1309 = vsel %vm1305, %v1303, %v1307
    %v1310 = vmax.f32 %v1300, %v1308
    %v1311 = vmax.f32 %v1301, %v1309
    %v1312 = vadd.f32 %v1058, %v1310
    %v1313 = vadd.f32 %v1059, %v1311
    %v1314 = vld [vmem:[%s8] sm:$0xff]
    %v1315 = vld [vmem:[%s8 + $0x8] sm:$0xff]
    %v1316 = vld [vmem:[%s8 + $0x10] sm:$0xff]
    %v1317 = vld [vmem:[%s8 + $0x18] sm:$0xff]
    %v1318 = vld [vmem:[%s9] sm:$0xff]
    %v1319 = vld [vmem:[%s9 + $0x8] sm:$0xff]
    %v1320 = vld [vmem:[%s9 + $0x10] sm:$0xff]
    %v1321 = vld [vmem:[%s9 + $0x18] sm:$0xff]
    %v1322 = vld [vmem:[%s7] sm:$0x1]
    %v1323 = vsub.f32 %v1314, %v1318
    %v1324 = vsub.f32 %v1315, %v1319
    %v1325 = vsub.f32 %v1316, %v1320
    %v1326 = vsub.f32 %v1317, %v1321
    %v1327 = vpack.c.bf16 %v1324, %v1323
    %v1328 = vpack.c.bf16 %v1326, %v1325
    %v1330 = vlaneseq
    %v1331 = vshrl.u32 %v1330, 7
    %v1332 = vsub.s32 0, %v1331
    %v1333 = vrot.slane %v1322, %v1332
    %1335 = vmatprep.subr.bf16.mxu0 0
    %1336 = vmatpush1.bf16.msra.mxu0 0
    %1337 = vmatprep.subr.bf16.mxu0 0
    %1338 = vmatpush1.bf16.msra.mxu0 0
    %1339 = vmatprep.subr.bf16.mxu0 0
    %1340 = vmatpush1.bf16.msra.mxu0 0
    %1341 = vmatprep.subr.bf16.mxu0 0
    %1342 = vmatpush1.bf16.msra.mxu0 0
    %1343 = vmatprep.subr.bf16.mxu0 0
    %1344 = vmatpush1.bf16.msra.mxu0 0
    %1345 = vmatprep.subr.bf16.mxu0 0
    %1346 = vmatpush1.bf16.msra.mxu0 0
    %1347 = vmatprep.subr.bf16.mxu0 0
    %1348 = vmatpush1.bf16.msra.mxu0 %v1328
    %1349 = vmatprep.subr.bf16.mxu0 0
    %1350 = vmatpush1.bf16.msra.mxu0 %v1327
    %1351 = vmatprep.subr.bf16.mxu0 0
    %1352 = vmatpush2.bf16.msra.mxu0 0
    %1353 = vmatprep.subr.bf16.mxu0 0
    %1354 = vmatpush2.bf16.msra.mxu0 0
    %1355 = vmatprep.subr.bf16.mxu0 0
    %1356 = vmatpush2.bf16.msra.mxu0 0
    %1357 = vmatprep.subr.bf16.mxu0 0
    %1358 = vmatpush2.bf16.msra.mxu0 0
    %1359 = vmatprep.subr.bf16.mxu0 0
    %1360 = vmatpush2.bf16.msra.mxu0 0
    %1361 = vmatprep.subr.bf16.mxu0 0
    %1362 = vmatpush2.bf16.msra.mxu0 0
    %1363 = vmatprep.subr.bf16.mxu0 0
    %1364 = vmatpush2.bf16.msra.mxu0 0
    %1365 = vmatprep.subr.bf16.mxu0 0
    %1366 = vmatpush2.bf16.msra.mxu0 0
    %1367 = vmatprep.mubr.bf16.mxu0 0
    %1368 = vmatmul.mubr.bf16.gmra.mxu0 %v829
    %v1369 = vpop.f32.mrf.mxu0
    %v1370 = vadd.f32 %v1333, %v1369
    %v1371 = vpop.f32.mrf.mxu0
    %v1372 = vpop.f32.mrf.mxu0
    %v1373 = vadd.f32 %v1333, %v1372
    %v1374 = vpop.f32.mrf.mxu0
    %1375 = vdwg.mxu0
    %v1376 = vpack.c.bf16 %v1319, %v1318
    %v1377 = vpack.c.bf16 %v1321, %v1320
    %1378 = vmatprep.subr.bf16.mxu0 0
    %1379 = vmatpush1.bf16.msra.mxu0 0
    %1380 = vmatprep.subr.bf16.mxu0 0
    %1381 = vmatpush1.bf16.msra.mxu0 0
    %1382 = vmatprep.subr.bf16.mxu0 0
    %1383 = vmatpush1.bf16.msra.mxu0 0
    %1384 = vmatprep.subr.bf16.mxu0 0
    %1385 = vmatpush1.bf16.msra.mxu0 0
    %1386 = vmatprep.subr.bf16.mxu0 0
    %1387 = vmatpush1.bf16.msra.mxu0 0
    %1388 = vmatprep.subr.bf16.mxu0 0
    %1389 = vmatpush1.bf16.msra.mxu0 0
    %1390 = vmatprep.subr.bf16.mxu0 0
    %1391 = vmatpush1.bf16.msra.mxu0 %v1377
    %1392 = vmatprep.subr.bf16.mxu0 0
    %1393 = vmatpush1.bf16.msra.mxu0 %v1376
    %1394 = vmatprep.subr.bf16.mxu0 0
    %1395 = vmatpush2.bf16.msra.mxu0 0
    %1396 = vmatprep.subr.bf16.mxu0 0
    %1397 = vmatpush2.bf16.msra.mxu0 0
    %1398 = vmatprep.subr.bf16.mxu0 0
    %1399 = vmatpush2.bf16.msra.mxu0 0
    %1400 = vmatprep.subr.bf16.mxu0 0
    %1401 = vmatpush2.bf16.msra.mxu0 0
    %1402 = vmatprep.subr.bf16.mxu0 0
    %1403 = vmatpush2.bf16.msra.mxu0 0
    %1404 = vmatprep.subr.bf16.mxu0 0
    %1405 = vmatpush2.bf16.msra.mxu0 0
    %1406 = vmatprep.subr.bf16.mxu0 0
    %1407 = vmatpush2.bf16.msra.mxu0 0
    %1408 = vmatprep.subr.bf16.mxu0 0
    %1409 = vmatpush2.bf16.msra.mxu0 0
    %1410 = vmatprep.mubr.bf16.mxu0 0
    %1411 = vmatmul.mubr.bf16.gmra.mxu0 %v829
    %v1412 = vpop.f32.mrf.mxu0
    %v1413 = vadd.f32 0.0, %v1412
    %v1414 = vpop.f32.mrf.mxu0
    %v1415 = vpop.f32.mrf.mxu0
    %v1416 = vadd.f32 0.0, %v1415
    %v1417 = vpop.f32.mrf.mxu0
    %1418 = vdwg.mxu0
    %v1420 = vsel %vm335, %v522, 0
    %v1423 = vsel %vm335, %v523, 0
    %v1426 = vsel %vm335, %v524, 0
    %v1429 = vsel %vm335, %v525, 0
    %v1432 = vsel %vm335, %v526, 0
    %v1435 = vsel %vm335, %v527, 0
    %v1438 = vsel %vm335, %v528, 0
    %v1441 = vsel %vm335, %v529, 0
    %1443 = vmatprep.subr.mxu0 0.0
    %1444 = vmatpush1.msra.mxu0 0.0
    %1445 = vmatprep.subr.mxu0 0.0
    %1446 = vmatpush1.msra.mxu0 0.0
    %1447 = vmatprep.subr.mxu0 0.0
    %1448 = vmatpush1.msra.mxu0 0.0
    %1449 = vmatprep.subr.mxu0 0.0
    %1450 = vmatpush1.msra.mxu0 0.0
    %1451 = vmatprep.subr.mxu0 0.0
    %1452 = vmatpush1.msra.mxu0 0.0
    %1453 = vmatprep.subr.mxu0 0.0
    %1454 = vmatpush1.msra.mxu0 0.0
    %1455 = vmatprep.subr.mxu0 0.0
    %1456 = vmatpush1.msra.mxu0 0.0
    %1457 = vmatprep.subr.mxu0 0.0
    %1458 = vmatpush1.msra.mxu0 0.0
    %1459 = vmatprep.subr.mxu0 0.0
    %1460 = vmatpush1.msra.mxu0 0.0
    %1461 = vmatprep.subr.mxu0 0.0
    %1462 = vmatpush1.msra.mxu0 0.0
    %1463 = vmatprep.subr.mxu0 0.0
    %1464 = vmatpush1.msra.mxu0 0.0
    %1465 = vmatprep.subr.mxu0 0.0
    %1466 = vmatpush1.msra.mxu0 0.0
    %1467 = vmatprep.subr.mxu0 0.0
    %1468 = vmatpush1.msra.mxu0 0.0
    %1469 = vmatprep.subr.mxu0 0.0
    %1470 = vmatpush1.msra.mxu0 0.0
    %1471 = vmatprep.subr.mxu0 0.0
    %1472 = vmatpush1.msra.mxu0 %v1416
    %1473 = vmatprep.subr.mxu0 0.0
    %1474 = vmatpush1.msra.mxu0 %v1413
    %1475 = vmatprep.subr.mxu0 0.0
    %1476 = vmatpush2.msra.mxu0 0.0
    %1477 = vmatprep.subr.mxu0 0.0
    %1478 = vmatpush2.msra.mxu0 0.0
    %1479 = vmatprep.subr.mxu0 0.0
    %1480 = vmatpush2.msra.mxu0 0.0
    %1481 = vmatprep.subr.mxu0 0.0
    %1482 = vmatpush2.msra.mxu0 0.0
    %1483 = vmatprep.subr.mxu0 0.0
    %1484 = vmatpush2.msra.mxu0 0.0
    %1485 = vmatprep.subr.mxu0 0.0
    %1486 = vmatpush2.msra.mxu0 0.0
    %1487 = vmatprep.subr.mxu0 0.0
    %1488 = vmatpush2.msra.mxu0 0.0
    %1489 = vmatprep.subr.mxu0 0.0
    %1490 = vmatpush2.msra.mxu0 0.0
    %1491 = vmatprep.subr.mxu0 0.0
    %1492 = vmatpush2.msra.mxu0 0.0
    %1493 = vmatprep.subr.mxu0 0.0
    %1494 = vmatpush2.msra.mxu0 0.0
    %1495 = vmatprep.subr.mxu0 0.0
    %1496 = vmatpush2.msra.mxu0 0.0
    %1497 = vmatprep.subr.mxu0 0.0
    %1498 = vmatpush2.msra.mxu0 0.0
    %1499 = vmatprep.subr.mxu0 0.0
    %1500 = vmatpush2.msra.mxu0 0.0
    %1501 = vmatprep.subr.mxu0 0.0
    %1502 = vmatpush2.msra.mxu0 0.0
    %1503 = vmatprep.subr.mxu0 0.0
    %1504 = vmatpush2.msra.mxu0 0.0
    %1505 = vmatprep.subr.mxu0 0.0
    %1506 = vmatpush2.msra.mxu0 0.0
    %1507 = vmatprep.mubr.f32.mxu0 0.0
    %1508 = vmatmul.mubr.f32.gmra.mxu0 %v1420
    %v1509 = vpop.f32.mrf.mxu0
    %v1510 = vadd.f32 0.0, %v1509
    %v1511 = vpop.f32.mrf.mxu0
    %1512 = vmatprep.mubr.f32.mxu0 0.0
    %1513 = vmatmul.mubr.f32.gmra.mxu0 %v1423
    %v1514 = vpop.f32.mrf.mxu0
    %v1515 = vadd.f32 0.0, %v1514
    %v1516 = vpop.f32.mrf.mxu0
    %1517 = vmatprep.mubr.f32.mxu0 0.0
    %1518 = vmatmul.mubr.f32.gmra.mxu0 %v1426
    %v1519 = vpop.f32.mrf.mxu0
    %v1520 = vadd.f32 0.0, %v1519
    %v1521 = vpop.f32.mrf.mxu0
    %1522 = vmatprep.mubr.f32.mxu0 0.0
    %1523 = vmatmul.mubr.f32.gmra.mxu0 %v1429
    %v1524 = vpop.f32.mrf.mxu0
    %v1525 = vadd.f32 0.0, %v1524
    %v1526 = vpop.f32.mrf.mxu0
    %1527 = vmatprep.mubr.f32.mxu0 0.0
    %1528 = vmatmul.mubr.f32.gmra.mxu0 %v1432
    %v1529 = vpop.f32.mrf.mxu0
    %v1530 = vadd.f32 0.0, %v1529
    %v1531 = vpop.f32.mrf.mxu0
    %1532 = vmatprep.mubr.f32.mxu0 0.0
    %1533 = vmatmul.mubr.f32.gmra.mxu0 %v1435
    %v1534 = vpop.f32.mrf.mxu0
    %v1535 = vadd.f32 0.0, %v1534
    %v1536 = vpop.f32.mrf.mxu0
    %1537 = vmatprep.mubr.f32.mxu0 0.0
    %1538 = vmatmul.mubr.f32.gmra.mxu0 %v1438
    %v1539 = vpop.f32.mrf.mxu0
    %v1540 = vadd.f32 0.0, %v1539
    %v1541 = vpop.f32.mrf.mxu0
    %1542 = vmatprep.mubr.f32.mxu0 0.0
    %1543 = vmatmul.mubr.f32.gmra.mxu0 %v1441
    %v1544 = vpop.f32.mrf.mxu0
    %v1545 = vadd.f32 0.0, %v1544
    %v1546 = vpop.f32.mrf.mxu0
    %1547 = vdwg.mxu0
    %v1548 = vadd.f32 %v1370, %v1510
    %v1549 = vadd.f32 %v1373, %v1515
    %vm1550 = vcmp.gt.f32.partialorder %v1548, 0.0
    %vm1551 = vcmp.gt.f32.partialorder %v1549, 0.0
    %v1552 = vmul.f32 %v1548, 0.2
    %v1553 = vmul.f32 %v1549, 0.2
    %v1554 = vsel %vm1550, %v1548, %v1552
    %v1555 = vsel %vm1551, %v1549, %v1553
    %v1556 = vadd.f32 %v1370, %v1520
    %v1557 = vadd.f32 %v1373, %v1525
    %vm1558 = vcmp.gt.f32.partialorder %v1556, 0.0
    %vm1559 = vcmp.gt.f32.partialorder %v1557, 0.0
    %v1560 = vmul.f32 %v1556, 0.2
    %v1561 = vmul.f32 %v1557, 0.2
    %v1562 = vsel %vm1558, %v1556, %v1560
    %v1563 = vsel %vm1559, %v1557, %v1561
    %v1564 = vmax.f32 %v1554, %v1562
    %v1565 = vmax.f32 %v1555, %v1563
    %v1566 = vadd.f32 %v1370, %v1530
    %v1567 = vadd.f32 %v1373, %v1535
    %vm1568 = vcmp.gt.f32.partialorder %v1566, 0.0
    %vm1569 = vcmp.gt.f32.partialorder %v1567, 0.0
    %v1570 = vmul.f32 %v1566, 0.2
    %v1571 = vmul.f32 %v1567, 0.2
    %v1572 = vsel %vm1568, %v1566, %v1570
    %v1573 = vsel %vm1569, %v1567, %v1571
    %v1574 = vmax.f32 %v1564, %v1572
    %v1575 = vmax.f32 %v1565, %v1573
    %v1576 = vadd.f32 %v1370, %v1540
    %v1577 = vadd.f32 %v1373, %v1545
    %vm1578 = vcmp.gt.f32.partialorder %v1576, 0.0
    %vm1579 = vcmp.gt.f32.partialorder %v1577, 0.0
    %v1580 = vmul.f32 %v1576, 0.2
    %v1581 = vmul.f32 %v1577, 0.2
    %v1582 = vsel %vm1578, %v1576, %v1580
    %v1583 = vsel %vm1579, %v1577, %v1581
    %v1584 = vmax.f32 %v1574, %v1582
    %v1585 = vmax.f32 %v1575, %v1583
    %v1586 = vadd.f32 %v803, %v1584
    %v1587 = vadd.f32 %v804, %v1585
    %v1588 = vld [vmem:[%s11] sm:$0xff]
    %v1589 = vld [vmem:[%s11 + $0x8] sm:$0xff]
    %v1590 = vld [vmem:[%s11 + $0x10] sm:$0xff]
    %v1591 = vld [vmem:[%s11 + $0x18] sm:$0xff]
    %v1592 = vld [vmem:[%s12] sm:$0xff]
    %v1593 = vld [vmem:[%s12 + $0x8] sm:$0xff]
    %v1594 = vld [vmem:[%s12 + $0x10] sm:$0xff]
    %v1595 = vld [vmem:[%s12 + $0x18] sm:$0xff]
    %v1596 = vld [vmem:[#allocation4] sm:$0x1]
    %v1597 = vsub.f32 %v1588, %v1592
    %v1598 = vsub.f32 %v1589, %v1593
    %v1599 = vsub.f32 %v1590, %v1594
    %v1600 = vsub.f32 %v1591, %v1595
    %v1601 = vpack.c.bf16 %v1587, %v1586
    %v1602 = vpack.c.bf16 %v1598, %v1597
    %v1603 = vpack.c.bf16 %v1600, %v1599
    %v1605 = vlaneseq
    %v1606 = vshrl.u32 %v1605, 7
    %v1607 = vsub.s32 0, %v1606
    %v1608 = vrot.slane %v1596, %v1607
    %v1611 = vsel %vm827, %v1601, 0
    %1613 = vmatprep.subr.bf16.mxu0 0
    %1614 = vmatpush1.bf16.msra.mxu0 0
    %1615 = vmatprep.subr.bf16.mxu0 0
    %1616 = vmatpush1.bf16.msra.mxu0 0
    %1617 = vmatprep.subr.bf16.mxu0 0
    %1618 = vmatpush1.bf16.msra.mxu0 0
    %1619 = vmatprep.subr.bf16.mxu0 0
    %1620 = vmatpush1.bf16.msra.mxu0 0
    %1621 = vmatprep.subr.bf16.mxu0 0
    %1622 = vmatpush1.bf16.msra.mxu0 0
    %1623 = vmatprep.subr.bf16.mxu0 0
    %1624 = vmatpush1.bf16.msra.mxu0 0
    %1625 = vmatprep.subr.bf16.mxu0 0
    %1626 = vmatpush1.bf16.msra.mxu0 %v1603
    %1627 = vmatprep.subr.bf16.mxu0 0
    %1628 = vmatpush1.bf16.msra.mxu0 %v1602
    %1629 = vmatprep.subr.bf16.mxu0 0
    %1630 = vmatpush2.bf16.msra.mxu0 0
    %1631 = vmatprep.subr.bf16.mxu0 0
    %1632 = vmatpush2.bf16.msra.mxu0 0
    %1633 = vmatprep.subr.bf16.mxu0 0
    %1634 = vmatpush2.bf16.msra.mxu0 0
    %1635 = vmatprep.subr.bf16.mxu0 0
    %1636 = vmatpush2.bf16.msra.mxu0 0
    %1637 = vmatprep.subr.bf16.mxu0 0
    %1638 = vmatpush2.bf16.msra.mxu0 0
    %1639 = vmatprep.subr.bf16.mxu0 0
    %1640 = vmatpush2.bf16.msra.mxu0 0
    %1641 = vmatprep.subr.bf16.mxu0 0
    %1642 = vmatpush2.bf16.msra.mxu0 0
    %1643 = vmatprep.subr.bf16.mxu0 0
    %1644 = vmatpush2.bf16.msra.mxu0 0
    %1645 = vmatprep.mubr.bf16.mxu0 0
    %1646 = vmatmul.mubr.bf16.gmra.mxu0 %v1611
    %v1647 = vpop.f32.mrf.mxu0
    %v1648 = vadd.f32 %v1608, %v1647
    %v1649 = vpop.f32.mrf.mxu0
    %v1650 = vpop.f32.mrf.mxu0
    %v1651 = vadd.f32 %v1608, %v1650
    %v1652 = vpop.f32.mrf.mxu0
    %1653 = vdwg.mxu0
    %v1654 = vpack.c.bf16 %v1593, %v1592
    %v1655 = vpack.c.bf16 %v1595, %v1594
    %1656 = vmatprep.subr.bf16.mxu0 0
    %1657 = vmatpush1.bf16.msra.mxu0 0
    %1658 = vmatprep.subr.bf16.mxu0 0
    %1659 = vmatpush1.bf16.msra.mxu0 0
    %1660 = vmatprep.subr.bf16.mxu0 0
    %1661 = vmatpush1.bf16.msra.mxu0 0
    %1662 = vmatprep.subr.bf16.mxu0 0
    %1663 = vmatpush1.bf16.msra.mxu0 0
    %1664 = vmatprep.subr.bf16.mxu0 0
    %1665 = vmatpush1.bf16.msra.mxu0 0
    %1666 = vmatprep.subr.bf16.mxu0 0
    %1667 = vmatpush1.bf16.msra.mxu0 0
    %1668 = vmatprep.subr.bf16.mxu0 0
    %1669 = vmatpush1.bf16.msra.mxu0 %v1655
    %1670 = vmatprep.subr.bf16.mxu0 0
    %1671 = vmatpush1.bf16.msra.mxu0 %v1654
    %1672 = vmatprep.subr.bf16.mxu0 0
    %1673 = vmatpush2.bf16.msra.mxu0 0
    %1674 = vmatprep.subr.bf16.mxu0 0
    %1675 = vmatpush2.bf16.msra.mxu0 0
    %1676 = vmatprep.subr.bf16.mxu0 0
    %1677 = vmatpush2.bf16.msra.mxu0 0
    %1678 = vmatprep.subr.bf16.mxu0 0
    %1679 = vmatpush2.bf16.msra.mxu0 0
    %1680 = vmatprep.subr.bf16.mxu0 0
    %1681 = vmatpush2.bf16.msra.mxu0 0
    %1682 = vmatprep.subr.bf16.mxu0 0
    %1683 = vmatpush2.bf16.msra.mxu0 0
    %1684 = vmatprep.subr.bf16.mxu0 0
    %1685 = vmatpush2.bf16.msra.mxu0 0
    %1686 = vmatprep.subr.bf16.mxu0 0
    %1687 = vmatpush2.bf16.msra.mxu0 0
    %1688 = vmatprep.mubr.bf16.mxu0 0
    %1689 = vmatmul.mubr.bf16.gmra.mxu0 %v1611
    %v1690 = vpop.f32.mrf.mxu0
    %v1691 = vadd.f32 0.0, %v1690
    %v1692 = vpop.f32.mrf.mxu0
    %v1693 = vpop.f32.mrf.mxu0
    %v1694 = vadd.f32 0.0, %v1693
    %v1695 = vpop.f32.mrf.mxu0
    %1696 = vdwg.mxu0
    %1697 = vmatprep.subr.mxu0 0.0
    %1698 = vmatpush1.msra.mxu0 0.0
    %1699 = vmatprep.subr.mxu0 0.0
    %1700 = vmatpush1.msra.mxu0 0.0
    %1701 = vmatprep.subr.mxu0 0.0
    %1702 = vmatpush1.msra.mxu0 0.0
    %1703 = vmatprep.subr.mxu0 0.0
    %1704 = vmatpush1.msra.mxu0 0.0
    %1705 = vmatprep.subr.mxu0 0.0
    %1706 = vmatpush1.msra.mxu0 0.0
    %1707 = vmatprep.subr.mxu0 0.0
    %1708 = vmatpush1.msra.mxu0 0.0
    %1709 = vmatprep.subr.mxu0 0.0
    %1710 = vmatpush1.msra.mxu0 0.0
    %1711 = vmatprep.subr.mxu0 0.0
    %1712 = vmatpush1.msra.mxu0 0.0
    %1713 = vmatprep.subr.mxu0 0.0
    %1714 = vmatpush1.msra.mxu0 0.0
    %1715 = vmatprep.subr.mxu0 0.0
    %1716 = vmatpush1.msra.mxu0 0.0
    %1717 = vmatprep.subr.mxu0 0.0
    %1718 = vmatpush1.msra.mxu0 0.0
    %1719 = vmatprep.subr.mxu0 0.0
    %1720 = vmatpush1.msra.mxu0 0.0
    %1721 = vmatprep.subr.mxu0 0.0
    %1722 = vmatpush1.msra.mxu0 0.0
    %1723 = vmatprep.subr.mxu0 0.0
    %1724 = vmatpush1.msra.mxu0 0.0
    %1725 = vmatprep.subr.mxu0 0.0
    %1726 = vmatpush1.msra.mxu0 %v1694
    %1727 = vmatprep.subr.mxu0 0.0
    %1728 = vmatpush1.msra.mxu0 %v1691
    %1729 = vmatprep.subr.mxu0 0.0
    %1730 = vmatpush2.msra.mxu0 0.0
    %1731 = vmatprep.subr.mxu0 0.0
    %1732 = vmatpush2.msra.mxu0 0.0
    %1733 = vmatprep.subr.mxu0 0.0
    %1734 = vmatpush2.msra.mxu0 0.0
    %1735 = vmatprep.subr.mxu0 0.0
    %1736 = vmatpush2.msra.mxu0 0.0
    %1737 = vmatprep.subr.mxu0 0.0
    %1738 = vmatpush2.msra.mxu0 0.0
    %1739 = vmatprep.subr.mxu0 0.0
    %1740 = vmatpush2.msra.mxu0 0.0
    %1741 = vmatprep.subr.mxu0 0.0
    %1742 = vmatpush2.msra.mxu0 0.0
    %1743 = vmatprep.subr.mxu0 0.0
    %1744 = vmatpush2.msra.mxu0 0.0
    %1745 = vmatprep.subr.mxu0 0.0
    %1746 = vmatpush2.msra.mxu0 0.0
    %1747 = vmatprep.subr.mxu0 0.0
    %1748 = vmatpush2.msra.mxu0 0.0
    %1749 = vmatprep.subr.mxu0 0.0
    %1750 = vmatpush2.msra.mxu0 0.0
    %1751 = vmatprep.subr.mxu0 0.0
    %1752 = vmatpush2.msra.mxu0 0.0
    %1753 = vmatprep.subr.mxu0 0.0
    %1754 = vmatpush2.msra.mxu0 0.0
    %1755 = vmatprep.subr.mxu0 0.0
    %1756 = vmatpush2.msra.mxu0 0.0
    %1757 = vmatprep.subr.mxu0 0.0
    %1758 = vmatpush2.msra.mxu0 0.0
    %1759 = vmatprep.subr.mxu0 0.0
    %1760 = vmatpush2.msra.mxu0 0.0
    %1761 = vmatprep.mubr.f32.mxu0 0.0
    %1762 = vmatmul.mubr.f32.gmra.mxu0 %v1420
    %v1763 = vpop.f32.mrf.mxu0
    %v1764 = vadd.f32 0.0, %v1763
    %v1765 = vpop.f32.mrf.mxu0
    %1766 = vmatprep.mubr.f32.mxu0 0.0
    %1767 = vmatmul.mubr.f32.gmra.mxu0 %v1423
    %v1768 = vpop.f32.mrf.mxu0
    %v1769 = vadd.f32 0.0, %v1768
    %v1770 = vpop.f32.mrf.mxu0
    %1771 = vmatprep.mubr.f32.mxu0 0.0
    %1772 = vmatmul.mubr.f32.gmra.mxu0 %v1426
    %v1773 = vpop.f32.mrf.mxu0
    %v1774 = vadd.f32 0.0, %v1773
    %v1775 = vpop.f32.mrf.mxu0
    %1776 = vmatprep.mubr.f32.mxu0 0.0
    %1777 = vmatmul.mubr.f32.gmra.mxu0 %v1429
    %v1778 = vpop.f32.mrf.mxu0
    %v1779 = vadd.f32 0.0, %v1778
    %v1780 = vpop.f32.mrf.mxu0
    %1781 = vmatprep.mubr.f32.mxu0 0.0
    %1782 = vmatmul.mubr.f32.gmra.mxu0 %v1432
    %v1783 = vpop.f32.mrf.mxu0
    %v1784 = vadd.f32 0.0, %v1783
    %v1785 = vpop.f32.mrf.mxu0
    %1786 = vmatprep.mubr.f32.mxu0 0.0
    %1787 = vmatmul.mubr.f32.gmra.mxu0 %v1435
    %v1788 = vpop.f32.mrf.mxu0
    %v1789 = vadd.f32 0.0, %v1788
    %v1790 = vpop.f32.mrf.mxu0
    %1791 = vmatprep.mubr.f32.mxu0 0.0
    %1792 = vmatmul.mubr.f32.gmra.mxu0 %v1438
    %v1793 = vpop.f32.mrf.mxu0
    %v1794 = vadd.f32 0.0, %v1793
    %v1795 = vpop.f32.mrf.mxu0
    %1796 = vmatprep.mubr.f32.mxu0 0.0
    %1797 = vmatmul.mubr.f32.gmra.mxu0 %v1441
    %v1798 = vpop.f32.mrf.mxu0
    %v1799 = vadd.f32 0.0, %v1798
    %v1800 = vpop.f32.mrf.mxu0
    %1801 = vdwg.mxu0
    %v1802 = vadd.f32 %v1648, %v1764
    %v1803 = vadd.f32 %v1651, %v1769
    %vm1804 = vcmp.gt.f32.partialorder %v1802, 0.0
    %vm1805 = vcmp.gt.f32.partialorder %v1803, 0.0
    %v1806 = vmul.f32 %v1802, 0.2
    %v1807 = vmul.f32 %v1803, 0.2
    %v1808 = vsel %vm1804, %v1802, %v1806
    %v1809 = vsel %vm1805, %v1803, %v1807
    %v1810 = vadd.f32 %v1648, %v1774
    %v1811 = vadd.f32 %v1651, %v1779
    %vm1812 = vcmp.gt.f32.partialorder %v1810, 0.0
    %vm1813 = vcmp.gt.f32.partialorder %v1811, 0.0
    %v1814 = vmul.f32 %v1810, 0.2
    %v1815 = vmul.f32 %v1811, 0.2
    %v1816 = vsel %vm1812, %v1810, %v1814
    %v1817 = vsel %vm1813, %v1811, %v1815
    %v1818 = vmax.f32 %v1808, %v1816
    %v1819 = vmax.f32 %v1809, %v1817
    %v1820 = vadd.f32 %v1648, %v1784
    %v1821 = vadd.f32 %v1651, %v1789
    %vm1822 = vcmp.gt.f32.partialorder %v1820, 0.0
    %vm1823 = vcmp.gt.f32.partialorder %v1821, 0.0
    %v1824 = vmul.f32 %v1820, 0.2
    %v1825 = vmul.f32 %v1821, 0.2
    %v1826 = vsel %vm1822, %v1820, %v1824
    %v1827 = vsel %vm1823, %v1821, %v1825
    %v1828 = vmax.f32 %v1818, %v1826
    %v1829 = vmax.f32 %v1819, %v1827
    %v1830 = vadd.f32 %v1648, %v1794
    %v1831 = vadd.f32 %v1651, %v1799
    %vm1832 = vcmp.gt.f32.partialorder %v1830, 0.0
    %vm1833 = vcmp.gt.f32.partialorder %v1831, 0.0
    %v1834 = vmul.f32 %v1830, 0.2
    %v1835 = vmul.f32 %v1831, 0.2
    %v1836 = vsel %vm1832, %v1830, %v1834
    %v1837 = vsel %vm1833, %v1831, %v1835
    %v1838 = vmax.f32 %v1828, %v1836
    %v1839 = vmax.f32 %v1829, %v1837
    %v1840 = vadd.f32 %v1586, %v1838
    %v1841 = vadd.f32 %v1587, %v1839
    %v1842 = vadd.f32 %v1312, %v1840
    %v1843 = vadd.f32 %v1313, %v1841
    %v1844 = vmul.f32 %v1842, 0.5
    %v1845 = vmul.f32 %v1843, 0.5
    %v1846 = vld [vmem:[%s14] sm:$0xff]
    %v1847 = vld [vmem:[%s14 + $0x8] sm:$0xff]
    %v1848 = vld [vmem:[%s14 + $0x10] sm:$0xff]
    %v1849 = vld [vmem:[%s14 + $0x18] sm:$0xff]
    %v1850 = vld [vmem:[%s15] sm:$0xff]
    %v1851 = vld [vmem:[%s15 + $0x8] sm:$0xff]
    %v1852 = vld [vmem:[%s15 + $0x10] sm:$0xff]
    %v1853 = vld [vmem:[%s15 + $0x18] sm:$0xff]
    %v1854 = vld [vmem:[%s13] sm:$0x1]
    %v1855 = vsub.f32 %v1846, %v1850
    %v1856 = vsub.f32 %v1847, %v1851
    %v1857 = vsub.f32 %v1848, %v1852
    %v1858 = vsub.f32 %v1849, %v1853
    %v1859 = vpack.c.bf16 %v1845, %v1844
    %v1860 = vpack.c.bf16 %v1856, %v1855
    %v1861 = vpack.c.bf16 %v1858, %v1857
    %v1863 = vlaneseq
    %v1864 = vshrl.u32 %v1863, 7
    %v1865 = vsub.s32 0, %v1864
    %v1866 = vrot.slane %v1854, %v1865
    %v1869 = vsel %vm827, %v1859, 0
    %1871 = vmatprep.subr.bf16.mxu0 0
    %1872 = vmatpush1.bf16.msra.mxu0 0
    %1873 = vmatprep.subr.bf16.mxu0 0
    %1874 = vmatpush1.bf16.msra.mxu0 0
    %1875 = vmatprep.subr.bf16.mxu0 0
    %1876 = vmatpush1.bf16.msra.mxu0 0
    %1877 = vmatprep.subr.bf16.mxu0 0
    %1878 = vmatpush1.bf16.msra.mxu0 0
    %1879 = vmatprep.subr.bf16.mxu0 0
    %1880 = vmatpush1.bf16.msra.mxu0 0
    %1881 = vmatprep.subr.bf16.mxu0 0
    %1882 = vmatpush1.bf16.msra.mxu0 0
    %1883 = vmatprep.subr.bf16.mxu0 0
    %1884 = vmatpush1.bf16.msra.mxu0 %v1861
    %1885 = vmatprep.subr.bf16.mxu0 0
    %1886 = vmatpush1.bf16.msra.mxu0 %v1860
    %1887 = vmatprep.subr.bf16.mxu0 0
    %1888 = vmatpush2.bf16.msra.mxu0 0
    %1889 = vmatprep.subr.bf16.mxu0 0
    %1890 = vmatpush2.bf16.msra.mxu0 0
    %1891 = vmatprep.subr.bf16.mxu0 0
    %1892 = vmatpush2.bf16.msra.mxu0 0
    %1893 = vmatprep.subr.bf16.mxu0 0
    %1894 = vmatpush2.bf16.msra.mxu0 0
    %1895 = vmatprep.subr.bf16.mxu0 0
    %1896 = vmatpush2.bf16.msra.mxu0 0
    %1897 = vmatprep.subr.bf16.mxu0 0
    %1898 = vmatpush2.bf16.msra.mxu0 0
    %1899 = vmatprep.subr.bf16.mxu0 0
    %1900 = vmatpush2.bf16.msra.mxu0 0
    %1901 = vmatprep.subr.bf16.mxu0 0
    %1902 = vmatpush2.bf16.msra.mxu0 0
    %1903 = vmatprep.mubr.bf16.mxu0 0
    %1904 = vmatmul.mubr.bf16.gmra.mxu0 %v1869
    %v1905 = vpop.f32.mrf.mxu0
    %v1906 = vadd.f32 %v1866, %v1905
    %v1907 = vpop.f32.mrf.mxu0
    %v1908 = vpop.f32.mrf.mxu0
    %v1909 = vadd.f32 %v1866, %v1908
    %v1910 = vpop.f32.mrf.mxu0
    %1911 = vdwg.mxu0
    %v1912 = vpack.c.bf16 %v1851, %v1850
    %v1913 = vpack.c.bf16 %v1853, %v1852
    %1914 = vmatprep.subr.bf16.mxu0 0
    %1915 = vmatpush1.bf16.msra.mxu0 0
    %1916 = vmatprep.subr.bf16.mxu0 0
    %1917 = vmatpush1.bf16.msra.mxu0 0
    %1918 = vmatprep.subr.bf16.mxu0 0
    %1919 = vmatpush1.bf16.msra.mxu0 0
    %1920 = vmatprep.subr.bf16.mxu0 0
    %1921 = vmatpush1.bf16.msra.mxu0 0
    %1922 = vmatprep.subr.bf16.mxu0 0
    %1923 = vmatpush1.bf16.msra.mxu0 0
    %1924 = vmatprep.subr.bf16.mxu0 0
    %1925 = vmatpush1.bf16.msra.mxu0 0
    %1926 = vmatprep.subr.bf16.mxu0 0
    %1927 = vmatpush1.bf16.msra.mxu0 %v1913
    %1928 = vmatprep.subr.bf16.mxu0 0
    %1929 = vmatpush1.bf16.msra.mxu0 %v1912
    %1930 = vmatprep.subr.bf16.mxu0 0
    %1931 = vmatpush2.bf16.msra.mxu0 0
    %1932 = vmatprep.subr.bf16.mxu0 0
    %1933 = vmatpush2.bf16.msra.mxu0 0
    %1934 = vmatprep.subr.bf16.mxu0 0
    %1935 = vmatpush2.bf16.msra.mxu0 0
    %1936 = vmatprep.subr.bf16.mxu0 0
    %1937 = vmatpush2.bf16.msra.mxu0 0
    %1938 = vmatprep.subr.bf16.mxu0 0
    %1939 = vmatpush2.bf16.msra.mxu0 0
    %1940 = vmatprep.subr.bf16.mxu0 0
    %1941 = vmatpush2.bf16.msra.mxu0 0
    %1942 = vmatprep.subr.bf16.mxu0 0
    %1943 = vmatpush2.bf16.msra.mxu0 0
    %1944 = vmatprep.subr.bf16.mxu0 0
    %1945 = vmatpush2.bf16.msra.mxu0 0
    %1946 = vmatprep.mubr.bf16.mxu0 0
    %1947 = vmatmul.mubr.bf16.gmra.mxu0 %v1869
    %v1948 = vpop.f32.mrf.mxu0
    %v1949 = vadd.f32 0.0, %v1948
    %v1950 = vpop.f32.mrf.mxu0
    %v1951 = vpop.f32.mrf.mxu0
    %v1952 = vadd.f32 0.0, %v1951
    %v1953 = vpop.f32.mrf.mxu0
    %1954 = vdwg.mxu0
    %1955 = vmatprep.subr.mxu0 0.0
    %1956 = vmatpush1.msra.mxu0 0.0
    %1957 = vmatprep.subr.mxu0 0.0
    %1958 = vmatpush1.msra.mxu0 0.0
    %1959 = vmatprep.subr.mxu0 0.0
    %1960 = vmatpush1.msra.mxu0 0.0
    %1961 = vmatprep.subr.mxu0 0.0
    %1962 = vmatpush1.msra.mxu0 0.0
    %1963 = vmatprep.subr.mxu0 0.0
    %1964 = vmatpush1.msra.mxu0 0.0
    %1965 = vmatprep.subr.mxu0 0.0
    %1966 = vmatpush1.msra.mxu0 0.0
    %1967 = vmatprep.subr.mxu0 0.0
    %1968 = vmatpush1.msra.mxu0 0.0
    %1969 = vmatprep.subr.mxu0 0.0
    %1970 = vmatpush1.msra.mxu0 0.0
    %1971 = vmatprep.subr.mxu0 0.0
    %1972 = vmatpush1.msra.mxu0 0.0
    %1973 = vmatprep.subr.mxu0 0.0
    %1974 = vmatpush1.msra.mxu0 0.0
    %1975 = vmatprep.subr.mxu0 0.0
    %1976 = vmatpush1.msra.mxu0 0.0
    %1977 = vmatprep.subr.mxu0 0.0
    %1978 = vmatpush1.msra.mxu0 0.0
    %1979 = vmatprep.subr.mxu0 0.0
    %1980 = vmatpush1.msra.mxu0 0.0
    %1981 = vmatprep.subr.mxu0 0.0
    %1982 = vmatpush1.msra.mxu0 0.0
    %1983 = vmatprep.subr.mxu0 0.0
    %1984 = vmatpush1.msra.mxu0 %v1952
    %1985 = vmatprep.subr.mxu0 0.0
    %1986 = vmatpush1.msra.mxu0 %v1949
    %1987 = vmatprep.subr.mxu0 0.0
    %1988 = vmatpush2.msra.mxu0 0.0
    %1989 = vmatprep.subr.mxu0 0.0
    %1990 = vmatpush2.msra.mxu0 0.0
    %1991 = vmatprep.subr.mxu0 0.0
    %1992 = vmatpush2.msra.mxu0 0.0
    %1993 = vmatprep.subr.mxu0 0.0
    %1994 = vmatpush2.msra.mxu0 0.0
    %1995 = vmatprep.subr.mxu0 0.0
    %1996 = vmatpush2.msra.mxu0 0.0
    %1997 = vmatprep.subr.mxu0 0.0
    %1998 = vmatpush2.msra.mxu0 0.0
    %1999 = vmatprep.subr.mxu0 0.0
    %2000 = vmatpush2.msra.mxu0 0.0
    %2001 = vmatprep.subr.mxu0 0.0
    %2002 = vmatpush2.msra.mxu0 0.0
    %2003 = vmatprep.subr.mxu0 0.0
    %2004 = vmatpush2.msra.mxu0 0.0
    %2005 = vmatprep.subr.mxu0 0.0
    %2006 = vmatpush2.msra.mxu0 0.0
    %2007 = vmatprep.subr.mxu0 0.0
    %2008 = vmatpush2.msra.mxu0 0.0
    %2009 = vmatprep.subr.mxu0 0.0
    %2010 = vmatpush2.msra.mxu0 0.0
    %2011 = vmatprep.subr.mxu0 0.0
    %2012 = vmatpush2.msra.mxu0 0.0
    %2013 = vmatprep.subr.mxu0 0.0
    %2014 = vmatpush2.msra.mxu0 0.0
    %2015 = vmatprep.subr.mxu0 0.0
    %2016 = vmatpush2.msra.mxu0 0.0
    %2017 = vmatprep.subr.mxu0 0.0
    %2018 = vmatpush2.msra.mxu0 0.0
    %2019 = vmatprep.mubr.f32.mxu0 0.0
    %2020 = vmatmul.mubr.f32.gmra.mxu0 %v639
    %v2021 = vpop.f32.mrf.mxu0
    %v2022 = vadd.f32 0.0, %v2021
    %v2023 = vpop.f32.mrf.mxu0
    %2024 = vmatprep.mubr.f32.mxu0 0.0
    %2025 = vmatmul.mubr.f32.gmra.mxu0 %v642
    %v2026 = vpop.f32.mrf.mxu0
    %v2027 = vadd.f32 0.0, %v2026
    %v2028 = vpop.f32.mrf.mxu0
    %2029 = vmatprep.mubr.f32.mxu0 0.0
    %2030 = vmatmul.mubr.f32.gmra.mxu0 %v645
    %v2031 = vpop.f32.mrf.mxu0
    %v2032 = vadd.f32 0.0, %v2031
    %v2033 = vpop.f32.mrf.mxu0
    %2034 = vmatprep.mubr.f32.mxu0 0.0
    %2035 = vmatmul.mubr.f32.gmra.mxu0 %v648
    %v2036 = vpop.f32.mrf.mxu0
    %v2037 = vadd.f32 0.0, %v2036
    %v2038 = vpop.f32.mrf.mxu0
    %2039 = vmatprep.mubr.f32.mxu0 0.0
    %2040 = vmatmul.mubr.f32.gmra.mxu0 %v651
    %v2041 = vpop.f32.mrf.mxu0
    %v2042 = vadd.f32 0.0, %v2041
    %v2043 = vpop.f32.mrf.mxu0
    %2044 = vmatprep.mubr.f32.mxu0 0.0
    %2045 = vmatmul.mubr.f32.gmra.mxu0 %v654
    %v2046 = vpop.f32.mrf.mxu0
    %v2047 = vadd.f32 0.0, %v2046
    %v2048 = vpop.f32.mrf.mxu0
    %2049 = vmatprep.mubr.f32.mxu0 0.0
    %2050 = vmatmul.mubr.f32.gmra.mxu0 %v657
    %v2051 = vpop.f32.mrf.mxu0
    %v2052 = vadd.f32 0.0, %v2051
    %v2053 = vpop.f32.mrf.mxu0
    %2054 = vmatprep.mubr.f32.mxu0 0.0
    %2055 = vmatmul.mubr.f32.gmra.mxu0 %v660
    %v2056 = vpop.f32.mrf.mxu0
    %v2057 = vadd.f32 0.0, %v2056
    %v2058 = vpop.f32.mrf.mxu0
    %2059 = vdwg.mxu0
    %v2060 = vadd.f32 %v1906, %v2022
    %v2061 = vadd.f32 %v1909, %v2027
    %vm2062 = vcmp.gt.f32.partialorder %v2060, 0.0
    %vm2063 = vcmp.gt.f32.partialorder %v2061, 0.0
    %v2064 = vmul.f32 %v2060, 0.2
    %v2065 = vmul.f32 %v2061, 0.2
    %v2066 = vsel %vm2062, %v2060, %v2064
    %v2067 = vsel %vm2063, %v2061, %v2065
    %v2068 = vadd.f32 %v1906, %v2032
    %v2069 = vadd.f32 %v1909, %v2037
    %vm2070 = vcmp.gt.f32.partialorder %v2068, 0.0
    %vm2071 = vcmp.gt.f32.partialorder %v2069, 0.0
    %v2072 = vmul.f32 %v2068, 0.2
    %v2073 = vmul.f32 %v2069, 0.2
    %v2074 = vsel %vm2070, %v2068, %v2072
    %v2075 = vsel %vm2071, %v2069, %v2073
    %v2076 = vmax.f32 %v2066, %v2074
    %v2077 = vmax.f32 %v2067, %v2075
    %v2078 = vadd.f32 %v1906, %v2042
    %v2079 = vadd.f32 %v1909, %v2047
    %vm2080 = vcmp.gt.f32.partialorder %v2078, 0.0
    %vm2081 = vcmp.gt.f32.partialorder %v2079, 0.0
    %v2082 = vmul.f32 %v2078, 0.2
    %v2083 = vmul.f32 %v2079, 0.2
    %v2084 = vsel %vm2080, %v2078, %v2082
    %v2085 = vsel %vm2081, %v2079, %v2083
    %v2086 = vmax.f32 %v2076, %v2084
    %v2087 = vmax.f32 %v2077, %v2085
    %v2088 = vadd.f32 %v1906, %v2052
    %v2089 = vadd.f32 %v1909, %v2057
    %vm2090 = vcmp.gt.f32.partialorder %v2088, 0.0
    %vm2091 = vcmp.gt.f32.partialorder %v2089, 0.0
    %v2092 = vmul.f32 %v2088, 0.2
    %v2093 = vmul.f32 %v2089, 0.2
    %v2094 = vsel %vm2090, %v2088, %v2092
    %v2095 = vsel %vm2091, %v2089, %v2093
    %v2096 = vmax.f32 %v2086, %v2094
    %v2097 = vmax.f32 %v2087, %v2095
    %v2098 = vld [vmem:[%s24] sm:$0xff]
    %v2099 = vld [vmem:[%s24 + $0x8] sm:$0xff]
    %v2100 = vld [vmem:[%s24 + $0x10] sm:$0xff]
    %v2101 = vld [vmem:[%s24 + $0x18] sm:$0xff]
    %v2102 = vpack.c.bf16 %v2097, %v2096
    %v2103 = vpack.c.bf16 %v2099, %v2098
    %v2104 = vpack.c.bf16 %v2101, %v2100
    %v2105 = vld [vmem:[#allocation9] sm:$0x1]
    %v2107 = vlaneseq
    %v2108 = vshrl.u32 %v2107, 7
    %v2109 = vsub.s32 0, %v2108
    %v2110 = vrot.slane %v2105, %v2109
    %v2113 = vsel %vm827, %v2102, 0
    %2115 = vmatprep.subr.bf16.mxu0 0
    %2116 = vmatpush1.bf16.msra.mxu0 0
    %2117 = vmatprep.subr.bf16.mxu0 0
    %2118 = vmatpush1.bf16.msra.mxu0 0
    %2119 = vmatprep.subr.bf16.mxu0 0
    %2120 = vmatpush1.bf16.msra.mxu0 0
    %2121 = vmatprep.subr.bf16.mxu0 0
    %2122 = vmatpush1.bf16.msra.mxu0 0
    %2123 = vmatprep.subr.bf16.mxu0 0
    %2124 = vmatpush1.bf16.msra.mxu0 0
    %2125 = vmatprep.subr.bf16.mxu0 0
    %2126 = vmatpush1.bf16.msra.mxu0 0
    %2127 = vmatprep.subr.bf16.mxu0 0
    %2128 = vmatpush1.bf16.msra.mxu0 %v2104
    %2129 = vmatprep.subr.bf16.mxu0 0
    %2130 = vmatpush1.bf16.msra.mxu0 %v2103
    %2131 = vmatprep.subr.bf16.mxu0 0
    %2132 = vmatpush2.bf16.msra.mxu0 0
    %2133 = vmatprep.subr.bf16.mxu0 0
    %2134 = vmatpush2.bf16.msra.mxu0 0
    %2135 = vmatprep.subr.bf16.mxu0 0
    %2136 = vmatpush2.bf16.msra.mxu0 0
    %2137 = vmatprep.subr.bf16.mxu0 0
    %2138 = vmatpush2.bf16.msra.mxu0 0
    %2139 = vmatprep.subr.bf16.mxu0 0
    %2140 = vmatpush2.bf16.msra.mxu0 0
    %2141 = vmatprep.subr.bf16.mxu0 0
    %2142 = vmatpush2.bf16.msra.mxu0 0
    %2143 = vmatprep.subr.bf16.mxu0 0
    %2144 = vmatpush2.bf16.msra.mxu0 0
    %2145 = vmatprep.subr.bf16.mxu0 0
    %2146 = vmatpush2.bf16.msra.mxu0 0
    %2147 = vmatprep.mubr.bf16.mxu0 0
    %2148 = vmatmul.mubr.bf16.gmra.mxu0 %v2113
    %v2149 = vpop.f32.mrf.mxu0
    %v2150 = vadd.f32 %v2110, %v2149
    %v2151 = vpop.f32.mrf.mxu0
    %v2152 = vpop.f32.mrf.mxu0
    %v2153 = vadd.f32 %v2110, %v2152
    %v2154 = vpop.f32.mrf.mxu0
    %2155 = vdwg.mxu0
    %vm2156 = vcmp.gt.f32.partialorder %v2150, 0.0
    %vm2157 = vcmp.gt.f32.partialorder %v2153, 0.0
    %v2158 = vmul.f32 %v2150, 0.01
    %v2159 = vmul.f32 %v2153, 0.01
    %v2160 = vsel %vm2156, %v2150, %v2158
    %v2161 = vsel %vm2157, %v2153, %v2159
    %v2162 = vld [vmem:[%s25] sm:$0xff]
    %v2163 = vld [vmem:[%s25 + $0x8] sm:$0xff]
    %v2164 = vld [vmem:[%s25 + $0x10] sm:$0xff]
    %v2165 = vld [vmem:[%s25 + $0x18] sm:$0xff]
    %v2166 = vpack.c.bf16 %v2161, %v2160
    %v2167 = vpack.c.bf16 %v2163, %v2162
    %v2168 = vpack.c.bf16 %v2165, %v2164
    %v2169 = vld [vmem:[#allocation11] sm:$0x1]
    %v2171 = vlaneseq
    %v2172 = vshrl.u32 %v2171, 7
    %v2173 = vsub.s32 0, %v2172
    %v2174 = vrot.slane %v2169, %v2173
    %v2177 = vsel %vm827, %v2166, 0
    %2179 = vmatprep.subr.bf16.mxu0 0
    %2180 = vmatpush1.bf16.msra.mxu0 0
    %2181 = vmatprep.subr.bf16.mxu0 0
    %2182 = vmatpush1.bf16.msra.mxu0 0
    %2183 = vmatprep.subr.bf16.mxu0 0
    %2184 = vmatpush1.bf16.msra.mxu0 0
    %2185 = vmatprep.subr.bf16.mxu0 0
    %2186 = vmatpush1.bf16.msra.mxu0 0
    %2187 = vmatprep.subr.bf16.mxu0 0
    %2188 = vmatpush1.bf16.msra.mxu0 0
    %2189 = vmatprep.subr.bf16.mxu0 0
    %2190 = vmatpush1.bf16.msra.mxu0 0
    %2191 = vmatprep.subr.bf16.mxu0 0
    %2192 = vmatpush1.bf16.msra.mxu0 %v2168
    %2193 = vmatprep.subr.bf16.mxu0 0
    %2194 = vmatpush1.bf16.msra.mxu0 %v2167
    %2195 = vmatprep.subr.bf16.mxu0 0
    %2196 = vmatpush2.bf16.msra.mxu0 0
    %2197 = vmatprep.subr.bf16.mxu0 0
    %2198 = vmatpush2.bf16.msra.mxu0 0
    %2199 = vmatprep.subr.bf16.mxu0 0
    %2200 = vmatpush2.bf16.msra.mxu0 0
    %2201 = vmatprep.subr.bf16.mxu0 0
    %2202 = vmatpush2.bf16.msra.mxu0 0
    %2203 = vmatprep.subr.bf16.mxu0 0
    %2204 = vmatpush2.bf16.msra.mxu0 0
    %2205 = vmatprep.subr.bf16.mxu0 0
    %2206 = vmatpush2.bf16.msra.mxu0 0
    %2207 = vmatprep.subr.bf16.mxu0 0
    %2208 = vmatpush2.bf16.msra.mxu0 0
    %2209 = vmatprep.subr.bf16.mxu0 0
    %2210 = vmatpush2.bf16.msra.mxu0 0
    %2211 = vmatprep.mubr.bf16.mxu0 0
    %2212 = vmatmul.mubr.bf16.gmra.mxu0 %v2177
    %v2213 = vpop.f32.mrf.mxu0
    %v2214 = vadd.f32 %v2174, %v2213
    %v2215 = vpop.f32.mrf.mxu0
    %v2216 = vpop.f32.mrf.mxu0
    %v2217 = vadd.f32 %v2174, %v2216
    %v2218 = vpop.f32.mrf.mxu0
    %2219 = vdwg.mxu0
    %2220 = vst.msk [vmem:[%s26] sm:$0xff] %vm144, %v2214
    %2221 = vst.msk [vmem:[%s26 + $0x8] sm:$0xff] %vm144, %v2217
    %v2222 = vld [vmem:[%s17] sm:$0xff]
    %v2223 = vld [vmem:[%s17 + $0x8] sm:$0xff]
    %v2224 = vld [vmem:[%s17 + $0x10] sm:$0xff]
    %v2225 = vld [vmem:[%s17 + $0x18] sm:$0xff]
    %v2226 = vld [vmem:[%s18] sm:$0xff]
    %v2227 = vld [vmem:[%s18 + $0x8] sm:$0xff]
    %v2228 = vld [vmem:[%s18 + $0x10] sm:$0xff]
    %v2229 = vld [vmem:[%s18 + $0x18] sm:$0xff]
    %v2230 = vld [vmem:[%s16] sm:$0x1]
    %v2231 = vsub.f32 %v2222, %v2226
    %v2232 = vsub.f32 %v2223, %v2227
    %v2233 = vsub.f32 %v2224, %v2228
    %v2234 = vsub.f32 %v2225, %v2229
    %v2235 = vpack.c.bf16 %v2232, %v2231
    %v2236 = vpack.c.bf16 %v2234, %v2233
    %v2238 = vlaneseq
    %v2239 = vshrl.u32 %v2238, 7
    %v2240 = vsub.s32 0, %v2239
    %v2241 = vrot.slane %v2230, %v2240
    %2243 = vmatprep.subr.bf16.mxu0 0
    %2244 = vmatpush1.bf16.msra.mxu0 0
    %2245 = vmatprep.subr.bf16.mxu0 0
    %2246 = vmatpush1.bf16.msra.mxu0 0
    %2247 = vmatprep.subr.bf16.mxu0 0
    %2248 = vmatpush1.bf16.msra.mxu0 0
    %2249 = vmatprep.subr.bf16.mxu0 0
    %2250 = vmatpush1.bf16.msra.mxu0 0
    %2251 = vmatprep.subr.bf16.mxu0 0
    %2252 = vmatpush1.bf16.msra.mxu0 0
    %2253 = vmatprep.subr.bf16.mxu0 0
    %2254 = vmatpush1.bf16.msra.mxu0 0
    %2255 = vmatprep.subr.bf16.mxu0 0
    %2256 = vmatpush1.bf16.msra.mxu0 %v2236
    %2257 = vmatprep.subr.bf16.mxu0 0
    %2258 = vmatpush1.bf16.msra.mxu0 %v2235
    %2259 = vmatprep.subr.bf16.mxu0 0
    %2260 = vmatpush2.bf16.msra.mxu0 0
    %2261 = vmatprep.subr.bf16.mxu0 0
    %2262 = vmatpush2.bf16.msra.mxu0 0
    %2263 = vmatprep.subr.bf16.mxu0 0
    %2264 = vmatpush2.bf16.msra.mxu0 0
    %2265 = vmatprep.subr.bf16.mxu0 0
    %2266 = vmatpush2.bf16.msra.mxu0 0
    %2267 = vmatprep.subr.bf16.mxu0 0
    %2268 = vmatpush2.bf16.msra.mxu0 0
    %2269 = vmatprep.subr.bf16.mxu0 0
    %2270 = vmatpush2.bf16.msra.mxu0 0
    %2271 = vmatprep.subr.bf16.mxu0 0
    %2272 = vmatpush2.bf16.msra.mxu0 0
    %2273 = vmatprep.subr.bf16.mxu0 0
    %2274 = vmatpush2.bf16.msra.mxu0 0
    %2275 = vmatprep.mubr.bf16.mxu0 0
    %2276 = vmatmul.mubr.bf16.gmra.mxu0 %v1869
    %v2277 = vpop.f32.mrf.mxu0
    %v2278 = vadd.f32 %v2241, %v2277
    %v2279 = vpop.f32.mrf.mxu0
    %v2280 = vpop.f32.mrf.mxu0
    %v2281 = vadd.f32 %v2241, %v2280
    %v2282 = vpop.f32.mrf.mxu0
    %2283 = vdwg.mxu0
    %v2284 = vpack.c.bf16 %v2227, %v2226
    %v2285 = vpack.c.bf16 %v2229, %v2228
    %2286 = vmatprep.subr.bf16.mxu0 0
    %2287 = vmatpush1.bf16.msra.mxu0 0
    %2288 = vmatprep.subr.bf16.mxu0 0
    %2289 = vmatpush1.bf16.msra.mxu0 0
    %2290 = vmatprep.subr.bf16.mxu0 0
    %2291 = vmatpush1.bf16.msra.mxu0 0
    %2292 = vmatprep.subr.bf16.mxu0 0
    %2293 = vmatpush1.bf16.msra.mxu0 0
    %2294 = vmatprep.subr.bf16.mxu0 0
    %2295 = vmatpush1.bf16.msra.mxu0 0
    %2296 = vmatprep.subr.bf16.mxu0 0
    %2297 = vmatpush1.bf16.msra.mxu0 0
    %2298 = vmatprep.subr.bf16.mxu0 0
    %2299 = vmatpush1.bf16.msra.mxu0 %v2285
    %2300 = vmatprep.subr.bf16.mxu0 0
    %2301 = vmatpush1.bf16.msra.mxu0 %v2284
    %2302 = vmatprep.subr.bf16.mxu0 0
    %2303 = vmatpush2.bf16.msra.mxu0 0
    %2304 = vmatprep.subr.bf16.mxu0 0
    %2305 = vmatpush2.bf16.msra.mxu0 0
    %2306 = vmatprep.subr.bf16.mxu0 0
    %2307 = vmatpush2.bf16.msra.mxu0 0
    %2308 = vmatprep.subr.bf16.mxu0 0
    %2309 = vmatpush2.bf16.msra.mxu0 0
    %2310 = vmatprep.subr.bf16.mxu0 0
    %2311 = vmatpush2.bf16.msra.mxu0 0
    %2312 = vmatprep.subr.bf16.mxu0 0
    %2313 = vmatpush2.bf16.msra.mxu0 0
    %2314 = vmatprep.subr.bf16.mxu0 0
    %2315 = vmatpush2.bf16.msra.mxu0 0
    %2316 = vmatprep.subr.bf16.mxu0 0
    %2317 = vmatpush2.bf16.msra.mxu0 0
    %2318 = vmatprep.mubr.bf16.mxu0 0
    %2319 = vmatmul.mubr.bf16.gmra.mxu0 %v1869
    %v2320 = vpop.f32.mrf.mxu0
    %v2321 = vadd.f32 0.0, %v2320
    %v2322 = vpop.f32.mrf.mxu0
    %v2323 = vpop.f32.mrf.mxu0
    %v2324 = vadd.f32 0.0, %v2323
    %v2325 = vpop.f32.mrf.mxu0
    %2326 = vdwg.mxu0
    %2327 = vmatprep.subr.mxu0 0.0
    %2328 = vmatpush1.msra.mxu0 0.0
    %2329 = vmatprep.subr.mxu0 0.0
    %2330 = vmatpush1.msra.mxu0 0.0
    %2331 = vmatprep.subr.mxu0 0.0
    %2332 = vmatpush1.msra.mxu0 0.0
    %2333 = vmatprep.subr.mxu0 0.0
    %2334 = vmatpush1.msra.mxu0 0.0
    %2335 = vmatprep.subr.mxu0 0.0
    %2336 = vmatpush1.msra.mxu0 0.0
    %2337 = vmatprep.subr.mxu0 0.0
    %2338 = vmatpush1.msra.mxu0 0.0
    %2339 = vmatprep.subr.mxu0 0.0
    %2340 = vmatpush1.msra.mxu0 0.0
    %2341 = vmatprep.subr.mxu0 0.0
    %2342 = vmatpush1.msra.mxu0 0.0
    %2343 = vmatprep.subr.mxu0 0.0
    %2344 = vmatpush1.msra.mxu0 0.0
    %2345 = vmatprep.subr.mxu0 0.0
    %2346 = vmatpush1.msra.mxu0 0.0
    %2347 = vmatprep.subr.mxu0 0.0
    %2348 = vmatpush1.msra.mxu0 0.0
    %2349 = vmatprep.subr.mxu0 0.0
    %2350 = vmatpush1.msra.mxu0 0.0
    %2351 = vmatprep.subr.mxu0 0.0
    %2352 = vmatpush1.msra.mxu0 0.0
    %2353 = vmatprep.subr.mxu0 0.0
    %2354 = vmatpush1.msra.mxu0 0.0
    %2355 = vmatprep.subr.mxu0 0.0
    %2356 = vmatpush1.msra.mxu0 %v2324
    %2357 = vmatprep.subr.mxu0 0.0
    %2358 = vmatpush1.msra.mxu0 %v2321
    %2359 = vmatprep.subr.mxu0 0.0
    %2360 = vmatpush2.msra.mxu0 0.0
    %2361 = vmatprep.subr.mxu0 0.0
    %2362 = vmatpush2.msra.mxu0 0.0
    %2363 = vmatprep.subr.mxu0 0.0
    %2364 = vmatpush2.msra.mxu0 0.0
    %2365 = vmatprep.subr.mxu0 0.0
    %2366 = vmatpush2.msra.mxu0 0.0
    %2367 = vmatprep.subr.mxu0 0.0
    %2368 = vmatpush2.msra.mxu0 0.0
    %2369 = vmatprep.subr.mxu0 0.0
    %2370 = vmatpush2.msra.mxu0 0.0
    %2371 = vmatprep.subr.mxu0 0.0
    %2372 = vmatpush2.msra.mxu0 0.0
    %2373 = vmatprep.subr.mxu0 0.0
    %2374 = vmatpush2.msra.mxu0 0.0
    %2375 = vmatprep.subr.mxu0 0.0
    %2376 = vmatpush2.msra.mxu0 0.0
    %2377 = vmatprep.subr.mxu0 0.0
    %2378 = vmatpush2.msra.mxu0 0.0
    %2379 = vmatprep.subr.mxu0 0.0
    %2380 = vmatpush2.msra.mxu0 0.0
    %2381 = vmatprep.subr.mxu0 0.0
    %2382 = vmatpush2.msra.mxu0 0.0
    %2383 = vmatprep.subr.mxu0 0.0
    %2384 = vmatpush2.msra.mxu0 0.0
    %2385 = vmatprep.subr.mxu0 0.0
    %2386 = vmatpush2.msra.mxu0 0.0
    %2387 = vmatprep.subr.mxu0 0.0
    %2388 = vmatpush2.msra.mxu0 0.0
    %2389 = vmatprep.subr.mxu0 0.0
    %2390 = vmatpush2.msra.mxu0 0.0
    %2391 = vmatprep.mubr.f32.mxu0 0.0
    %2392 = vmatmul.mubr.f32.gmra.mxu0 %v639
    %v2393 = vpop.f32.mrf.mxu0
    %v2394 = vadd.f32 0.0, %v2393
    %v2395 = vpop.f32.mrf.mxu0
    %2396 = vmatprep.mubr.f32.mxu0 0.0
    %2397 = vmatmul.mubr.f32.gmra.mxu0 %v642
    %v2398 = vpop.f32.mrf.mxu0
    %v2399 = vadd.f32 0.0, %v2398
    %v2400 = vpop.f32.mrf.mxu0
    %2401 = vmatprep.mubr.f32.mxu0 0.0
    %2402 = vmatmul.mubr.f32.gmra.mxu0 %v645
    %v2403 = vpop.f32.mrf.mxu0
    %v2404 = vadd.f32 0.0, %v2403
    %v2405 = vpop.f32.mrf.mxu0
    %2406 = vmatprep.mubr.f32.mxu0 0.0
    %2407 = vmatmul.mubr.f32.gmra.mxu0 %v648
    %v2408 = vpop.f32.mrf.mxu0
    %v2409 = vadd.f32 0.0, %v2408
    %v2410 = vpop.f32.mrf.mxu0
    %2411 = vmatprep.mubr.f32.mxu0 0.0
    %2412 = vmatmul.mubr.f32.gmra.mxu0 %v651
    %v2413 = vpop.f32.mrf.mxu0
    %v2414 = vadd.f32 0.0, %v2413
    %v2415 = vpop.f32.mrf.mxu0
    %2416 = vmatprep.mubr.f32.mxu0 0.0
    %2417 = vmatmul.mubr.f32.gmra.mxu0 %v654
    %v2418 = vpop.f32.mrf.mxu0
    %v2419 = vadd.f32 0.0, %v2418
    %v2420 = vpop.f32.mrf.mxu0
    %2421 = vmatprep.mubr.f32.mxu0 0.0
    %2422 = vmatmul.mubr.f32.gmra.mxu0 %v657
    %v2423 = vpop.f32.mrf.mxu0
    %v2424 = vadd.f32 0.0, %v2423
    %v2425 = vpop.f32.mrf.mxu0
    %2426 = vmatprep.mubr.f32.mxu0 0.0
    %2427 = vmatmul.mubr.f32.gmra.mxu0 %v660
    %v2428 = vpop.f32.mrf.mxu0
    %v2429 = vadd.f32 0.0, %v2428
    %v2430 = vpop.f32.mrf.mxu0
    %2431 = vdwg.mxu0
    %v2432 = vadd.f32 %v2278, %v2394
    %v2433 = vadd.f32 %v2281, %v2399
    %vm2434 = vcmp.gt.f32.partialorder %v2432, 0.0
    %vm2435 = vcmp.gt.f32.partialorder %v2433, 0.0
    %v2436 = vmul.f32 %v2432, 0.2
    %v2437 = vmul.f32 %v2433, 0.2
    %v2438 = vsel %vm2434, %v2432, %v2436
    %v2439 = vsel %vm2435, %v2433, %v2437
    %v2440 = vadd.f32 %v2278, %v2404
    %v2441 = vadd.f32 %v2281, %v2409
    %vm2442 = vcmp.gt.f32.partialorder %v2440, 0.0
    %vm2443 = vcmp.gt.f32.partialorder %v2441, 0.0
    %v2444 = vmul.f32 %v2440, 0.2
    %v2445 = vmul.f32 %v2441, 0.2
    %v2446 = vsel %vm2442, %v2440, %v2444
    %v2447 = vsel %vm2443, %v2441, %v2445
    %v2448 = vmax.f32 %v2438, %v2446
    %v2449 = vmax.f32 %v2439, %v2447
    %v2450 = vadd.f32 %v2278, %v2414
    %v2451 = vadd.f32 %v2281, %v2419
    %vm2452 = vcmp.gt.f32.partialorder %v2450, 0.0
    %vm2453 = vcmp.gt.f32.partialorder %v2451, 0.0
    %v2454 = vmul.f32 %v2450, 0.2
    %v2455 = vmul.f32 %v2451, 0.2
    %v2456 = vsel %vm2452, %v2450, %v2454
    %v2457 = vsel %vm2453, %v2451, %v2455
    %v2458 = vmax.f32 %v2448, %v2456
    %v2459 = vmax.f32 %v2449, %v2457
    %v2460 = vadd.f32 %v2278, %v2424
    %v2461 = vadd.f32 %v2281, %v2429
    %vm2462 = vcmp.gt.f32.partialorder %v2460, 0.0
    %vm2463 = vcmp.gt.f32.partialorder %v2461, 0.0
    %v2464 = vmul.f32 %v2460, 0.2
    %v2465 = vmul.f32 %v2461, 0.2
    %v2466 = vsel %vm2462, %v2460, %v2464
    %v2467 = vsel %vm2463, %v2461, %v2465
    %v2468 = vmax.f32 %v2458, %v2466
    %v2469 = vmax.f32 %v2459, %v2467
    %v2470 = vld [vmem:[%s24] sm:$0xff]
    %v2471 = vld [vmem:[%s24 + $0x8] sm:$0xff]
    %v2472 = vld [vmem:[%s24 + $0x10] sm:$0xff]
    %v2473 = vld [vmem:[%s24 + $0x18] sm:$0xff]
    %v2474 = vpack.c.bf16 %v2469, %v2468
    %v2475 = vpack.c.bf16 %v2471, %v2470
    %v2476 = vpack.c.bf16 %v2473, %v2472
    %v2477 = vld [vmem:[#allocation9] sm:$0x1]
    %v2479 = vlaneseq
    %v2480 = vshrl.u32 %v2479, 7
    %v2481 = vsub.s32 0, %v2480
    %v2482 = vrot.slane %v2477, %v2481
    %v2485 = vsel %vm827, %v2474, 0
    %2487 = vmatprep.subr.bf16.mxu0 0
    %2488 = vmatpush1.bf16.msra.mxu0 0
    %2489 = vmatprep.subr.bf16.mxu0 0
    %2490 = vmatpush1.bf16.msra.mxu0 0
    %2491 = vmatprep.subr.bf16.mxu0 0
    %2492 = vmatpush1.bf16.msra.mxu0 0
    %2493 = vmatprep.subr.bf16.mxu0 0
    %2494 = vmatpush1.bf16.msra.mxu0 0
    %2495 = vmatprep.subr.bf16.mxu0 0
    %2496 = vmatpush1.bf16.msra.mxu0 0
    %2497 = vmatprep.subr.bf16.mxu0 0
    %2498 = vmatpush1.bf16.msra.mxu0 0
    %2499 = vmatprep.subr.bf16.mxu0 0
    %2500 = vmatpush1.bf16.msra.mxu0 %v2476
    %2501 = vmatprep.subr.bf16.mxu0 0
    %2502 = vmatpush1.bf16.msra.mxu0 %v2475
    %2503 = vmatprep.subr.bf16.mxu0 0
    %2504 = vmatpush2.bf16.msra.mxu0 0
    %2505 = vmatprep.subr.bf16.mxu0 0
    %2506 = vmatpush2.bf16.msra.mxu0 0
    %2507 = vmatprep.subr.bf16.mxu0 0
    %2508 = vmatpush2.bf16.msra.mxu0 0
    %2509 = vmatprep.subr.bf16.mxu0 0
    %2510 = vmatpush2.bf16.msra.mxu0 0
    %2511 = vmatprep.subr.bf16.mxu0 0
    %2512 = vmatpush2.bf16.msra.mxu0 0
    %2513 = vmatprep.subr.bf16.mxu0 0
    %2514 = vmatpush2.bf16.msra.mxu0 0
    %2515 = vmatprep.subr.bf16.mxu0 0
    %2516 = vmatpush2.bf16.msra.mxu0 0
    %2517 = vmatprep.subr.bf16.mxu0 0
    %2518 = vmatpush2.bf16.msra.mxu0 0
    %2519 = vmatprep.mubr.bf16.mxu0 0
    %2520 = vmatmul.mubr.bf16.gmra.mxu0 %v2485
    %v2521 = vpop.f32.mrf.mxu0
    %v2522 = vadd.f32 %v2482, %v2521
    %v2523 = vpop.f32.mrf.mxu0
    %v2524 = vpop.f32.mrf.mxu0
    %v2525 = vadd.f32 %v2482, %v2524
    %v2526 = vpop.f32.mrf.mxu0
    %2527 = vdwg.mxu0
    %vm2528 = vcmp.gt.f32.partialorder %v2522, 0.0
    %vm2529 = vcmp.gt.f32.partialorder %v2525, 0.0
    %v2530 = vmul.f32 %v2522, 0.01
    %v2531 = vmul.f32 %v2525, 0.01
    %v2532 = vsel %vm2528, %v2522, %v2530
    %v2533 = vsel %vm2529, %v2525, %v2531
    %v2534 = vld [vmem:[%s25] sm:$0xff]
    %v2535 = vld [vmem:[%s25 + $0x8] sm:$0xff]
    %v2536 = vld [vmem:[%s25 + $0x10] sm:$0xff]
    %v2537 = vld [vmem:[%s25 + $0x18] sm:$0xff]
    %v2538 = vpack.c.bf16 %v2533, %v2532
    %v2539 = vpack.c.bf16 %v2535, %v2534
    %v2540 = vpack.c.bf16 %v2537, %v2536
    %v2541 = vld [vmem:[#allocation11] sm:$0x1]
    %v2543 = vlaneseq
    %v2544 = vshrl.u32 %v2543, 7
    %v2545 = vsub.s32 0, %v2544
    %v2546 = vrot.slane %v2541, %v2545
    %v2549 = vsel %vm827, %v2538, 0
    %2551 = vmatprep.subr.bf16.mxu0 0
    %2552 = vmatpush1.bf16.msra.mxu0 0
    %2553 = vmatprep.subr.bf16.mxu0 0
    %2554 = vmatpush1.bf16.msra.mxu0 0
    %2555 = vmatprep.subr.bf16.mxu0 0
    %2556 = vmatpush1.bf16.msra.mxu0 0
    %2557 = vmatprep.subr.bf16.mxu0 0
    %2558 = vmatpush1.bf16.msra.mxu0 0
    %2559 = vmatprep.subr.bf16.mxu0 0
    %2560 = vmatpush1.bf16.msra.mxu0 0
    %2561 = vmatprep.subr.bf16.mxu0 0
    %2562 = vmatpush1.bf16.msra.mxu0 0
    %2563 = vmatprep.subr.bf16.mxu0 0
    %2564 = vmatpush1.bf16.msra.mxu0 %v2540
    %2565 = vmatprep.subr.bf16.mxu0 0
    %2566 = vmatpush1.bf16.msra.mxu0 %v2539
    %2567 = vmatprep.subr.bf16.mxu0 0
    %2568 = vmatpush2.bf16.msra.mxu0 0
    %2569 = vmatprep.subr.bf16.mxu0 0
    %2570 = vmatpush2.bf16.msra.mxu0 0
    %2571 = vmatprep.subr.bf16.mxu0 0
    %2572 = vmatpush2.bf16.msra.mxu0 0
    %2573 = vmatprep.subr.bf16.mxu0 0
    %2574 = vmatpush2.bf16.msra.mxu0 0
    %2575 = vmatprep.subr.bf16.mxu0 0
    %2576 = vmatpush2.bf16.msra.mxu0 0
    %2577 = vmatprep.subr.bf16.mxu0 0
    %2578 = vmatpush2.bf16.msra.mxu0 0
    %2579 = vmatprep.subr.bf16.mxu0 0
    %2580 = vmatpush2.bf16.msra.mxu0 0
    %2581 = vmatprep.subr.bf16.mxu0 0
    %2582 = vmatpush2.bf16.msra.mxu0 0
    %2583 = vmatprep.mubr.bf16.mxu0 0
    %2584 = vmatmul.mubr.bf16.gmra.mxu0 %v2549
    %v2585 = vpop.f32.mrf.mxu0
    %v2586 = vadd.f32 %v2546, %v2585
    %v2587 = vpop.f32.mrf.mxu0
    %v2588 = vpop.f32.mrf.mxu0
    %v2589 = vadd.f32 %v2546, %v2588
    %v2590 = vpop.f32.mrf.mxu0
    %2591 = vdwg.mxu0
    %s2592 = scalar_lea.vmem %s26, 16
    %2593 = vst.msk [vmem:[%s2592] sm:$0xff] %vm144, %v2586
    %2594 = vst.msk [vmem:[%s2592 + $0x8] sm:$0xff] %vm144, %v2589
    // Predicated region
    $region126: #{pugcn_forward.1} parent=1 // pred_check
      _
    $region127: #{pugcn_forward.1} parent=1 // pred_check_branch
      %2596 = sbr.rel (0) target = $region129
    $region128: #{pugcn_forward.1} parent=1 // pred_region
      _
    $region129: #{pugcn_forward.1} parent=1 // pred_fallthru
      _
    // Predicated region
    $region130: #{pugcn_forward.1} parent=1 // pred_check
      _
    $region131: #{pugcn_forward.1} parent=1 // pred_check_branch
      %2598 = sbr.rel (0) target = $region133
    $region132: #{pugcn_forward.1} parent=1 // pred_region
      _
    $region133: #{pugcn_forward.1} parent=1 // pred_fallthru
      _
    %2599 = vsyncpa [#allocation5], 1
    %2600 = vsyncpa [#allocation7], 1
    %2601 = vsyncpa [#allocation10], 1

</llo_original>
